<compile_context>
chip_gen: v7x
topology: tpu7x:2x2x1
jax: 0.10.0
libtpu: 0.0.40
codegen_flags: <defaults>
</compile_context>

<pallas_src>
import functools
import math

import jax
import jax.numpy as jnp
from jax import lax
from jax.experimental import pallas as pl
from jax.experimental.pallas import tpu as pltpu


def _layernorm(v, gamma, beta, eps=1e-5):
    # single-pass statistics: E[x] and E[x^2] from one data sweep
    mu = jnp.mean(v, axis=-1, keepdims=True)
    m2 = jnp.mean(v * v, axis=-1, keepdims=True)
    var = m2 - mu * mu
    return (v - mu) * lax.rsqrt(var + eps) * gamma + beta


def _gelu_exact(v):
    # torch.nn.GELU default: 0.5 * x * (1 + erf(x / sqrt(2)))
    return 0.5 * v * (1.0 + lax.erf(v * (1.0 / math.sqrt(2.0))))


def transformer_block_kernel(
    x_ref,                      # (1, S, D)  f32
    g1_ref, b1_ref,             # (1, D)     f32
    wq_ref, bq_ref,             # (D, D) bf16, (1, D) f32   (1/sqrt(hs) pre-folded)
    wkv_ref, bkv_ref,           # (D, 2D) bf16, (1, 2D) f32
    wo_ref, bo_ref,             # (D, D) bf16, (1, D) f32
    g2_ref, b2_ref,             # (1, D)     f32
    w1_ref, bm1_ref,            # (D, 4D) bf16, (1, 4D) f32
    w2_ref, bm2_ref,            # (4D, D) bf16, (1, D) f32
    o_ref,                      # (1, tq, D) f32
    attn_ref,                   # (tq, D)    f32 VMEM scratch (concatenated head outputs)
    *, n_heads,
):
    tq = o_ref.shape[1]
    S = x_ref.shape[1]
    D = x_ref.shape[2]
    H = n_heads
    hs = D // H

    qt = pl.program_id(1)
    q_start = qt * tq
    if tq % 8 == 0:
        q_start = pl.multiple_of(q_start, 8)

    g1 = g1_ref[...]
    b1 = b1_ref[...]

    # ---- LN1 over the full sequence (needed for K/V) ----
    xn_full = _layernorm(x_ref[0], g1, b1)                       # (S, D) f32
    xn_full_bf = xn_full.astype(jnp.bfloat16)

    # ---- fused K/V projection: one lane-dense (S, D) @ (D, 2D) matmul ----
    kv = jnp.dot(xn_full_bf, wkv_ref[...],
                 preferred_element_type=jnp.float32) + bkv_ref[...]   # (S, 2D) f32

    # ---- q-tile rows of the residual stream and their LN1 ----
    x_tile = x_ref[0, pl.ds(q_start, tq), :]                     # (tq, D) f32
    xn_tile_bf = _layernorm(x_tile, g1, b1).astype(jnp.bfloat16)

    # ---- Q projection for this tile (scale already folded into wq/bq) ----
    q = jnp.dot(xn_tile_bf, wq_ref[...],
                preferred_element_type=jnp.float32) + bq_ref[...]     # (tq, D) f32

    # ---- per-head attention; head outputs written lane-contiguously into VMEM scratch
    #      (no long-lived (S,D) accumulator; each head's intermediates die per iteration) ----
    for h in range(H):
        lo = h * hs
        hi = lo + hs
        qh = q[:, lo:hi].astype(jnp.bfloat16)                    # (tq, hs)
        kh = kv[:, lo:hi].astype(jnp.bfloat16)                   # (S, hs)
        vh = kv[:, D + lo:D + hi].astype(jnp.bfloat16)           # (S, hs)
        s = jnp.dot(qh, kh.T, preferred_element_type=jnp.float32)    # (tq, S)
        s = s - jnp.max(s, axis=-1, keepdims=True)
        p = jnp.exp(s)
        p = p * pl.reciprocal(jnp.sum(p, axis=-1, keepdims=True), approx=True)
        attn_ref[:, lo:hi] = jnp.dot(p.astype(jnp.bfloat16), vh,
                                     preferred_element_type=jnp.float32)

    # ---- single output projection: (tq, D) @ (D, D) ----
    mha = jnp.dot(attn_ref[...].astype(jnp.bfloat16), wo_ref[...],
                  preferred_element_type=jnp.float32) + bo_ref[...]
    out1 = x_tile + mha

    # ---- LN2 + MLP, hidden dimension processed in lane chunks ----
    xn2_bf = _layernorm(out1, g2_ref[...], b2_ref[...]).astype(jnp.bfloat16)
    HID = w1_ref.shape[1]
    tn = 512 if (HID > 512 and HID % 512 == 0) else HID
    mlp = jnp.zeros((tq, D), jnp.float32)
    for c in range(HID // tn):
        lo = c * tn
        hi = lo + tn
        hc = jnp.dot(xn2_bf, w1_ref[:, lo:hi],
                     preferred_element_type=jnp.float32) + bm1_ref[:, lo:hi]
        hc = _gelu_exact(hc).astype(jnp.bfloat16)
        mlp = mlp + jnp.dot(hc, w2_ref[lo:hi, :],
                            preferred_element_type=jnp.float32)
    mlp = mlp + bm2_ref[...]

    o_ref[0] = (out1 + mlp).astype(o_ref.dtype)


def _pack_params(params):
    """Wrapper-side fusion: pack per-head weights lane-dense, fold 1/sqrt(hs) into Q,
    cast matmul weights to bf16 (biases / LN params stay f32)."""
    H, D, hs = params["wq"].shape
    inv = 1.0 / math.sqrt(hs)

    def pack_w(w):   # (H, D, hs) -> (D, H*hs), column block h == head h
        return w.transpose(1, 0, 2).reshape(D, H * hs)

    def pack_b(b):   # (H, 1, hs) -> (1, H*hs)
        return b.reshape(1, H * hs)

    wq = (pack_w(params["wq"]) * inv).astype(jnp.bfloat16)
    bq = (pack_b(params["bq"]) * inv).astype(jnp.float32)
    wkv = jnp.concatenate([pack_w(params["wk"]), pack_w(params["wv"])],
                          axis=1).astype(jnp.bfloat16)
    bkv = jnp.concatenate([pack_b(params["bk"]), pack_b(params["bv"])],
                          axis=1).astype(jnp.float32)
    return dict(
        g1=params["g1"], b1=params["b1"],
        wq=wq, bq=bq, wkv=wkv, bkv=bkv,
        wo=params["wo"].astype(jnp.bfloat16), bo=params["bo"],
        g2=params["g2"], b2=params["b2"],
        w1=params["w1"].astype(jnp.bfloat16), bm1=params["bm1"],
        w2=params["w2"].astype(jnp.bfloat16), bm2=params["bm2"],
    )


def transformer_block(x, params):
    """x: (B, S, D) float32.  params: PyTorch-style dict (see init_params)."""
    B, S, D = x.shape
    H = params["wq"].shape[0]
    assert D % H == 0

    packed = _pack_params(params)
    plist = [packed[k] for k in ("g1", "b1", "wq", "bq", "wkv", "bkv", "wo",
                                 "bo", "g2", "b2", "w1", "bm1", "w2", "bm2")]

    # sequence tiling: tq a multiple of 8 (256 at scale); full sequence for small S
    tq = 256 if (S > 256 and S % 256 == 0) else S
    n_qt = S // tq

    def build(single_buffer_weights):
        def const_spec(arr):
            n = arr.ndim
            idx = lambda b, q, _n=n: (0,) * _n
            if single_buffer_weights:
                # Weights never change block index across the grid; one buffer suffices
                # (halves their resident VMEM footprint — matters on v7x's 64 MiB).
                return pl.BlockSpec(arr.shape, idx, pipeline_mode=pl.Buffered(1))
            return pl.BlockSpec(arr.shape, idx)

        return pl.pallas_call(
            functools.partial(transformer_block_kernel, n_heads=H),
            out_shape=jax.ShapeDtypeStruct((B, S, D), jnp.float32),
            grid=(B, n_qt),
            in_specs=[pl.BlockSpec((1, S, D), lambda b, q: (b, 0, 0))]
                     + [const_spec(p) for p in plist],
            out_specs=pl.BlockSpec((1, tq, D), lambda b, q: (b, q, 0)),
            scratch_shapes=[pltpu.VMEM((tq, D), jnp.float32)],
            compiler_params=pltpu.CompilerParams(
                dimension_semantics=("parallel", "parallel"),
                vmem_limit_bytes=48 * 1024 * 1024,
            ),
        )

    try:
        return build(True)(x, *plist)
    except Exception:
        # pl.Buffered(1) not supported on this jax/libtpu build -> default buffering.
        return build(False)(x, *plist)


def init_params(key, d_model, n_heads, r_mlp=4):
    hs = d_model // n_heads
    keys = jax.random.split(key, 12)
    s = 0.05  # small deterministic synthetic init
    return {
        "g1": jnp.ones((1, d_model), jnp.float32),
        "b1": jnp.zeros((1, d_model), jnp.float32),
        "wq": s * jax.random.normal(keys[0], (n_heads, d_model, hs), jnp.float32),
        "bq": s * jax.random.normal(keys[1], (n_heads, 1, hs), jnp.float32),
        "wk": s * jax.random.normal(keys[2], (n_heads, d_model, hs), jnp.float32),
        "bk": s * jax.random.normal(keys[3], (n_heads, 1, hs), jnp.float32),
        "wv": s * jax.random.normal(keys[4], (n_heads, d_model, hs), jnp.float32),
        "bv": s * jax.random.normal(keys[5], (n_heads, 1, hs), jnp.float32),
        "wo": s * jax.random.normal(keys[6], (d_model, d_model), jnp.float32),
        "bo": s * jax.random.normal(keys[7], (1, d_model), jnp.float32),
        "g2": jnp.ones((1, d_model), jnp.float32),
        "b2": jnp.zeros((1, d_model), jnp.float32),
        "w1": s * jax.random.normal(keys[8], (d_model, r_mlp * d_model), jnp.float32),
        "bm1": s * jax.random.normal(keys[9], (1, r_mlp * d_model), jnp.float32),
        "w2": s * jax.random.normal(keys[10], (r_mlp * d_model, d_model), jnp.float32),
        "bm2": s * jax.random.normal(keys[11], (1, d_model), jnp.float32),
    }


def transformer_block_ref(x, params):
    """Pure-JAX f32 reference mirroring the PyTorch forward semantics."""
    H = params["wq"].shape[0]
    hs = params["wq"].shape[2]
    xn = _layernorm(x, params["g1"], params["b1"])
    heads = []
    for h in range(H):
        q = xn @ params["wq"][h] + params["bq"][h]
        k = xn @ params["wk"][h] + params["bk"][h]
        v = xn @ params["wv"][h] + params["bv"][h]
        att = jnp.einsum("bqd,bkd->bqk", q, k) / math.sqrt(hs)
        att = jax.nn.softmax(att, axis=-1)
        heads.append(jnp.einsum("bqk,bkd->bqd", att, v))
    cat = jnp.concatenate(heads, axis=-1)
    out1 = x + (cat @ params["wo"] + params["bo"])
    xn2 = _layernorm(out1, params["g2"], params["b2"])
    hdn = _gelu_exact(xn2 @ params["w1"] + params["bm1"])
    return out1 + (hdn @ params["w2"] + params["bm2"])


if __name__ == "__main__":
    B, S, d_model, n_heads = 2, 8, 32, 4

    key = jax.random.PRNGKey(0)
    kx, kp = jax.random.split(key)
    x = jax.random.normal(kx, (B, S, d_model), jnp.float32)
    params = init_params(kp, d_model, n_heads, r_mlp=4)

    out = jax.block_until_ready(transformer_block(x, params))
    ref = jax.block_until_ready(transformer_block_ref(x, params))

    assert out.shape == (B, S, d_model)
    max_err = float(jnp.max(jnp.abs(out - ref)))
    # bf16 MXU operands + approx reciprocal -> loosened tolerance vs pure-f32 reference
    assert jnp.allclose(out, ref, atol=3e-2, rtol=3e-2), max_err

    print("KERNEL_OK")
</pallas_src>

<mosaic_0001>
module attributes {stable_mosaic.version = 11 : i64} {
  func.func @transformer_block_kernel(%arg0: i32, %arg1: i32, %arg2: memref<1x8x32xf32, #tpu.memory_space<vmem>>, %arg3: memref<1x32xf32, #tpu.memory_space<vmem>>, %arg4: memref<1x32xf32, #tpu.memory_space<vmem>>, %arg5: memref<32x32xbf16, #tpu.memory_space<vmem>>, %arg6: memref<1x32xf32, #tpu.memory_space<vmem>>, %arg7: memref<32x64xbf16, #tpu.memory_space<vmem>>, %arg8: memref<1x64xf32, #tpu.memory_space<vmem>>, %arg9: memref<32x32xbf16, #tpu.memory_space<vmem>>, %arg10: memref<1x32xf32, #tpu.memory_space<vmem>>, %arg11: memref<1x32xf32, #tpu.memory_space<vmem>>, %arg12: memref<1x32xf32, #tpu.memory_space<vmem>>, %arg13: memref<32x128xbf16, #tpu.memory_space<vmem>>, %arg14: memref<1x128xf32, #tpu.memory_space<vmem>>, %arg15: memref<128x32xbf16, #tpu.memory_space<vmem>>, %arg16: memref<1x32xf32, #tpu.memory_space<vmem>>, %arg17: memref<1x8x32xf32, #tpu.memory_space<vmem>>, %arg18: memref<8x32xf32, #tpu.memory_space<vmem>>) attributes {dimension_semantics = [#tpu.dimension_semantics<parallel>, #tpu.dimension_semantics<parallel>], iteration_bounds = array<i64: 2, 1>, scalar_prefetch = 0 : i64, scratch_operands = 1 : i64, tpu.core_type = #tpu.core_type<tc>, window_params = [{transform_indices = @transform_0, window_bounds = array<i64: 1, 8, 32>}, {pipeline_mode = #tpu.pipeline_mode<synchronous>, transform_indices = @transform_1, window_bounds = array<i64: 1, 32>}, {pipeline_mode = #tpu.pipeline_mode<synchronous>, transform_indices = @transform_2, window_bounds = array<i64: 1, 32>}, {pipeline_mode = #tpu.pipeline_mode<synchronous>, transform_indices = @transform_3, window_bounds = array<i64: 32, 32>}, {pipeline_mode = #tpu.pipeline_mode<synchronous>, transform_indices = @transform_4, window_bounds = array<i64: 1, 32>}, {pipeline_mode = #tpu.pipeline_mode<synchronous>, transform_indices = @transform_5, window_bounds = array<i64: 32, 64>}, {pipeline_mode = #tpu.pipeline_mode<synchronous>, transform_indices = @transform_6, window_bounds = array<i64: 1, 64>}, {pipeline_mode = #tpu.pipeline_mode<synchronous>, transform_indices = @transform_7, window_bounds = array<i64: 32, 32>}, {pipeline_mode = #tpu.pipeline_mode<synchronous>, transform_indices = @transform_8, window_bounds = array<i64: 1, 32>}, {pipeline_mode = #tpu.pipeline_mode<synchronous>, transform_indices = @transform_9, window_bounds = array<i64: 1, 32>}, {pipeline_mode = #tpu.pipeline_mode<synchronous>, transform_indices = @transform_10, window_bounds = array<i64: 1, 32>}, {pipeline_mode = #tpu.pipeline_mode<synchronous>, transform_indices = @transform_11, window_bounds = array<i64: 32, 128>}, {pipeline_mode = #tpu.pipeline_mode<synchronous>, transform_indices = @transform_12, window_bounds = array<i64: 1, 128>}, {pipeline_mode = #tpu.pipeline_mode<synchronous>, transform_indices = @transform_13, window_bounds = array<i64: 128, 32>}, {pipeline_mode = #tpu.pipeline_mode<synchronous>, transform_indices = @transform_14, window_bounds = array<i64: 1, 32>}, {transform_indices = @transform_15, window_bounds = array<i64: 1, 8, 32>}]} {
    %c8_i32 = arith.constant 8 : i32
    %0 = arith.muli %arg1, %c8_i32 : i32
    %1 = tpu.assume_multiple %0, 8 : i32
    %c0 = arith.constant 0 : index
    %c0_0 = arith.constant 0 : index
    %2 = vector.load %arg3[%c0, %c0_0] : memref<1x32xf32, #tpu.memory_space<vmem>>, vector<1x32xf32>
    %c0_1 = arith.constant 0 : index
    %c0_2 = arith.constant 0 : index
    %3 = vector.load %arg4[%c0_1, %c0_2] : memref<1x32xf32, #tpu.memory_space<vmem>>, vector<1x32xf32>
    %c0_3 = arith.constant 0 : index
    %c0_4 = arith.constant 0 : index
    %c0_5 = arith.constant 0 : index
    %4 = vector.load %arg2[%c0_3, %c0_4, %c0_5] : memref<1x8x32xf32, #tpu.memory_space<vmem>>, vector<1x8x32xf32>
    %5 = vector.shape_cast %4 : vector<1x8x32xf32> to vector<8x32xf32>
    %cst = arith.constant dense<0.000000e+00> : vector<8xf32>
    %6 = vector.multi_reduction <add>, %5, %cst [1] : vector<8x32xf32> to vector<8xf32>
    %7 = vector.shape_cast %6 : vector<8xf32> to vector<8x1xf32>
    %cst_6 = arith.constant 3.200000e+01 : f32
    %8 = vector.broadcast %cst_6 : f32 to vector<8x1xf32>
    %9 = arith.divf %7, %8 : vector<8x1xf32>
    %10 = arith.mulf %5, %5 : vector<8x32xf32>
    %cst_7 = arith.constant dense<0.000000e+00> : vector<8xf32>
    %11 = vector.multi_reduction <add>, %10, %cst_7 [1] : vector<8x32xf32> to vector<8xf32>
    %12 = vector.shape_cast %11 : vector<8xf32> to vector<8x1xf32>
    %cst_8 = arith.constant 3.200000e+01 : f32
    %13 = vector.broadcast %cst_8 : f32 to vector<8x1xf32>
    %14 = arith.divf %12, %13 : vector<8x1xf32>
    %15 = arith.mulf %9, %9 : vector<8x1xf32>
    %16 = arith.subf %14, %15 : vector<8x1xf32>
    %17 = vector.broadcast %9 : vector<8x1xf32> to vector<8x32xf32>
    %18 = arith.subf %5, %17 : vector<8x32xf32>
    %cst_9 = arith.constant 9.99999974E-6 : f32
    %19 = vector.broadcast %cst_9 : f32 to vector<8x1xf32>
    %20 = arith.addf %16, %19 : vector<8x1xf32>
    %21 = math.rsqrt %20 : vector<8x1xf32>
    %22 = vector.broadcast %21 : vector<8x1xf32> to vector<8x32xf32>
    %23 = arith.mulf %18, %22 : vector<8x32xf32>
    %24 = vector.broadcast %2 : vector<1x32xf32> to vector<8x32xf32>
    %25 = arith.mulf %23, %24 : vector<8x32xf32>
    %26 = vector.broadcast %3 : vector<1x32xf32> to vector<8x32xf32>
    %27 = arith.addf %25, %26 : vector<8x32xf32>
    %28 = arith.truncf %27 : vector<8x32xf32> to vector<8x32xbf16>
    %c0_10 = arith.constant 0 : index
    %c0_11 = arith.constant 0 : index
    %29 = vector.load %arg7[%c0_10, %c0_11] : memref<32x64xbf16, #tpu.memory_space<vmem>>, vector<32x64xbf16>
    %cst_12 = arith.constant dense<0.000000e+00> : vector<8x64xf32>
    %30 = tpu.matmul %28, %29, %cst_12 {dimension_numbers = #tpu.dot_dimension_numbers<[1], [0], [0], [1], [0, 0, 1, 1], [], []>} : vector<8x32xbf16>, vector<32x64xbf16>, vector<8x64xf32> -> vector<8x64xf32>
    %c0_13 = arith.constant 0 : index
    %c0_14 = arith.constant 0 : index
    %31 = vector.load %arg8[%c0_13, %c0_14] : memref<1x64xf32, #tpu.memory_space<vmem>>, vector<1x64xf32>
    %32 = vector.broadcast %31 : vector<1x64xf32> to vector<8x64xf32>
    %33 = arith.addf %30, %32 : vector<8x64xf32>
    %c0_15 = arith.constant 0 : index
    %34 = arith.index_cast %1 : i32 to index
    %c0_16 = arith.constant 0 : index
    %35 = vector.load %arg2[%c0_15, %34, %c0_16] : memref<1x8x32xf32, #tpu.memory_space<vmem>>, vector<1x8x32xf32>
    %36 = vector.shape_cast %35 : vector<1x8x32xf32> to vector<8x32xf32>
    %cst_17 = arith.constant dense<0.000000e+00> : vector<8xf32>
    %37 = vector.multi_reduction <add>, %36, %cst_17 [1] : vector<8x32xf32> to vector<8xf32>
    %38 = vector.shape_cast %37 : vector<8xf32> to vector<8x1xf32>
    %cst_18 = arith.constant 3.200000e+01 : f32
    %39 = vector.broadcast %cst_18 : f32 to vector<8x1xf32>
    %40 = arith.divf %38, %39 : vector<8x1xf32>
    %41 = arith.mulf %36, %36 : vector<8x32xf32>
    %cst_19 = arith.constant dense<0.000000e+00> : vector<8xf32>
    %42 = vector.multi_reduction <add>, %41, %cst_19 [1] : vector<8x32xf32> to vector<8xf32>
    %43 = vector.shape_cast %42 : vector<8xf32> to vector<8x1xf32>
    %cst_20 = arith.constant 3.200000e+01 : f32
    %44 = vector.broadcast %cst_20 : f32 to vector<8x1xf32>
    %45 = arith.divf %43, %44 : vector<8x1xf32>
    %46 = arith.mulf %40, %40 : vector<8x1xf32>
    %47 = arith.subf %45, %46 : vector<8x1xf32>
    %48 = vector.broadcast %40 : vector<8x1xf32> to vector<8x32xf32>
    %49 = arith.subf %36, %48 : vector<8x32xf32>
    %cst_21 = arith.constant 9.99999974E-6 : f32
    %50 = vector.broadcast %cst_21 : f32 to vector<8x1xf32>
    %51 = arith.addf %47, %50 : vector<8x1xf32>
    %52 = math.rsqrt %51 : vector<8x1xf32>
    %53 = vector.broadcast %52 : vector<8x1xf32> to vector<8x32xf32>
    %54 = arith.mulf %49, %53 : vector<8x32xf32>
    %55 = vector.broadcast %2 : vector<1x32xf32> to vector<8x32xf32>
    %56 = arith.mulf %54, %55 : vector<8x32xf32>
    %57 = vector.broadcast %3 : vector<1x32xf32> to vector<8x32xf32>
    %58 = arith.addf %56, %57 : vector<8x32xf32>
    %59 = arith.truncf %58 : vector<8x32xf32> to vector<8x32xbf16>
    %c0_22 = arith.constant 0 : index
    %c0_23 = arith.constant 0 : index
    %60 = vector.load %arg5[%c0_22, %c0_23] : memref<32x32xbf16, #tpu.memory_space<vmem>>, vector<32x32xbf16>
    %cst_24 = arith.constant dense<0.000000e+00> : vector<8x32xf32>
    %61 = tpu.matmul %59, %60, %cst_24 {dimension_numbers = #tpu.dot_dimension_numbers<[1], [0], [0], [1], [0, 0, 1, 1], [], []>} : vector<8x32xbf16>, vector<32x32xbf16>, vector<8x32xf32> -> vector<8x32xf32>
    %c0_25 = arith.constant 0 : index
    %c0_26 = arith.constant 0 : index
    %62 = vector.load %arg6[%c0_25, %c0_26] : memref<1x32xf32, #tpu.memory_space<vmem>>, vector<1x32xf32>
    %63 = vector.broadcast %62 : vector<1x32xf32> to vector<8x32xf32>
    %64 = arith.addf %61, %63 : vector<8x32xf32>
    %65 = vector.extract_strided_slice %64 {offsets = [0, 0], sizes = [8, 8], strides = [1, 1]} : vector<8x32xf32> to vector<8x8xf32>
    %66 = arith.truncf %65 : vector<8x8xf32> to vector<8x8xbf16>
    %67 = vector.extract_strided_slice %33 {offsets = [0, 0], sizes = [8, 8], strides = [1, 1]} : vector<8x64xf32> to vector<8x8xf32>
    %68 = arith.truncf %67 : vector<8x8xf32> to vector<8x8xbf16>
    %69 = vector.extract_strided_slice %33 {offsets = [0, 32], sizes = [8, 8], strides = [1, 1]} : vector<8x64xf32> to vector<8x8xf32>
    %70 = arith.truncf %69 : vector<8x8xf32> to vector<8x8xbf16>
    %71 = tpu.transpose %68, [1, 0] : vector<8x8xbf16> -> vector<8x8xbf16>
    %cst_27 = arith.constant dense<0.000000e+00> : vector<8x8xf32>
    %72 = tpu.matmul %66, %71, %cst_27 {dimension_numbers = #tpu.dot_dimension_numbers<[1], [0], [0], [1], [0, 0, 1, 1], [], []>} : vector<8x8xbf16>, vector<8x8xbf16>, vector<8x8xf32> -> vector<8x8xf32>
    %cst_28 = arith.constant dense<0xFF800000> : vector<8xf32>
    %73 = vector.multi_reduction <maximumf>, %72, %cst_28 [1] : vector<8x8xf32> to vector<8xf32>
    %74 = vector.shape_cast %73 : vector<8xf32> to vector<8x1xf32>
    %75 = vector.broadcast %74 : vector<8x1xf32> to vector<8x8xf32>
    %76 = arith.subf %72, %75 : vector<8x8xf32>
    %77 = math.exp %76 : vector<8x8xf32>
    %cst_29 = arith.constant dense<0.000000e+00> : vector<8xf32>
    %78 = vector.multi_reduction <add>, %77, %cst_29 [1] : vector<8x8xf32> to vector<8xf32>
    %79 = vector.shape_cast %78 : vector<8xf32> to vector<8x1xf32>
    %80 = tpu.reciprocal %79 {approx = true} : vector<8x1xf32> -> vector<8x1xf32>
    %81 = vector.broadcast %80 : vector<8x1xf32> to vector<8x8xf32>
    %82 = arith.mulf %77, %81 : vector<8x8xf32>
    %83 = arith.truncf %82 : vector<8x8xf32> to vector<8x8xbf16>
    %cst_30 = arith.constant dense<0.000000e+00> : vector<8x8xf32>
    %84 = tpu.matmul %83, %70, %cst_30 {dimension_numbers = #tpu.dot_dimension_numbers<[1], [0], [0], [1], [0, 0, 1, 1], [], []>} : vector<8x8xbf16>, vector<8x8xbf16>, vector<8x8xf32> -> vector<8x8xf32>
    %c0_31 = arith.constant 0 : index
    %c0_32 = arith.constant 0 : index
    %85 = vector.load %arg18[%c0_31, %c0_32] : memref<8x32xf32, #tpu.memory_space<vmem>>, vector<8x8xf32>
    tpu.vector_store %arg18[%c0_31, %c0_32], %84 {strides = array<i32>} : memref<8x32xf32, #tpu.memory_space<vmem>>, vector<8x8xf32>,
    %86 = vector.extract_strided_slice %64 {offsets = [0, 8], sizes = [8, 8], strides = [1, 1]} : vector<8x32xf32> to vector<8x8xf32>
    %87 = arith.truncf %86 : vector<8x8xf32> to vector<8x8xbf16>
    %88 = vector.extract_strided_slice %33 {offsets = [0, 8], sizes = [8, 8], strides = [1, 1]} : vector<8x64xf32> to vector<8x8xf32>
    %89 = arith.truncf %88 : vector<8x8xf32> to vector<8x8xbf16>
    %90 = vector.extract_strided_slice %33 {offsets = [0, 40], sizes = [8, 8], strides = [1, 1]} : vector<8x64xf32> to vector<8x8xf32>
    %91 = arith.truncf %90 : vector<8x8xf32> to vector<8x8xbf16>
    %92 = tpu.transpose %89, [1, 0] : vector<8x8xbf16> -> vector<8x8xbf16>
    %cst_33 = arith.constant dense<0.000000e+00> : vector<8x8xf32>
    %93 = tpu.matmul %87, %92, %cst_33 {dimension_numbers = #tpu.dot_dimension_numbers<[1], [0], [0], [1], [0, 0, 1, 1], [], []>} : vector<8x8xbf16>, vector<8x8xbf16>, vector<8x8xf32> -> vector<8x8xf32>
    %cst_34 = arith.constant dense<0xFF800000> : vector<8xf32>
    %94 = vector.multi_reduction <maximumf>, %93, %cst_34 [1] : vector<8x8xf32> to vector<8xf32>
    %95 = vector.shape_cast %94 : vector<8xf32> to vector<8x1xf32>
    %96 = vector.broadcast %95 : vector<8x1xf32> to vector<8x8xf32>
    %97 = arith.subf %93, %96 : vector<8x8xf32>
    %98 = math.exp %97 : vector<8x8xf32>
    %cst_35 = arith.constant dense<0.000000e+00> : vector<8xf32>
    %99 = vector.multi_reduction <add>, %98, %cst_35 [1] : vector<8x8xf32> to vector<8xf32>
    %100 = vector.shape_cast %99 : vector<8xf32> to vector<8x1xf32>
    %101 = tpu.reciprocal %100 {approx = true} : vector<8x1xf32> -> vector<8x1xf32>
    %102 = vector.broadcast %101 : vector<8x1xf32> to vector<8x8xf32>
    %103 = arith.mulf %98, %102 : vector<8x8xf32>
    %104 = arith.truncf %103 : vector<8x8xf32> to vector<8x8xbf16>
    %cst_36 = arith.constant dense<0.000000e+00> : vector<8x8xf32>
    %105 = tpu.matmul %104, %91, %cst_36 {dimension_numbers = #tpu.dot_dimension_numbers<[1], [0], [0], [1], [0, 0, 1, 1], [], []>} : vector<8x8xbf16>, vector<8x8xbf16>, vector<8x8xf32> -> vector<8x8xf32>
    %c0_37 = arith.constant 0 : index
    %c8 = arith.constant 8 : index
    %106 = vector.load %arg18[%c0_37, %c8] : memref<8x32xf32, #tpu.memory_space<vmem>>, vector<8x8xf32>
    tpu.vector_store %arg18[%c0_37, %c8], %105 {strides = array<i32>} : memref<8x32xf32, #tpu.memory_space<vmem>>, vector<8x8xf32>,
    %107 = vector.extract_strided_slice %64 {offsets = [0, 16], sizes = [8, 8], strides = [1, 1]} : vector<8x32xf32> to vector<8x8xf32>
    %108 = arith.truncf %107 : vector<8x8xf32> to vector<8x8xbf16>
    %109 = vector.extract_strided_slice %33 {offsets = [0, 16], sizes = [8, 8], strides = [1, 1]} : vector<8x64xf32> to vector<8x8xf32>
    %110 = arith.truncf %109 : vector<8x8xf32> to vector<8x8xbf16>
    %111 = vector.extract_strided_slice %33 {offsets = [0, 48], sizes = [8, 8], strides = [1, 1]} : vector<8x64xf32> to vector<8x8xf32>
    %112 = arith.truncf %111 : vector<8x8xf32> to vector<8x8xbf16>
    %113 = tpu.transpose %110, [1, 0] : vector<8x8xbf16> -> vector<8x8xbf16>
    %cst_38 = arith.constant dense<0.000000e+00> : vector<8x8xf32>
    %114 = tpu.matmul %108, %113, %cst_38 {dimension_numbers = #tpu.dot_dimension_numbers<[1], [0], [0], [1], [0, 0, 1, 1], [], []>} : vector<8x8xbf16>, vector<8x8xbf16>, vector<8x8xf32> -> vector<8x8xf32>
    %cst_39 = arith.constant dense<0xFF800000> : vector<8xf32>
    %115 = vector.multi_reduction <maximumf>, %114, %cst_39 [1] : vector<8x8xf32> to vector<8xf32>
    %116 = vector.shape_cast %115 : vector<8xf32> to vector<8x1xf32>
    %117 = vector.broadcast %116 : vector<8x1xf32> to vector<8x8xf32>
    %118 = arith.subf %114, %117 : vector<8x8xf32>
    %119 = math.exp %118 : vector<8x8xf32>
    %cst_40 = arith.constant dense<0.000000e+00> : vector<8xf32>
    %120 = vector.multi_reduction <add>, %119, %cst_40 [1] : vector<8x8xf32> to vector<8xf32>
    %121 = vector.shape_cast %120 : vector<8xf32> to vector<8x1xf32>
    %122 = tpu.reciprocal %121 {approx = true} : vector<8x1xf32> -> vector<8x1xf32>
    %123 = vector.broadcast %122 : vector<8x1xf32> to vector<8x8xf32>
    %124 = arith.mulf %119, %123 : vector<8x8xf32>
    %125 = arith.truncf %124 : vector<8x8xf32> to vector<8x8xbf16>
    %cst_41 = arith.constant dense<0.000000e+00> : vector<8x8xf32>
    %126 = tpu.matmul %125, %112, %cst_41 {dimension_numbers = #tpu.dot_dimension_numbers<[1], [0], [0], [1], [0, 0, 1, 1], [], []>} : vector<8x8xbf16>, vector<8x8xbf16>, vector<8x8xf32> -> vector<8x8xf32>
    %c0_42 = arith.constant 0 : index
    %c16 = arith.constant 16 : index
    %127 = vector.load %arg18[%c0_42, %c16] : memref<8x32xf32, #tpu.memory_space<vmem>>, vector<8x8xf32>
    tpu.vector_store %arg18[%c0_42, %c16], %126 {strides = array<i32>} : memref<8x32xf32, #tpu.memory_space<vmem>>, vector<8x8xf32>,
    %128 = vector.extract_strided_slice %64 {offsets = [0, 24], sizes = [8, 8], strides = [1, 1]} : vector<8x32xf32> to vector<8x8xf32>
    %129 = arith.truncf %128 : vector<8x8xf32> to vector<8x8xbf16>
    %130 = vector.extract_strided_slice %33 {offsets = [0, 24], sizes = [8, 8], strides = [1, 1]} : vector<8x64xf32> to vector<8x8xf32>
    %131 = arith.truncf %130 : vector<8x8xf32> to vector<8x8xbf16>
    %132 = vector.extract_strided_slice %33 {offsets = [0, 56], sizes = [8, 8], strides = [1, 1]} : vector<8x64xf32> to vector<8x8xf32>
    %133 = arith.truncf %132 : vector<8x8xf32> to vector<8x8xbf16>
    %134 = tpu.transpose %131, [1, 0] : vector<8x8xbf16> -> vector<8x8xbf16>
    %cst_43 = arith.constant dense<0.000000e+00> : vector<8x8xf32>
    %135 = tpu.matmul %129, %134, %cst_43 {dimension_numbers = #tpu.dot_dimension_numbers<[1], [0], [0], [1], [0, 0, 1, 1], [], []>} : vector<8x8xbf16>, vector<8x8xbf16>, vector<8x8xf32> -> vector<8x8xf32>
    %cst_44 = arith.constant dense<0xFF800000> : vector<8xf32>
    %136 = vector.multi_reduction <maximumf>, %135, %cst_44 [1] : vector<8x8xf32> to vector<8xf32>
    %137 = vector.shape_cast %136 : vector<8xf32> to vector<8x1xf32>
    %138 = vector.broadcast %137 : vector<8x1xf32> to vector<8x8xf32>
    %139 = arith.subf %135, %138 : vector<8x8xf32>
    %140 = math.exp %139 : vector<8x8xf32>
    %cst_45 = arith.constant dense<0.000000e+00> : vector<8xf32>
    %141 = vector.multi_reduction <add>, %140, %cst_45 [1] : vector<8x8xf32> to vector<8xf32>
    %142 = vector.shape_cast %141 : vector<8xf32> to vector<8x1xf32>
    %143 = tpu.reciprocal %142 {approx = true} : vector<8x1xf32> -> vector<8x1xf32>
    %144 = vector.broadcast %143 : vector<8x1xf32> to vector<8x8xf32>
    %145 = arith.mulf %140, %144 : vector<8x8xf32>
    %146 = arith.truncf %145 : vector<8x8xf32> to vector<8x8xbf16>
    %cst_46 = arith.constant dense<0.000000e+00> : vector<8x8xf32>
    %147 = tpu.matmul %146, %133, %cst_46 {dimension_numbers = #tpu.dot_dimension_numbers<[1], [0], [0], [1], [0, 0, 1, 1], [], []>} : vector<8x8xbf16>, vector<8x8xbf16>, vector<8x8xf32> -> vector<8x8xf32>
    %c0_47 = arith.constant 0 : index
    %c24 = arith.constant 24 : index
    %148 = vector.load %arg18[%c0_47, %c24] : memref<8x32xf32, #tpu.memory_space<vmem>>, vector<8x8xf32>
    tpu.vector_store %arg18[%c0_47, %c24], %147 {strides = array<i32>} : memref<8x32xf32, #tpu.memory_space<vmem>>, vector<8x8xf32>,
    %c0_48 = arith.constant 0 : index
    %c0_49 = arith.constant 0 : index
    %149 = vector.load %arg18[%c0_48, %c0_49] : memref<8x32xf32, #tpu.memory_space<vmem>>, vector<8x32xf32>
    %150 = arith.truncf %149 : vector<8x32xf32> to vector<8x32xbf16>
    %c0_50 = arith.constant 0 : index
    %c0_51 = arith.constant 0 : index
    %151 = vector.load %arg9[%c0_50, %c0_51] : memref<32x32xbf16, #tpu.memory_space<vmem>>, vector<32x32xbf16>
    %cst_52 = arith.constant dense<0.000000e+00> : vector<8x32xf32>
    %152 = tpu.matmul %150, %151, %cst_52 {dimension_numbers = #tpu.dot_dimension_numbers<[1], [0], [0], [1], [0, 0, 1, 1], [], []>} : vector<8x32xbf16>, vector<32x32xbf16>, vector<8x32xf32> -> vector<8x32xf32>
    %c0_53 = arith.constant 0 : index
    %c0_54 = arith.constant 0 : index
    %153 = vector.load %arg10[%c0_53, %c0_54] : memref<1x32xf32, #tpu.memory_space<vmem>>, vector<1x32xf32>
    %154 = vector.broadcast %153 : vector<1x32xf32> to vector<8x32xf32>
    %155 = arith.addf %152, %154 : vector<8x32xf32>
    %156 = arith.addf %36, %155 : vector<8x32xf32>
    %c0_55 = arith.constant 0 : index
    %c0_56 = arith.constant 0 : index
    %157 = vector.load %arg11[%c0_55, %c0_56] : memref<1x32xf32, #tpu.memory_space<vmem>>, vector<1x32xf32>
    %c0_57 = arith.constant 0 : index
    %c0_58 = arith.constant 0 : index
    %158 = vector.load %arg12[%c0_57, %c0_58] : memref<1x32xf32, #tpu.memory_space<vmem>>, vector<1x32xf32>
    %cst_59 = arith.constant dense<0.000000e+00> : vector<8xf32>
    %159 = vector.multi_reduction <add>, %156, %cst_59 [1] : vector<8x32xf32> to vector<8xf32>
    %160 = vector.shape_cast %159 : vector<8xf32> to vector<8x1xf32>
    %cst_60 = arith.constant 3.200000e+01 : f32
    %161 = vector.broadcast %cst_60 : f32 to vector<8x1xf32>
    %162 = arith.divf %160, %161 : vector<8x1xf32>
    %163 = arith.mulf %156, %156 : vector<8x32xf32>
    %cst_61 = arith.constant dense<0.000000e+00> : vector<8xf32>
    %164 = vector.multi_reduction <add>, %163, %cst_61 [1] : vector<8x32xf32> to vector<8xf32>
    %165 = vector.shape_cast %164 : vector<8xf32> to vector<8x1xf32>
    %cst_62 = arith.constant 3.200000e+01 : f32
    %166 = vector.broadcast %cst_62 : f32 to vector<8x1xf32>
    %167 = arith.divf %165, %166 : vector<8x1xf32>
    %168 = arith.mulf %162, %162 : vector<8x1xf32>
    %169 = arith.subf %167, %168 : vector<8x1xf32>
    %170 = vector.broadcast %162 : vector<8x1xf32> to vector<8x32xf32>
    %171 = arith.subf %156, %170 : vector<8x32xf32>
    %cst_63 = arith.constant 9.99999974E-6 : f32
    %172 = vector.broadcast %cst_63 : f32 to vector<8x1xf32>
    %173 = arith.addf %169, %172 : vector<8x1xf32>
    %174 = math.rsqrt %173 : vector<8x1xf32>
    %175 = vector.broadcast %174 : vector<8x1xf32> to vector<8x32xf32>
    %176 = arith.mulf %171, %175 : vector<8x32xf32>
    %177 = vector.broadcast %157 : vector<1x32xf32> to vector<8x32xf32>
    %178 = arith.mulf %176, %177 : vector<8x32xf32>
    %179 = vector.broadcast %158 : vector<1x32xf32> to vector<8x32xf32>
    %180 = arith.addf %178, %179 : vector<8x32xf32>
    %181 = arith.truncf %180 : vector<8x32xf32> to vector<8x32xbf16>
    %cst_64 = arith.constant 0.000000e+00 : f32
    %182 = vector.broadcast %cst_64 : f32 to vector<8x32xf32>
    %c0_65 = arith.constant 0 : index
    %c0_66 = arith.constant 0 : index
    %183 = vector.load %arg13[%c0_65, %c0_66] : memref<32x128xbf16, #tpu.memory_space<vmem>>, vector<32x128xbf16>
    %cst_67 = arith.constant dense<0.000000e+00> : vector<8x128xf32>
    %184 = tpu.matmul %181, %183, %cst_67 {dimension_numbers = #tpu.dot_dimension_numbers<[1], [0], [0], [1], [0, 0, 1, 1], [], []>} : vector<8x32xbf16>, vector<32x128xbf16>, vector<8x128xf32> -> vector<8x128xf32>
    %c0_68 = arith.constant 0 : index
    %c0_69 = arith.constant 0 : index
    %185 = vector.load %arg14[%c0_68, %c0_69] : memref<1x128xf32, #tpu.memory_space<vmem>>, vector<1x128xf32>
    %186 = vector.broadcast %185 : vector<1x128xf32> to vector<8x128xf32>
    %187 = arith.addf %184, %186 : vector<8x128xf32>
    %cst_70 = arith.constant 5.000000e-01 : f32
    %188 = vector.broadcast %cst_70 : f32 to vector<8x128xf32>
    %189 = arith.mulf %188, %187 : vector<8x128xf32>
    %cst_71 = arith.constant 0.707106769 : f32
    %190 = vector.broadcast %cst_71 : f32 to vector<8x128xf32>
    %191 = arith.mulf %187, %190 : vector<8x128xf32>
    %192 = math.erf %191 : vector<8x128xf32>
    %cst_72 = arith.constant 1.000000e+00 : f32
    %193 = vector.broadcast %cst_72 : f32 to vector<8x128xf32>
    %194 = arith.addf %193, %192 : vector<8x128xf32>
    %195 = arith.mulf %189, %194 : vector<8x128xf32>
    %196 = arith.truncf %195 : vector<8x128xf32> to vector<8x128xbf16>
    %c0_73 = arith.constant 0 : index
    %c0_74 = arith.constant 0 : index
    %197 = vector.load %arg15[%c0_73, %c0_74] : memref<128x32xbf16, #tpu.memory_space<vmem>>, vector<128x32xbf16>
    %cst_75 = arith.constant dense<0.000000e+00> : vector<8x32xf32>
    %198 = tpu.matmul %196, %197, %cst_75 {dimension_numbers = #tpu.dot_dimension_numbers<[1], [0], [0], [1], [0, 0, 1, 1], [], []>} : vector<8x128xbf16>, vector<128x32xbf16>, vector<8x32xf32> -> vector<8x32xf32>
    %199 = arith.addf %182, %198 : vector<8x32xf32>
    %c0_76 = arith.constant 0 : index
    %c0_77 = arith.constant 0 : index
    %200 = vector.load %arg16[%c0_76, %c0_77] : memref<1x32xf32, #tpu.memory_space<vmem>>, vector<1x32xf32>
    %201 = vector.broadcast %200 : vector<1x32xf32> to vector<8x32xf32>
    %202 = arith.addf %199, %201 : vector<8x32xf32>
    %203 = arith.addf %156, %202 : vector<8x32xf32>
    %c0_78 = arith.constant 0 : index
    %c0_79 = arith.constant 0 : index
    %c0_80 = arith.constant 0 : index
    %204 = vector.load %arg17[%c0_78, %c0_79, %c0_80] : memref<1x8x32xf32, #tpu.memory_space<vmem>>, vector<1x8x32xf32>
    %205 = vector.shape_cast %204 : vector<1x8x32xf32> to vector<8x32xf32>
    %206 = vector.shape_cast %203 : vector<8x32xf32> to vector<1x8x32xf32>
    tpu.vector_store %arg17[%c0_78, %c0_79, %c0_80], %206 {strides = array<i32>} : memref<1x8x32xf32, #tpu.memory_space<vmem>>, vector<1x8x32xf32>,
    return
  }
  func.func @transform_0(%arg0: i32, %arg1: i32) -> (i32, i32, i32) {
    %c0_i32 = arith.constant 0 : i32
    %c0_i32_0 = arith.constant 0 : i32
    %c0_i32_1 = arith.constant 0 : i32
    return %arg0, %c0_i32, %c0_i32_0 : i32, i32, i32
  }
  func.func @transform_1(%arg0: i32, %arg1: i32) -> (i32, i32) {
    %c0_i32 = arith.constant 0 : i32
    %c0_i32_0 = arith.constant 0 : i32
    %c0_i32_1 = arith.constant 0 : i32
    return %c0_i32, %c0_i32_0 : i32, i32
  }
  func.func @transform_2(%arg0: i32, %arg1: i32) -> (i32, i32) {
    %c0_i32 = arith.constant 0 : i32
    %c0_i32_0 = arith.constant 0 : i32
    %c0_i32_1 = arith.constant 0 : i32
    return %c0_i32, %c0_i32_0 : i32, i32
  }
  func.func @transform_3(%arg0: i32, %arg1: i32) -> (i32, i32) {
    %c0_i32 = arith.constant 0 : i32
    %c0_i32_0 = arith.constant 0 : i32
    %c0_i32_1 = arith.constant 0 : i32
    return %c0_i32, %c0_i32_0 : i32, i32
  }
  func.func @transform_4(%arg0: i32, %arg1: i32) -> (i32, i32) {
    %c0_i32 = arith.constant 0 : i32
    %c0_i32_0 = arith.constant 0 : i32
    %c0_i32_1 = arith.constant 0 : i32
    return %c0_i32, %c0_i32_0 : i32, i32
  }
  func.func @transform_5(%arg0: i32, %arg1: i32) -> (i32, i32) {
    %c0_i32 = arith.constant 0 : i32
    %c0_i32_0 = arith.constant 0 : i32
    %c0_i32_1 = arith.constant 0 : i32
    return %c0_i32, %c0_i32_0 : i32, i32
  }
  func.func @transform_6(%arg0: i32, %arg1: i32) -> (i32, i32) {
    %c0_i32 = arith.constant 0 : i32
    %c0_i32_0 = arith.constant 0 : i32
    %c0_i32_1 = arith.constant 0 : i32
    return %c0_i32, %c0_i32_0 : i32, i32
  }
  func.func @transform_7(%arg0: i32, %arg1: i32) -> (i32, i32) {
    %c0_i32 = arith.constant 0 : i32
    %c0_i32_0 = arith.constant 0 : i32
    %c0_i32_1 = arith.constant 0 : i32
    return %c0_i32, %c0_i32_0 : i32, i32
  }
  func.func @transform_8(%arg0: i32, %arg1: i32) -> (i32, i32) {
    %c0_i32 = arith.constant 0 : i32
    %c0_i32_0 = arith.constant 0 : i32
    %c0_i32_1 = arith.constant 0 : i32
    return %c0_i32, %c0_i32_0 : i32, i32
  }
  func.func @transform_9(%arg0: i32, %arg1: i32) -> (i32, i32) {
    %c0_i32 = arith.constant 0 : i32
    %c0_i32_0 = arith.constant 0 : i32
    %c0_i32_1 = arith.constant 0 : i32
    return %c0_i32, %c0_i32_0 : i32, i32
  }
  func.func @transform_10(%arg0: i32, %arg1: i32) -> (i32, i32) {
    %c0_i32 = arith.constant 0 : i32
    %c0_i32_0 = arith.constant 0 : i32
    %c0_i32_1 = arith.constant 0 : i32
    return %c0_i32, %c0_i32_0 : i32, i32
  }
  func.func @transform_11(%arg0: i32, %arg1: i32) -> (i32, i32) {
    %c0_i32 = arith.constant 0 : i32
    %c0_i32_0 = arith.constant 0 : i32
    %c0_i32_1 = arith.constant 0 : i32
    return %c0_i32, %c0_i32_0 : i32, i32
  }
  func.func @transform_12(%arg0: i32, %arg1: i32) -> (i32, i32) {
    %c0_i32 = arith.constant 0 : i32
    %c0_i32_0 = arith.constant 0 : i32
    %c0_i32_1 = arith.constant 0 : i32
    return %c0_i32, %c0_i32_0 : i32, i32
  }
  func.func @transform_13(%arg0: i32, %arg1: i32) -> (i32, i32) {
    %c0_i32 = arith.constant 0 : i32
    %c0_i32_0 = arith.constant 0 : i32
    %c0_i32_1 = arith.constant 0 : i32
    return %c0_i32, %c0_i32_0 : i32, i32
  }
  func.func @transform_14(%arg0: i32, %arg1: i32) -> (i32, i32) {
    %c0_i32 = arith.constant 0 : i32
    %c0_i32_0 = arith.constant 0 : i32
    %c0_i32_1 = arith.constant 0 : i32
    return %c0_i32, %c0_i32_0 : i32, i32
  }
  func.func @transform_15(%arg0: i32, %arg1: i32) -> (i32, i32, i32) {
    %c0_i32 = arith.constant 0 : i32
    %c0_i32_0 = arith.constant 0 : i32
    return %arg0, %arg1, %c0_i32 : i32, i32, i32
  }
}

module attributes {stable_mosaic.version = 11 : i64} {
  func.func @transformer_block_kernel(%arg0: i32, %arg1: i32, %arg2: memref<1x8x32xf32, #tpu.memory_space<vmem>>, %arg3: memref<1x32xf32, #tpu.memory_space<vmem>>, %arg4: memref<1x32xf32, #tpu.memory_space<vmem>>, %arg5: memref<32x32xbf16, #tpu.memory_space<vmem>>, %arg6: memref<1x32xf32, #tpu.memory_space<vmem>>, %arg7: memref<32x64xbf16, #tpu.memory_space<vmem>>, %arg8: memref<1x64xf32, #tpu.memory_space<vmem>>, %arg9: memref<32x32xbf16, #tpu.memory_space<vmem>>, %arg10: memref<1x32xf32, #tpu.memory_space<vmem>>, %arg11: memref<1x32xf32, #tpu.memory_space<vmem>>, %arg12: memref<1x32xf32, #tpu.memory_space<vmem>>, %arg13: memref<32x128xbf16, #tpu.memory_space<vmem>>, %arg14: memref<1x128xf32, #tpu.memory_space<vmem>>, %arg15: memref<128x32xbf16, #tpu.memory_space<vmem>>, %arg16: memref<1x32xf32, #tpu.memory_space<vmem>>, %arg17: memref<1x8x32xf32, #tpu.memory_space<vmem>>, %arg18: memref<8x32xf32, #tpu.memory_space<vmem>>) attributes {dimension_semantics = [#tpu.dimension_semantics<parallel>, #tpu.dimension_semantics<parallel>], iteration_bounds = array<i64: 2, 1>, scalar_prefetch = 0 : i64, scratch_operands = 1 : i64, tpu.core_type = #tpu.core_type<tc>, window_params = [{transform_indices = @transform_0, window_bounds = array<i64: 1, 8, 32>}, {pipeline_mode = #tpu.pipeline_mode<synchronous>, transform_indices = @transform_1, window_bounds = array<i64: 1, 32>}, {pipeline_mode = #tpu.pipeline_mode<synchronous>, transform_indices = @transform_2, window_bounds = array<i64: 1, 32>}, {pipeline_mode = #tpu.pipeline_mode<synchronous>, transform_indices = @transform_3, window_bounds = array<i64: 32, 32>}, {pipeline_mode = #tpu.pipeline_mode<synchronous>, transform_indices = @transform_4, window_bounds = array<i64: 1, 32>}, {pipeline_mode = #tpu.pipeline_mode<synchronous>, transform_indices = @transform_5, window_bounds = array<i64: 32, 64>}, {pipeline_mode = #tpu.pipeline_mode<synchronous>, transform_indices = @transform_6, window_bounds = array<i64: 1, 64>}, {pipeline_mode = #tpu.pipeline_mode<synchronous>, transform_indices = @transform_7, window_bounds = array<i64: 32, 32>}, {pipeline_mode = #tpu.pipeline_mode<synchronous>, transform_indices = @transform_8, window_bounds = array<i64: 1, 32>}, {pipeline_mode = #tpu.pipeline_mode<synchronous>, transform_indices = @transform_9, window_bounds = array<i64: 1, 32>}, {pipeline_mode = #tpu.pipeline_mode<synchronous>, transform_indices = @transform_10, window_bounds = array<i64: 1, 32>}, {pipeline_mode = #tpu.pipeline_mode<synchronous>, transform_indices = @transform_11, window_bounds = array<i64: 32, 128>}, {pipeline_mode = #tpu.pipeline_mode<synchronous>, transform_indices = @transform_12, window_bounds = array<i64: 1, 128>}, {pipeline_mode = #tpu.pipeline_mode<synchronous>, transform_indices = @transform_13, window_bounds = array<i64: 128, 32>}, {pipeline_mode = #tpu.pipeline_mode<synchronous>, transform_indices = @transform_14, window_bounds = array<i64: 1, 32>}, {transform_indices = @transform_15, window_bounds = array<i64: 1, 8, 32>}]} {
    %c8_i32 = arith.constant 8 : i32
    %0 = arith.muli %arg1, %c8_i32 : i32
    %1 = tpu.assume_multiple %0, 8 : i32
    %c0 = arith.constant 0 : index
    %c0_0 = arith.constant 0 : index
    %2 = vector.load %arg3[%c0, %c0_0] : memref<1x32xf32, #tpu.memory_space<vmem>>, vector<1x32xf32>
    %c0_1 = arith.constant 0 : index
    %c0_2 = arith.constant 0 : index
    %3 = vector.load %arg4[%c0_1, %c0_2] : memref<1x32xf32, #tpu.memory_space<vmem>>, vector<1x32xf32>
    %c0_3 = arith.constant 0 : index
    %c0_4 = arith.constant 0 : index
    %c0_5 = arith.constant 0 : index
    %4 = vector.load %arg2[%c0_3, %c0_4, %c0_5] : memref<1x8x32xf32, #tpu.memory_space<vmem>>, vector<1x8x32xf32>
    %5 = vector.shape_cast %4 : vector<1x8x32xf32> to vector<8x32xf32>
    %cst = arith.constant dense<0.000000e+00> : vector<8xf32>
    %6 = vector.multi_reduction <add>, %5, %cst [1] : vector<8x32xf32> to vector<8xf32>
    %7 = vector.shape_cast %6 : vector<8xf32> to vector<8x1xf32>
    %cst_6 = arith.constant 3.200000e+01 : f32
    %8 = vector.broadcast %cst_6 : f32 to vector<8x1xf32>
    %9 = arith.divf %7, %8 : vector<8x1xf32>
    %10 = arith.mulf %5, %5 : vector<8x32xf32>
    %cst_7 = arith.constant dense<0.000000e+00> : vector<8xf32>
    %11 = vector.multi_reduction <add>, %10, %cst_7 [1] : vector<8x32xf32> to vector<8xf32>
    %12 = vector.shape_cast %11 : vector<8xf32> to vector<8x1xf32>
    %cst_8 = arith.constant 3.200000e+01 : f32
    %13 = vector.broadcast %cst_8 : f32 to vector<8x1xf32>
    %14 = arith.divf %12, %13 : vector<8x1xf32>
    %15 = arith.mulf %9, %9 : vector<8x1xf32>
    %16 = arith.subf %14, %15 : vector<8x1xf32>
    %17 = vector.broadcast %9 : vector<8x1xf32> to vector<8x32xf32>
    %18 = arith.subf %5, %17 : vector<8x32xf32>
    %cst_9 = arith.constant 9.99999974E-6 : f32
    %19 = vector.broadcast %cst_9 : f32 to vector<8x1xf32>
    %20 = arith.addf %16, %19 : vector<8x1xf32>
    %21 = math.rsqrt %20 : vector<8x1xf32>
    %22 = vector.broadcast %21 : vector<8x1xf32> to vector<8x32xf32>
    %23 = arith.mulf %18, %22 : vector<8x32xf32>
    %24 = vector.broadcast %2 : vector<1x32xf32> to vector<8x32xf32>
    %25 = arith.mulf %23, %24 : vector<8x32xf32>
    %26 = vector.broadcast %3 : vector<1x32xf32> to vector<8x32xf32>
    %27 = arith.addf %25, %26 : vector<8x32xf32>
    %28 = arith.truncf %27 : vector<8x32xf32> to vector<8x32xbf16>
    %c0_10 = arith.constant 0 : index
    %c0_11 = arith.constant 0 : index
    %29 = vector.load %arg7[%c0_10, %c0_11] : memref<32x64xbf16, #tpu.memory_space<vmem>>, vector<32x64xbf16>
    %cst_12 = arith.constant dense<0.000000e+00> : vector<8x64xf32>
    %30 = tpu.matmul %28, %29, %cst_12 {dimension_numbers = #tpu.dot_dimension_numbers<[1], [0], [0], [1], [0, 0, 1, 1], [], []>} : vector<8x32xbf16>, vector<32x64xbf16>, vector<8x64xf32> -> vector<8x64xf32>
    %c0_13 = arith.constant 0 : index
    %c0_14 = arith.constant 0 : index
    %31 = vector.load %arg8[%c0_13, %c0_14] : memref<1x64xf32, #tpu.memory_space<vmem>>, vector<1x64xf32>
    %32 = vector.broadcast %31 : vector<1x64xf32> to vector<8x64xf32>
    %33 = arith.addf %30, %32 : vector<8x64xf32>
    %c0_15 = arith.constant 0 : index
    %34 = arith.index_cast %1 : i32 to index
    %c0_16 = arith.constant 0 : index
    %35 = vector.load %arg2[%c0_15, %34, %c0_16] : memref<1x8x32xf32, #tpu.memory_space<vmem>>, vector<1x8x32xf32>
    %36 = vector.shape_cast %35 : vector<1x8x32xf32> to vector<8x32xf32>
    %cst_17 = arith.constant dense<0.000000e+00> : vector<8xf32>
    %37 = vector.multi_reduction <add>, %36, %cst_17 [1] : vector<8x32xf32> to vector<8xf32>
    %38 = vector.shape_cast %37 : vector<8xf32> to vector<8x1xf32>
    %cst_18 = arith.constant 3.200000e+01 : f32
    %39 = vector.broadcast %cst_18 : f32 to vector<8x1xf32>
    %40 = arith.divf %38, %39 : vector<8x1xf32>
    %41 = arith.mulf %36, %36 : vector<8x32xf32>
    %cst_19 = arith.constant dense<0.000000e+00> : vector<8xf32>
    %42 = vector.multi_reduction <add>, %41, %cst_19 [1] : vector<8x32xf32> to vector<8xf32>
    %43 = vector.shape_cast %42 : vector<8xf32> to vector<8x1xf32>
    %cst_20 = arith.constant 3.200000e+01 : f32
    %44 = vector.broadcast %cst_20 : f32 to vector<8x1xf32>
    %45 = arith.divf %43, %44 : vector<8x1xf32>
    %46 = arith.mulf %40, %40 : vector<8x1xf32>
    %47 = arith.subf %45, %46 : vector<8x1xf32>
    %48 = vector.broadcast %40 : vector<8x1xf32> to vector<8x32xf32>
    %49 = arith.subf %36, %48 : vector<8x32xf32>
    %cst_21 = arith.constant 9.99999974E-6 : f32
    %50 = vector.broadcast %cst_21 : f32 to vector<8x1xf32>
    %51 = arith.addf %47, %50 : vector<8x1xf32>
    %52 = math.rsqrt %51 : vector<8x1xf32>
    %53 = vector.broadcast %52 : vector<8x1xf32> to vector<8x32xf32>
    %54 = arith.mulf %49, %53 : vector<8x32xf32>
    %55 = vector.broadcast %2 : vector<1x32xf32> to vector<8x32xf32>
    %56 = arith.mulf %54, %55 : vector<8x32xf32>
    %57 = vector.broadcast %3 : vector<1x32xf32> to vector<8x32xf32>
    %58 = arith.addf %56, %57 : vector<8x32xf32>
    %59 = arith.truncf %58 : vector<8x32xf32> to vector<8x32xbf16>
    %c0_22 = arith.constant 0 : index
    %c0_23 = arith.constant 0 : index
    %60 = vector.load %arg5[%c0_22, %c0_23] : memref<32x32xbf16, #tpu.memory_space<vmem>>, vector<32x32xbf16>
    %cst_24 = arith.constant dense<0.000000e+00> : vector<8x32xf32>
    %61 = tpu.matmul %59, %60, %cst_24 {dimension_numbers = #tpu.dot_dimension_numbers<[1], [0], [0], [1], [0, 0, 1, 1], [], []>} : vector<8x32xbf16>, vector<32x32xbf16>, vector<8x32xf32> -> vector<8x32xf32>
    %c0_25 = arith.constant 0 : index
    %c0_26 = arith.constant 0 : index
    %62 = vector.load %arg6[%c0_25, %c0_26] : memref<1x32xf32, #tpu.memory_space<vmem>>, vector<1x32xf32>
    %63 = vector.broadcast %62 : vector<1x32xf32> to vector<8x32xf32>
    %64 = arith.addf %61, %63 : vector<8x32xf32>
    %65 = vector.extract_strided_slice %64 {offsets = [0, 0], sizes = [8, 8], strides = [1, 1]} : vector<8x32xf32> to vector<8x8xf32>
    %66 = arith.truncf %65 : vector<8x8xf32> to vector<8x8xbf16>
    %67 = vector.extract_strided_slice %33 {offsets = [0, 0], sizes = [8, 8], strides = [1, 1]} : vector<8x64xf32> to vector<8x8xf32>
    %68 = arith.truncf %67 : vector<8x8xf32> to vector<8x8xbf16>
    %69 = vector.extract_strided_slice %33 {offsets = [0, 32], sizes = [8, 8], strides = [1, 1]} : vector<8x64xf32> to vector<8x8xf32>
    %70 = arith.truncf %69 : vector<8x8xf32> to vector<8x8xbf16>
    %71 = tpu.transpose %68, [1, 0] : vector<8x8xbf16> -> vector<8x8xbf16>
    %cst_27 = arith.constant dense<0.000000e+00> : vector<8x8xf32>
    %72 = tpu.matmul %66, %71, %cst_27 {dimension_numbers = #tpu.dot_dimension_numbers<[1], [0], [0], [1], [0, 0, 1, 1], [], []>} : vector<8x8xbf16>, vector<8x8xbf16>, vector<8x8xf32> -> vector<8x8xf32>
    %cst_28 = arith.constant dense<0xFF800000> : vector<8xf32>
    %73 = vector.multi_reduction <maximumf>, %72, %cst_28 [1] : vector<8x8xf32> to vector<8xf32>
    %74 = vector.shape_cast %73 : vector<8xf32> to vector<8x1xf32>
    %75 = vector.broadcast %74 : vector<8x1xf32> to vector<8x8xf32>
    %76 = arith.subf %72, %75 : vector<8x8xf32>
    %77 = math.exp %76 : vector<8x8xf32>
    %cst_29 = arith.constant dense<0.000000e+00> : vector<8xf32>
    %78 = vector.multi_reduction <add>, %77, %cst_29 [1] : vector<8x8xf32> to vector<8xf32>
    %79 = vector.shape_cast %78 : vector<8xf32> to vector<8x1xf32>
    %80 = tpu.reciprocal %79 {approx = true} : vector<8x1xf32> -> vector<8x1xf32>
    %81 = vector.broadcast %80 : vector<8x1xf32> to vector<8x8xf32>
    %82 = arith.mulf %77, %81 : vector<8x8xf32>
    %83 = arith.truncf %82 : vector<8x8xf32> to vector<8x8xbf16>
    %cst_30 = arith.constant dense<0.000000e+00> : vector<8x8xf32>
    %84 = tpu.matmul %83, %70, %cst_30 {dimension_numbers = #tpu.dot_dimension_numbers<[1], [0], [0], [1], [0, 0, 1, 1], [], []>} : vector<8x8xbf16>, vector<8x8xbf16>, vector<8x8xf32> -> vector<8x8xf32>
    %c0_31 = arith.constant 0 : index
    %c0_32 = arith.constant 0 : index
    %85 = vector.load %arg18[%c0_31, %c0_32] : memref<8x32xf32, #tpu.memory_space<vmem>>, vector<8x8xf32>
    tpu.vector_store %arg18[%c0_31, %c0_32], %84 {strides = array<i32>} : memref<8x32xf32, #tpu.memory_space<vmem>>, vector<8x8xf32>,
    %86 = vector.extract_strided_slice %64 {offsets = [0, 8], sizes = [8, 8], strides = [1, 1]} : vector<8x32xf32> to vector<8x8xf32>
    %87 = arith.truncf %86 : vector<8x8xf32> to vector<8x8xbf16>
    %88 = vector.extract_strided_slice %33 {offsets = [0, 8], sizes = [8, 8], strides = [1, 1]} : vector<8x64xf32> to vector<8x8xf32>
    %89 = arith.truncf %88 : vector<8x8xf32> to vector<8x8xbf16>
    %90 = vector.extract_strided_slice %33 {offsets = [0, 40], sizes = [8, 8], strides = [1, 1]} : vector<8x64xf32> to vector<8x8xf32>
    %91 = arith.truncf %90 : vector<8x8xf32> to vector<8x8xbf16>
    %92 = tpu.transpose %89, [1, 0] : vector<8x8xbf16> -> vector<8x8xbf16>
    %cst_33 = arith.constant dense<0.000000e+00> : vector<8x8xf32>
    %93 = tpu.matmul %87, %92, %cst_33 {dimension_numbers = #tpu.dot_dimension_numbers<[1], [0], [0], [1], [0, 0, 1, 1], [], []>} : vector<8x8xbf16>, vector<8x8xbf16>, vector<8x8xf32> -> vector<8x8xf32>
    %cst_34 = arith.constant dense<0xFF800000> : vector<8xf32>
    %94 = vector.multi_reduction <maximumf>, %93, %cst_34 [1] : vector<8x8xf32> to vector<8xf32>
    %95 = vector.shape_cast %94 : vector<8xf32> to vector<8x1xf32>
    %96 = vector.broadcast %95 : vector<8x1xf32> to vector<8x8xf32>
    %97 = arith.subf %93, %96 : vector<8x8xf32>
    %98 = math.exp %97 : vector<8x8xf32>
    %cst_35 = arith.constant dense<0.000000e+00> : vector<8xf32>
    %99 = vector.multi_reduction <add>, %98, %cst_35 [1] : vector<8x8xf32> to vector<8xf32>
    %100 = vector.shape_cast %99 : vector<8xf32> to vector<8x1xf32>
    %101 = tpu.reciprocal %100 {approx = true} : vector<8x1xf32> -> vector<8x1xf32>
    %102 = vector.broadcast %101 : vector<8x1xf32> to vector<8x8xf32>
    %103 = arith.mulf %98, %102 : vector<8x8xf32>
    %104 = arith.truncf %103 : vector<8x8xf32> to vector<8x8xbf16>
    %cst_36 = arith.constant dense<0.000000e+00> : vector<8x8xf32>
    %105 = tpu.matmul %104, %91, %cst_36 {dimension_numbers = #tpu.dot_dimension_numbers<[1], [0], [0], [1], [0, 0, 1, 1], [], []>} : vector<8x8xbf16>, vector<8x8xbf16>, vector<8x8xf32> -> vector<8x8xf32>
    %c0_37 = arith.constant 0 : index
    %c8 = arith.constant 8 : index
    %106 = vector.load %arg18[%c0_37, %c8] : memref<8x32xf32, #tpu.memory_space<vmem>>, vector<8x8xf32>
    tpu.vector_store %arg18[%c0_37, %c8], %105 {strides = array<i32>} : memref<8x32xf32, #tpu.memory_space<vmem>>, vector<8x8xf32>,
    %107 = vector.extract_strided_slice %64 {offsets = [0, 16], sizes = [8, 8], strides = [1, 1]} : vector<8x32xf32> to vector<8x8xf32>
    %108 = arith.truncf %107 : vector<8x8xf32> to vector<8x8xbf16>
    %109 = vector.extract_strided_slice %33 {offsets = [0, 16], sizes = [8, 8], strides = [1, 1]} : vector<8x64xf32> to vector<8x8xf32>
    %110 = arith.truncf %109 : vector<8x8xf32> to vector<8x8xbf16>
    %111 = vector.extract_strided_slice %33 {offsets = [0, 48], sizes = [8, 8], strides = [1, 1]} : vector<8x64xf32> to vector<8x8xf32>
    %112 = arith.truncf %111 : vector<8x8xf32> to vector<8x8xbf16>
    %113 = tpu.transpose %110, [1, 0] : vector<8x8xbf16> -> vector<8x8xbf16>
    %cst_38 = arith.constant dense<0.000000e+00> : vector<8x8xf32>
    %114 = tpu.matmul %108, %113, %cst_38 {dimension_numbers = #tpu.dot_dimension_numbers<[1], [0], [0], [1], [0, 0, 1, 1], [], []>} : vector<8x8xbf16>, vector<8x8xbf16>, vector<8x8xf32> -> vector<8x8xf32>
    %cst_39 = arith.constant dense<0xFF800000> : vector<8xf32>
    %115 = vector.multi_reduction <maximumf>, %114, %cst_39 [1] : vector<8x8xf32> to vector<8xf32>
    %116 = vector.shape_cast %115 : vector<8xf32> to vector<8x1xf32>
    %117 = vector.broadcast %116 : vector<8x1xf32> to vector<8x8xf32>
    %118 = arith.subf %114, %117 : vector<8x8xf32>
    %119 = math.exp %118 : vector<8x8xf32>
    %cst_40 = arith.constant dense<0.000000e+00> : vector<8xf32>
    %120 = vector.multi_reduction <add>, %119, %cst_40 [1] : vector<8x8xf32> to vector<8xf32>
    %121 = vector.shape_cast %120 : vector<8xf32> to vector<8x1xf32>
    %122 = tpu.reciprocal %121 {approx = true} : vector<8x1xf32> -> vector<8x1xf32>
    %123 = vector.broadcast %122 : vector<8x1xf32> to vector<8x8xf32>
    %124 = arith.mulf %119, %123 : vector<8x8xf32>
    %125 = arith.truncf %124 : vector<8x8xf32> to vector<8x8xbf16>
    %cst_41 = arith.constant dense<0.000000e+00> : vector<8x8xf32>
    %126 = tpu.matmul %125, %112, %cst_41 {dimension_numbers = #tpu.dot_dimension_numbers<[1], [0], [0], [1], [0, 0, 1, 1], [], []>} : vector<8x8xbf16>, vector<8x8xbf16>, vector<8x8xf32> -> vector<8x8xf32>
    %c0_42 = arith.constant 0 : index
    %c16 = arith.constant 16 : index
    %127 = vector.load %arg18[%c0_42, %c16] : memref<8x32xf32, #tpu.memory_space<vmem>>, vector<8x8xf32>
    tpu.vector_store %arg18[%c0_42, %c16], %126 {strides = array<i32>} : memref<8x32xf32, #tpu.memory_space<vmem>>, vector<8x8xf32>,
    %128 = vector.extract_strided_slice %64 {offsets = [0, 24], sizes = [8, 8], strides = [1, 1]} : vector<8x32xf32> to vector<8x8xf32>
    %129 = arith.truncf %128 : vector<8x8xf32> to vector<8x8xbf16>
    %130 = vector.extract_strided_slice %33 {offsets = [0, 24], sizes = [8, 8], strides = [1, 1]} : vector<8x64xf32> to vector<8x8xf32>
    %131 = arith.truncf %130 : vector<8x8xf32> to vector<8x8xbf16>
    %132 = vector.extract_strided_slice %33 {offsets = [0, 56], sizes = [8, 8], strides = [1, 1]} : vector<8x64xf32> to vector<8x8xf32>
    %133 = arith.truncf %132 : vector<8x8xf32> to vector<8x8xbf16>
    %134 = tpu.transpose %131, [1, 0] : vector<8x8xbf16> -> vector<8x8xbf16>
    %cst_43 = arith.constant dense<0.000000e+00> : vector<8x8xf32>
    %135 = tpu.matmul %129, %134, %cst_43 {dimension_numbers = #tpu.dot_dimension_numbers<[1], [0], [0], [1], [0, 0, 1, 1], [], []>} : vector<8x8xbf16>, vector<8x8xbf16>, vector<8x8xf32> -> vector<8x8xf32>
    %cst_44 = arith.constant dense<0xFF800000> : vector<8xf32>
    %136 = vector.multi_reduction <maximumf>, %135, %cst_44 [1] : vector<8x8xf32> to vector<8xf32>
    %137 = vector.shape_cast %136 : vector<8xf32> to vector<8x1xf32>
    %138 = vector.broadcast %137 : vector<8x1xf32> to vector<8x8xf32>
    %139 = arith.subf %135, %138 : vector<8x8xf32>
    %140 = math.exp %139 : vector<8x8xf32>
    %cst_45 = arith.constant dense<0.000000e+00> : vector<8xf32>
    %141 = vector.multi_reduction <add>, %140, %cst_45 [1] : vector<8x8xf32> to vector<8xf32>
    %142 = vector.shape_cast %141 : vector<8xf32> to vector<8x1xf32>
    %143 = tpu.reciprocal %142 {approx = true} : vector<8x1xf32> -> vector<8x1xf32>
    %144 = vector.broadcast %143 : vector<8x1xf32> to vector<8x8xf32>
    %145 = arith.mulf %140, %144 : vector<8x8xf32>
    %146 = arith.truncf %145 : vector<8x8xf32> to vector<8x8xbf16>
    %cst_46 = arith.constant dense<0.000000e+00> : vector<8x8xf32>
    %147 = tpu.matmul %146, %133, %cst_46 {dimension_numbers = #tpu.dot_dimension_numbers<[1], [0], [0], [1], [0, 0, 1, 1], [], []>} : vector<8x8xbf16>, vector<8x8xbf16>, vector<8x8xf32> -> vector<8x8xf32>
    %c0_47 = arith.constant 0 : index
    %c24 = arith.constant 24 : index
    %148 = vector.load %arg18[%c0_47, %c24] : memref<8x32xf32, #tpu.memory_space<vmem>>, vector<8x8xf32>
    tpu.vector_store %arg18[%c0_47, %c24], %147 {strides = array<i32>} : memref<8x32xf32, #tpu.memory_space<vmem>>, vector<8x8xf32>,
    %c0_48 = arith.constant 0 : index
    %c0_49 = arith.constant 0 : index
    %149 = vector.load %arg18[%c0_48, %c0_49] : memref<8x32xf32, #tpu.memory_space<vmem>>, vector<8x32xf32>
    %150 = arith.truncf %149 : vector<8x32xf32> to vector<8x32xbf16>
    %c0_50 = arith.constant 0 : index
    %c0_51 = arith.constant 0 : index
    %151 = vector.load %arg9[%c0_50, %c0_51] : memref<32x32xbf16, #tpu.memory_space<vmem>>, vector<32x32xbf16>
    %cst_52 = arith.constant dense<0.000000e+00> : vector<8x32xf32>
    %152 = tpu.matmul %150, %151, %cst_52 {dimension_numbers = #tpu.dot_dimension_numbers<[1], [0], [0], [1], [0, 0, 1, 1], [], []>} : vector<8x32xbf16>, vector<32x32xbf16>, vector<8x32xf32> -> vector<8x32xf32>
    %c0_53 = arith.constant 0 : index
    %c0_54 = arith.constant 0 : index
    %153 = vector.load %arg10[%c0_53, %c0_54] : memref<1x32xf32, #tpu.memory_space<vmem>>, vector<1x32xf32>
    %154 = vector.broadcast %153 : vector<1x32xf32> to vector<8x32xf32>
    %155 = arith.addf %152, %154 : vector<8x32xf32>
    %156 = arith.addf %36, %155 : vector<8x32xf32>
    %c0_55 = arith.constant 0 : index
    %c0_56 = arith.constant 0 : index
    %157 = vector.load %arg11[%c0_55, %c0_56] : memref<1x32xf32, #tpu.memory_space<vmem>>, vector<1x32xf32>
    %c0_57 = arith.constant 0 : index
    %c0_58 = arith.constant 0 : index
    %158 = vector.load %arg12[%c0_57, %c0_58] : memref<1x32xf32, #tpu.memory_space<vmem>>, vector<1x32xf32>
    %cst_59 = arith.constant dense<0.000000e+00> : vector<8xf32>
    %159 = vector.multi_reduction <add>, %156, %cst_59 [1] : vector<8x32xf32> to vector<8xf32>
    %160 = vector.shape_cast %159 : vector<8xf32> to vector<8x1xf32>
    %cst_60 = arith.constant 3.200000e+01 : f32
    %161 = vector.broadcast %cst_60 : f32 to vector<8x1xf32>
    %162 = arith.divf %160, %161 : vector<8x1xf32>
    %163 = arith.mulf %156, %156 : vector<8x32xf32>
    %cst_61 = arith.constant dense<0.000000e+00> : vector<8xf32>
    %164 = vector.multi_reduction <add>, %163, %cst_61 [1] : vector<8x32xf32> to vector<8xf32>
    %165 = vector.shape_cast %164 : vector<8xf32> to vector<8x1xf32>
    %cst_62 = arith.constant 3.200000e+01 : f32
    %166 = vector.broadcast %cst_62 : f32 to vector<8x1xf32>
    %167 = arith.divf %165, %166 : vector<8x1xf32>
    %168 = arith.mulf %162, %162 : vector<8x1xf32>
    %169 = arith.subf %167, %168 : vector<8x1xf32>
    %170 = vector.broadcast %162 : vector<8x1xf32> to vector<8x32xf32>
    %171 = arith.subf %156, %170 : vector<8x32xf32>
    %cst_63 = arith.constant 9.99999974E-6 : f32
    %172 = vector.broadcast %cst_63 : f32 to vector<8x1xf32>
    %173 = arith.addf %169, %172 : vector<8x1xf32>
    %174 = math.rsqrt %173 : vector<8x1xf32>
    %175 = vector.broadcast %174 : vector<8x1xf32> to vector<8x32xf32>
    %176 = arith.mulf %171, %175 : vector<8x32xf32>
    %177 = vector.broadcast %157 : vector<1x32xf32> to vector<8x32xf32>
    %178 = arith.mulf %176, %177 : vector<8x32xf32>
    %179 = vector.broadcast %158 : vector<1x32xf32> to vector<8x32xf32>
    %180 = arith.addf %178, %179 : vector<8x32xf32>
    %181 = arith.truncf %180 : vector<8x32xf32> to vector<8x32xbf16>
    %cst_64 = arith.constant 0.000000e+00 : f32
    %182 = vector.broadcast %cst_64 : f32 to vector<8x32xf32>
    %c0_65 = arith.constant 0 : index
    %c0_66 = arith.constant 0 : index
    %183 = vector.load %arg13[%c0_65, %c0_66] : memref<32x128xbf16, #tpu.memory_space<vmem>>, vector<32x128xbf16>
    %cst_67 = arith.constant dense<0.000000e+00> : vector<8x128xf32>
    %184 = tpu.matmul %181, %183, %cst_67 {dimension_numbers = #tpu.dot_dimension_numbers<[1], [0], [0], [1], [0, 0, 1, 1], [], []>} : vector<8x32xbf16>, vector<32x128xbf16>, vector<8x128xf32> -> vector<8x128xf32>
    %c0_68 = arith.constant 0 : index
    %c0_69 = arith.constant 0 : index
    %185 = vector.load %arg14[%c0_68, %c0_69] : memref<1x128xf32, #tpu.memory_space<vmem>>, vector<1x128xf32>
    %186 = vector.broadcast %185 : vector<1x128xf32> to vector<8x128xf32>
    %187 = arith.addf %184, %186 : vector<8x128xf32>
    %cst_70 = arith.constant 5.000000e-01 : f32
    %188 = vector.broadcast %cst_70 : f32 to vector<8x128xf32>
    %189 = arith.mulf %188, %187 : vector<8x128xf32>
    %cst_71 = arith.constant 0.707106769 : f32
    %190 = vector.broadcast %cst_71 : f32 to vector<8x128xf32>
    %191 = arith.mulf %187, %190 : vector<8x128xf32>
    %192 = math.erf %191 : vector<8x128xf32>
    %cst_72 = arith.constant 1.000000e+00 : f32
    %193 = vector.broadcast %cst_72 : f32 to vector<8x128xf32>
    %194 = arith.addf %193, %192 : vector<8x128xf32>
    %195 = arith.mulf %189, %194 : vector<8x128xf32>
    %196 = arith.truncf %195 : vector<8x128xf32> to vector<8x128xbf16>
    %c0_73 = arith.constant 0 : index
    %c0_74 = arith.constant 0 : index
    %197 = vector.load %arg15[%c0_73, %c0_74] : memref<128x32xbf16, #tpu.memory_space<vmem>>, vector<128x32xbf16>
    %cst_75 = arith.constant dense<0.000000e+00> : vector<8x32xf32>
    %198 = tpu.matmul %196, %197, %cst_75 {dimension_numbers = #tpu.dot_dimension_numbers<[1], [0], [0], [1], [0, 0, 1, 1], [], []>} : vector<8x128xbf16>, vector<128x32xbf16>, vector<8x32xf32> -> vector<8x32xf32>
    %199 = arith.addf %182, %198 : vector<8x32xf32>
    %c0_76 = arith.constant 0 : index
    %c0_77 = arith.constant 0 : index
    %200 = vector.load %arg16[%c0_76, %c0_77] : memref<1x32xf32, #tpu.memory_space<vmem>>, vector<1x32xf32>
    %201 = vector.broadcast %200 : vector<1x32xf32> to vector<8x32xf32>
    %202 = arith.addf %199, %201 : vector<8x32xf32>
    %203 = arith.addf %156, %202 : vector<8x32xf32>
    %c0_78 = arith.constant 0 : index
    %c0_79 = arith.constant 0 : index
    %c0_80 = arith.constant 0 : index
    %204 = vector.load %arg17[%c0_78, %c0_79, %c0_80] : memref<1x8x32xf32, #tpu.memory_space<vmem>>, vector<1x8x32xf32>
    %205 = vector.shape_cast %204 : vector<1x8x32xf32> to vector<8x32xf32>
    %206 = vector.shape_cast %203 : vector<8x32xf32> to vector<1x8x32xf32>
    tpu.vector_store %arg17[%c0_78, %c0_79, %c0_80], %206 {strides = array<i32>} : memref<1x8x32xf32, #tpu.memory_space<vmem>>, vector<1x8x32xf32>,
    return
  }
  func.func @transform_0(%arg0: i32, %arg1: i32) -> (i32, i32, i32) {
    %c0_i32 = arith.constant 0 : i32
    %c0_i32_0 = arith.constant 0 : i32
    %c0_i32_1 = arith.constant 0 : i32
    return %arg0, %c0_i32, %c0_i32_0 : i32, i32, i32
  }
  func.func @transform_1(%arg0: i32, %arg1: i32) -> (i32, i32) {
    %c0_i32 = arith.constant 0 : i32
    %c0_i32_0 = arith.constant 0 : i32
    %c0_i32_1 = arith.constant 0 : i32
    return %c0_i32, %c0_i32_0 : i32, i32
  }
  func.func @transform_2(%arg0: i32, %arg1: i32) -> (i32, i32) {
    %c0_i32 = arith.constant 0 : i32
    %c0_i32_0 = arith.constant 0 : i32
    %c0_i32_1 = arith.constant 0 : i32
    return %c0_i32, %c0_i32_0 : i32, i32
  }
  func.func @transform_3(%arg0: i32, %arg1: i32) -> (i32, i32) {
    %c0_i32 = arith.constant 0 : i32
    %c0_i32_0 = arith.constant 0 : i32
    %c0_i32_1 = arith.constant 0 : i32
    return %c0_i32, %c0_i32_0 : i32, i32
  }
  func.func @transform_4(%arg0: i32, %arg1: i32) -> (i32, i32) {
    %c0_i32 = arith.constant 0 : i32
    %c0_i32_0 = arith.constant 0 : i32
    %c0_i32_1 = arith.constant 0 : i32
    return %c0_i32, %c0_i32_0 : i32, i32
  }
  func.func @transform_5(%arg0: i32, %arg1: i32) -> (i32, i32) {
    %c0_i32 = arith.constant 0 : i32
    %c0_i32_0 = arith.constant 0 : i32
    %c0_i32_1 = arith.constant 0 : i32
    return %c0_i32, %c0_i32_0 : i32, i32
  }
  func.func @transform_6(%arg0: i32, %arg1: i32) -> (i32, i32) {
    %c0_i32 = arith.constant 0 : i32
    %c0_i32_0 = arith.constant 0 : i32
    %c0_i32_1 = arith.constant 0 : i32
    return %c0_i32, %c0_i32_0 : i32, i32
  }
  func.func @transform_7(%arg0: i32, %arg1: i32) -> (i32, i32) {
    %c0_i32 = arith.constant 0 : i32
    %c0_i32_0 = arith.constant 0 : i32
    %c0_i32_1 = arith.constant 0 : i32
    return %c0_i32, %c0_i32_0 : i32, i32
  }
  func.func @transform_8(%arg0: i32, %arg1: i32) -> (i32, i32) {
    %c0_i32 = arith.constant 0 : i32
    %c0_i32_0 = arith.constant 0 : i32
    %c0_i32_1 = arith.constant 0 : i32
    return %c0_i32, %c0_i32_0 : i32, i32
  }
  func.func @transform_9(%arg0: i32, %arg1: i32) -> (i32, i32) {
    %c0_i32 = arith.constant 0 : i32
    %c0_i32_0 = arith.constant 0 : i32
    %c0_i32_1 = arith.constant 0 : i32
    return %c0_i32, %c0_i32_0 : i32, i32
  }
  func.func @transform_10(%arg0: i32, %arg1: i32) -> (i32, i32) {
    %c0_i32 = arith.constant 0 : i32
    %c0_i32_0 = arith.constant 0 : i32
    %c0_i32_1 = arith.constant 0 : i32
    return %c0_i32, %c0_i32_0 : i32, i32
  }
  func.func @transform_11(%arg0: i32, %arg1: i32) -> (i32, i32) {
    %c0_i32 = arith.constant 0 : i32
    %c0_i32_0 = arith.constant 0 : i32
    %c0_i32_1 = arith.constant 0 : i32
    return %c0_i32, %c0_i32_0 : i32, i32
  }
  func.func @transform_12(%arg0: i32, %arg1: i32) -> (i32, i32) {
    %c0_i32 = arith.constant 0 : i32
    %c0_i32_0 = arith.constant 0 : i32
    %c0_i32_1 = arith.constant 0 : i32
    return %c0_i32, %c0_i32_0 : i32, i32
  }
  func.func @transform_13(%arg0: i32, %arg1: i32) -> (i32, i32) {
    %c0_i32 = arith.constant 0 : i32
    %c0_i32_0 = arith.constant 0 : i32
    %c0_i32_1 = arith.constant 0 : i32
    return %c0_i32, %c0_i32_0 : i32, i32
  }
  func.func @transform_14(%arg0: i32, %arg1: i32) -> (i32, i32) {
    %c0_i32 = arith.constant 0 : i32
    %c0_i32_0 = arith.constant 0 : i32
    %c0_i32_1 = arith.constant 0 : i32
    return %c0_i32, %c0_i32_0 : i32, i32
  }
  func.func @transform_15(%arg0: i32, %arg1: i32) -> (i32, i32, i32) {
    %c0_i32 = arith.constant 0 : i32
    %c0_i32_0 = arith.constant 0 : i32
    return %arg0, %arg1, %c0_i32 : i32, i32, i32
  }
}

</mosaic_0001>

<llo_original>
// kernel: tpu_custom_call.1
$region0: #{tpu_custom_call.1}
  #allocation0 [shape = 'u32[]', space=smem, size = 0x4, offset = 0x4, fixed_abs, tag = 'smem constant byte address 0x4 - core index']
  #allocation1 [shape = 'u32[144,128]{1,0:T(1,128)}', space=vmem, size = 0x12000, scoped, tag = 'internal scratch']
  #allocation2 [shape = 'f32[8,32]{1,0:T(8,128)}', space=vmem, size = 0x1000, scoped, tag = 'scratch operand']
  %s0 = inlined_call_operand.vmem [shape: f32[2,8,32], index: 0, kind: input, shape index: {}]
  %s1 = inlined_call_operand.vmem [shape: f32[1,32], index: 1, kind: input, shape index: {}]
  %s2 = inlined_call_operand.vmem [shape: f32[1,32], index: 2, kind: input, shape index: {}]
  %s3 = inlined_call_operand.vmem [shape: bf16[32,32], index: 3, kind: input, shape index: {}]
  %s4 = inlined_call_operand.vmem [shape: f32[1,32], index: 4, kind: input, shape index: {}]
  %s5 = inlined_call_operand.vmem [shape: bf16[32,64], index: 5, kind: input, shape index: {}]
  %s6 = inlined_call_operand.vmem [shape: f32[1,64], index: 6, kind: input, shape index: {}]
  %s7 = inlined_call_operand.vmem [shape: bf16[32,32], index: 7, kind: input, shape index: {}]
  %s8 = inlined_call_operand.vmem [shape: f32[1,32], index: 8, kind: input, shape index: {}]
  %s9 = inlined_call_operand.vmem [shape: f32[1,32], index: 9, kind: input, shape index: {}]
  %s10 = inlined_call_operand.vmem [shape: f32[1,32], index: 10, kind: input, shape index: {}]
  %s11 = inlined_call_operand.vmem [shape: bf16[32,128], index: 11, kind: input, shape index: {}]
  %s12 = inlined_call_operand.vmem [shape: f32[1,128], index: 12, kind: input, shape index: {}]
  %s13 = inlined_call_operand.vmem [shape: bf16[128,32], index: 13, kind: input, shape index: {}]
  %s14 = inlined_call_operand.vmem [shape: f32[1,32], index: 14, kind: input, shape index: {}]
  %s15 = inlined_call_operand.hbm [shape: f32[2,8,32], index: 15, kind: output, shape index: {}]
  %s16 = sld [smem:[#allocation0]]
  $region93: #{tpu_custom_call.1} parent=0
    _
  %s18 = ssub.s32 1, %s16
  %s19 = scalar_select 0, %s18, %s16
  $region1: #{tpu_custom_call.1} parent=0
    #allocation3 [shape = 'u8[8192]{0}', space=vmem, size = 0x2000, scoped, tag = 'output window, operand 0']
    #allocation4 [shape = 's32[2]{0}', space=sflag, size = 0x8, scoped, tag = 'scoped memory for tpu_custom_call.1']
    %20 = vsyncpa [#allocation4], 0
    %s21 = scalar_lea.sflag [#allocation4], 1
    %22 = vsyncpa %s21, 0
    loop: start=0, step=1, limit=4
    $region2: #{tpu_custom_call.1} parent=1 // loop_pre_header
      _
    $region3: #{tpu_custom_call.1} parent=1 // loop_header
      %s24 = sphi 0, %s28
      %p25 = scmp.ge.s32.totalorder %s24, 4
      %s31 = sphi 0, %s43
      %s32 = sphi 0, %s39
      %s33 = sphi 0, %s31
      %s34 = sphi 0, %s32
      %s35 = sphi 0, %s33
      %s36 = sphi 0, %s34
      %s46 = sphi 0, %s48
      %s49 = sphi 0, %s46
      %s50 = sphi 0, %s49
      %s66 = sphi 0, %s50
      %s70 = sphi 0, %s70
      %s72 = sphi 0, %s70
      %s73 = sphi 0, %s72
      %s87 = sphi 0, %s73
      %s91 = sphi 0, %s91
      %s93 = sphi 0, %s91
      %s94 = sphi 0, %s93
      %s108 = sphi 0, %s94
      %s112 = sphi 0, %s112
      %s114 = sphi 0, %s112
      %s115 = sphi 0, %s114
      %s129 = sphi 0, %s115
      %s133 = sphi 0, %s133
      %s135 = sphi 0, %s133
      %s136 = sphi 0, %s135
      %s150 = sphi 0, %s136
      %s154 = sphi 0, %s154
      %s156 = sphi 0, %s154
      %s157 = sphi 0, %s156
      %s171 = sphi 0, %s157
      %s175 = sphi 0, %s175
      %s177 = sphi 0, %s175
      %s178 = sphi 0, %s177
      %s192 = sphi 0, %s178
      %s196 = sphi 0, %s196
      %s198 = sphi 0, %s196
      %s199 = sphi 0, %s198
      %s213 = sphi 0, %s199
      %s217 = sphi 0, %s217
      %s219 = sphi 0, %s217
      %s220 = sphi 0, %s219
      %s234 = sphi 0, %s220
      %s238 = sphi 0, %s238
      %s240 = sphi 0, %s238
      %s241 = sphi 0, %s240
      %s255 = sphi 0, %s241
      %s259 = sphi 0, %s259
      %s261 = sphi 0, %s259
      %s262 = sphi 0, %s261
      %s276 = sphi 0, %s262
      %s280 = sphi 0, %s280
      %s282 = sphi 0, %s280
      %s283 = sphi 0, %s282
      %s297 = sphi 0, %s283
      %s301 = sphi 0, %s301
      %s303 = sphi 0, %s301
      %s304 = sphi 0, %s303
      %s318 = sphi 0, %s304
      %s322 = sphi 0, %s322
      %s324 = sphi 0, %s322
      %s325 = sphi 0, %s324
      %s339 = sphi 0, %s325
      %s343 = sphi 0, %s343
      %s345 = sphi 0, %s343
      %s346 = sphi 0, %s345
      %s360 = sphi 0, %s346
      %s368 = sphi 0, %s370
      %s371 = sphi 0, %s368
      %s372 = sphi 0, %s371
      %s388 = sphi 0, %s372
    $region4: #{tpu_custom_call.1} parent=1 // loop_header_branch
      %27 = sbr.rel (%p25) target = $region8
    $region5: #{tpu_custom_call.1} parent=1 // loop_body
      %s29 = ssub.s32 %s24, 1
      %s30 = ssub.s32 %s24, 2
      %s37 = sadd.s32 1, %s32
      %p38 = scmp.ge.s32.totalorder %s37, 1
      %s39 = scalar_select %p38, 0, %s37
      %s40 = sadd.s32 1, %s31
      %s41 = scalar_select %p38, %s40, %s31
      %p42 = scmp.ge.s32.totalorder %s41, 2
      %s43 = scalar_select %p42, 0, %s41
      %s44 = ssub.s32 %s31, %s43
      %p45 = scmp.eq.s32.totalorder %s44, 0
      %s47 = sadd.s32 %s46, 1
      %s48 = scalar_select %p45, %s46, %s47
      %p51 = pneg %p45
      %p52 = scmp.eq.s32.totalorder %s24, 1
      %p53 = por %p51, %p52
      %p54 = scmp.ne.s32.totalorder %s46, %s49
      %p55 = scmp.eq.s32.totalorder %s24, 0
      %p56 = por %p54, %p55
      %p57 = scmp.ne.s32.totalorder %s46, %s49
      %p58 = scmp.eq.s32.totalorder %s29, 1
      %p59 = por %p57, %p58
      %p60 = scmp.ne.s32.totalorder %s49, %s50
      %p61 = scmp.eq.s32.totalorder %s29, 0
      %p62 = por %p60, %p61
      %p63 = scmp.ne.s32.totalorder %s49, %s50
      %p64 = scmp.eq.s32.totalorder %s30, 1
      %p65 = por %p63, %p64
      %p67 = scmp.ne.s32.totalorder %s50, %s66
      %p68 = scmp.eq.s32.totalorder %s30, 0
      %p69 = por %p67, %p68
      %s71 = sadd.s32 %s70, 1
      %p74 = scmp.eq.s32.totalorder %s24, 1
      %p75 = scmp.ne.s32.totalorder %s70, %s72
      %p76 = scmp.eq.s32.totalorder %s24, 0
      %p77 = por %p75, %p76
      %p78 = scmp.ne.s32.totalorder %s70, %s72
      %p79 = scmp.eq.s32.totalorder %s29, 1
      %p80 = por %p78, %p79
      %p81 = scmp.ne.s32.totalorder %s72, %s73
      %p82 = scmp.eq.s32.totalorder %s29, 0
      %p83 = por %p81, %p82
      %p84 = scmp.ne.s32.totalorder %s72, %s73
      %p85 = scmp.eq.s32.totalorder %s30, 1
      %p86 = por %p84, %p85
      %p88 = scmp.ne.s32.totalorder %s73, %s87
      %p89 = scmp.eq.s32.totalorder %s30, 0
      %p90 = por %p88, %p89
      %s92 = sadd.s32 %s91, 1
      %p95 = scmp.eq.s32.totalorder %s24, 1
      %p96 = scmp.ne.s32.totalorder %s91, %s93
      %p97 = scmp.eq.s32.totalorder %s24, 0
      %p98 = por %p96, %p97
      %p99 = scmp.ne.s32.totalorder %s91, %s93
      %p100 = scmp.eq.s32.totalorder %s29, 1
      %p101 = por %p99, %p100
      %p102 = scmp.ne.s32.totalorder %s93, %s94
      %p103 = scmp.eq.s32.totalorder %s29, 0
      %p104 = por %p102, %p103
      %p105 = scmp.ne.s32.totalorder %s93, %s94
      %p106 = scmp.eq.s32.totalorder %s30, 1
      %p107 = por %p105, %p106
      %p109 = scmp.ne.s32.totalorder %s94, %s108
      %p110 = scmp.eq.s32.totalorder %s30, 0
      %p111 = por %p109, %p110
      %s113 = sadd.s32 %s112, 1
      %p116 = scmp.eq.s32.totalorder %s24, 1
      %p117 = scmp.ne.s32.totalorder %s112, %s114
      %p118 = scmp.eq.s32.totalorder %s24, 0
      %p119 = por %p117, %p118
      %p120 = scmp.ne.s32.totalorder %s112, %s114
      %p121 = scmp.eq.s32.totalorder %s29, 1
      %p122 = por %p120, %p121
      %p123 = scmp.ne.s32.totalorder %s114, %s115
      %p124 = scmp.eq.s32.totalorder %s29, 0
      %p125 = por %p123, %p124
      %p126 = scmp.ne.s32.totalorder %s114, %s115
      %p127 = scmp.eq.s32.totalorder %s30, 1
      %p128 = por %p126, %p127
      %p130 = scmp.ne.s32.totalorder %s115, %s129
      %p131 = scmp.eq.s32.totalorder %s30, 0
      %p132 = por %p130, %p131
      %s134 = sadd.s32 %s133, 1
      %p137 = scmp.eq.s32.totalorder %s24, 1
      %p138 = scmp.ne.s32.totalorder %s133, %s135
      %p139 = scmp.eq.s32.totalorder %s24, 0
      %p140 = por %p138, %p139
      %p141 = scmp.ne.s32.totalorder %s133, %s135
      %p142 = scmp.eq.s32.totalorder %s29, 1
      %p143 = por %p141, %p142
      %p144 = scmp.ne.s32.totalorder %s135, %s136
      %p145 = scmp.eq.s32.totalorder %s29, 0
      %p146 = por %p144, %p145
      %p147 = scmp.ne.s32.totalorder %s135, %s136
      %p148 = scmp.eq.s32.totalorder %s30, 1
      %p149 = por %p147, %p148
      %p151 = scmp.ne.s32.totalorder %s136, %s150
      %p152 = scmp.eq.s32.totalorder %s30, 0
      %p153 = por %p151, %p152
      %s155 = sadd.s32 %s154, 1
      %p158 = scmp.eq.s32.totalorder %s24, 1
      %p159 = scmp.ne.s32.totalorder %s154, %s156
      %p160 = scmp.eq.s32.totalorder %s24, 0
      %p161 = por %p159, %p160
      %p162 = scmp.ne.s32.totalorder %s154, %s156
      %p163 = scmp.eq.s32.totalorder %s29, 1
      %p164 = por %p162, %p163
      %p165 = scmp.ne.s32.totalorder %s156, %s157
      %p166 = scmp.eq.s32.totalorder %s29, 0
      %p167 = por %p165, %p166
      %p168 = scmp.ne.s32.totalorder %s156, %s157
      %p169 = scmp.eq.s32.totalorder %s30, 1
      %p170 = por %p168, %p169
      %p172 = scmp.ne.s32.totalorder %s157, %s171
      %p173 = scmp.eq.s32.totalorder %s30, 0
      %p174 = por %p172, %p173
      %s176 = sadd.s32 %s175, 1
      %p179 = scmp.eq.s32.totalorder %s24, 1
      %p180 = scmp.ne.s32.totalorder %s175, %s177
      %p181 = scmp.eq.s32.totalorder %s24, 0
      %p182 = por %p180, %p181
      %p183 = scmp.ne.s32.totalorder %s175, %s177
      %p184 = scmp.eq.s32.totalorder %s29, 1
      %p185 = por %p183, %p184
      %p186 = scmp.ne.s32.totalorder %s177, %s178
      %p187 = scmp.eq.s32.totalorder %s29, 0
      %p188 = por %p186, %p187
      %p189 = scmp.ne.s32.totalorder %s177, %s178
      %p190 = scmp.eq.s32.totalorder %s30, 1
      %p191 = por %p189, %p190
      %p193 = scmp.ne.s32.totalorder %s178, %s192
      %p194 = scmp.eq.s32.totalorder %s30, 0
      %p195 = por %p193, %p194
      %s197 = sadd.s32 %s196, 1
      %p200 = scmp.eq.s32.totalorder %s24, 1
      %p201 = scmp.ne.s32.totalorder %s196, %s198
      %p202 = scmp.eq.s32.totalorder %s24, 0
      %p203 = por %p201, %p202
      %p204 = scmp.ne.s32.totalorder %s196, %s198
      %p205 = scmp.eq.s32.totalorder %s29, 1
      %p206 = por %p204, %p205
      %p207 = scmp.ne.s32.totalorder %s198, %s199
      %p208 = scmp.eq.s32.totalorder %s29, 0
      %p209 = por %p207, %p208
      %p210 = scmp.ne.s32.totalorder %s198, %s199
      %p211 = scmp.eq.s32.totalorder %s30, 1
      %p212 = por %p210, %p211
      %p214 = scmp.ne.s32.totalorder %s199, %s213
      %p215 = scmp.eq.s32.totalorder %s30, 0
      %p216 = por %p214, %p215
      %s218 = sadd.s32 %s217, 1
      %p221 = scmp.eq.s32.totalorder %s24, 1
      %p222 = scmp.ne.s32.totalorder %s217, %s219
      %p223 = scmp.eq.s32.totalorder %s24, 0
      %p224 = por %p222, %p223
      %p225 = scmp.ne.s32.totalorder %s217, %s219
      %p226 = scmp.eq.s32.totalorder %s29, 1
      %p227 = por %p225, %p226
      %p228 = scmp.ne.s32.totalorder %s219, %s220
      %p229 = scmp.eq.s32.totalorder %s29, 0
      %p230 = por %p228, %p229
      %p231 = scmp.ne.s32.totalorder %s219, %s220
      %p232 = scmp.eq.s32.totalorder %s30, 1
      %p233 = por %p231, %p232
      %p235 = scmp.ne.s32.totalorder %s220, %s234
      %p236 = scmp.eq.s32.totalorder %s30, 0
      %p237 = por %p235, %p236
      %s239 = sadd.s32 %s238, 1
      %p242 = scmp.eq.s32.totalorder %s24, 1
      %p243 = scmp.ne.s32.totalorder %s238, %s240
      %p244 = scmp.eq.s32.totalorder %s24, 0
      %p245 = por %p243, %p244
      %p246 = scmp.ne.s32.totalorder %s238, %s240
      %p247 = scmp.eq.s32.totalorder %s29, 1
      %p248 = por %p246, %p247
      %p249 = scmp.ne.s32.totalorder %s240, %s241
      %p250 = scmp.eq.s32.totalorder %s29, 0
      %p251 = por %p249, %p250
      %p252 = scmp.ne.s32.totalorder %s240, %s241
      %p253 = scmp.eq.s32.totalorder %s30, 1
      %p254 = por %p252, %p253
      %p256 = scmp.ne.s32.totalorder %s241, %s255
      %p257 = scmp.eq.s32.totalorder %s30, 0
      %p258 = por %p256, %p257
      %s260 = sadd.s32 %s259, 1
      %p263 = scmp.eq.s32.totalorder %s24, 1
      %p264 = scmp.ne.s32.totalorder %s259, %s261
      %p265 = scmp.eq.s32.totalorder %s24, 0
      %p266 = por %p264, %p265
      %p267 = scmp.ne.s32.totalorder %s259, %s261
      %p268 = scmp.eq.s32.totalorder %s29, 1
      %p269 = por %p267, %p268
      %p270 = scmp.ne.s32.totalorder %s261, %s262
      %p271 = scmp.eq.s32.totalorder %s29, 0
      %p272 = por %p270, %p271
      %p273 = scmp.ne.s32.totalorder %s261, %s262
      %p274 = scmp.eq.s32.totalorder %s30, 1
      %p275 = por %p273, %p274
      %p277 = scmp.ne.s32.totalorder %s262, %s276
      %p278 = scmp.eq.s32.totalorder %s30, 0
      %p279 = por %p277, %p278
      %s281 = sadd.s32 %s280, 1
      %p284 = scmp.eq.s32.totalorder %s24, 1
      %p285 = scmp.ne.s32.totalorder %s280, %s282
      %p286 = scmp.eq.s32.totalorder %s24, 0
      %p287 = por %p285, %p286
      %p288 = scmp.ne.s32.totalorder %s280, %s282
      %p289 = scmp.eq.s32.totalorder %s29, 1
      %p290 = por %p288, %p289
      %p291 = scmp.ne.s32.totalorder %s282, %s283
      %p292 = scmp.eq.s32.totalorder %s29, 0
      %p293 = por %p291, %p292
      %p294 = scmp.ne.s32.totalorder %s282, %s283
      %p295 = scmp.eq.s32.totalorder %s30, 1
      %p296 = por %p294, %p295
      %p298 = scmp.ne.s32.totalorder %s283, %s297
      %p299 = scmp.eq.s32.totalorder %s30, 0
      %p300 = por %p298, %p299
      %s302 = sadd.s32 %s301, 1
      %p305 = scmp.eq.s32.totalorder %s24, 1
      %p306 = scmp.ne.s32.totalorder %s301, %s303
      %p307 = scmp.eq.s32.totalorder %s24, 0
      %p308 = por %p306, %p307
      %p309 = scmp.ne.s32.totalorder %s301, %s303
      %p310 = scmp.eq.s32.totalorder %s29, 1
      %p311 = por %p309, %p310
      %p312 = scmp.ne.s32.totalorder %s303, %s304
      %p313 = scmp.eq.s32.totalorder %s29, 0
      %p314 = por %p312, %p313
      %p315 = scmp.ne.s32.totalorder %s303, %s304
      %p316 = scmp.eq.s32.totalorder %s30, 1
      %p317 = por %p315, %p316
      %p319 = scmp.ne.s32.totalorder %s304, %s318
      %p320 = scmp.eq.s32.totalorder %s30, 0
      %p321 = por %p319, %p320
      %s323 = sadd.s32 %s322, 1
      %p326 = scmp.eq.s32.totalorder %s24, 1
      %p327 = scmp.ne.s32.totalorder %s322, %s324
      %p328 = scmp.eq.s32.totalorder %s24, 0
      %p329 = por %p327, %p328
      %p330 = scmp.ne.s32.totalorder %s322, %s324
      %p331 = scmp.eq.s32.totalorder %s29, 1
      %p332 = por %p330, %p331
      %p333 = scmp.ne.s32.totalorder %s324, %s325
      %p334 = scmp.eq.s32.totalorder %s29, 0
      %p335 = por %p333, %p334
      %p336 = scmp.ne.s32.totalorder %s324, %s325
      %p337 = scmp.eq.s32.totalorder %s30, 1
      %p338 = por %p336, %p337
      %p340 = scmp.ne.s32.totalorder %s325, %s339
      %p341 = scmp.eq.s32.totalorder %s30, 0
      %p342 = por %p340, %p341
      %s344 = sadd.s32 %s343, 1
      %p347 = scmp.eq.s32.totalorder %s24, 1
      %p348 = scmp.ne.s32.totalorder %s343, %s345
      %p349 = scmp.eq.s32.totalorder %s24, 0
      %p350 = por %p348, %p349
      %p351 = scmp.ne.s32.totalorder %s343, %s345
      %p352 = scmp.eq.s32.totalorder %s29, 1
      %p353 = por %p351, %p352
      %p354 = scmp.ne.s32.totalorder %s345, %s346
      %p355 = scmp.eq.s32.totalorder %s29, 0
      %p356 = por %p354, %p355
      %p357 = scmp.ne.s32.totalorder %s345, %s346
      %p358 = scmp.eq.s32.totalorder %s30, 1
      %p359 = por %p357, %p358
      %p361 = scmp.ne.s32.totalorder %s346, %s360
      %p362 = scmp.eq.s32.totalorder %s30, 0
      %p363 = por %p361, %p362
      %s364 = ssub.s32 %s31, %s43
      %s365 = ssub.s32 %s32, %s39
      %s366 = sor.u32 %s364, %s365
      %p367 = scmp.eq.s32.totalorder %s366, 0
      %s369 = sadd.s32 %s368, 1
      %s370 = scalar_select %p367, %s368, %s369
      %p373 = pneg %p367
      %p374 = scmp.eq.s32.totalorder %s24, 1
      %p375 = por %p373, %p374
      %p376 = scmp.ne.s32.totalorder %s368, %s371
      %p377 = scmp.eq.s32.totalorder %s24, 0
      %p378 = por %p376, %p377
      %p379 = scmp.ne.s32.totalorder %s368, %s371
      %p380 = scmp.eq.s32.totalorder %s29, 1
      %p381 = por %p379, %p380
      %p382 = scmp.ne.s32.totalorder %s371, %s372
      %p383 = scmp.eq.s32.totalorder %s29, 0
      %p384 = por %p382, %p383
      %p385 = scmp.ne.s32.totalorder %s371, %s372
      %p386 = scmp.eq.s32.totalorder %s30, 1
      %p387 = por %p385, %p386
      %p389 = scmp.ne.s32.totalorder %s372, %s388
      %p390 = scmp.eq.s32.totalorder %s30, 0
      %p391 = por %p389, %p390
      %p392 = scmp.le.s32.totalorder 1, %s24
      %p393 = scmp.lt.s32.totalorder %s24, 3
      %p394 = pnand %p392, %p393
      %p395 = pneg %p394
      // Predicated region
      $region9: #{tpu_custom_call.1} parent=5 // pred_check
        _
      $region10: #{tpu_custom_call.1} parent=5 // pred_check_branch
        %397 = sbr.rel (%p394) target = $region12
      $region11: #{tpu_custom_call.1} parent=5 // pred_region
        %s398 = ssub.s32 %s24, 1
        // Predicated region
        $region13: #{tpu_custom_call.1} parent=11 // pred_check
          %p399 = pneg %p83
        $region14: #{tpu_custom_call.1} parent=11 // pred_check_branch
          %401 = sbr.rel (%p399) target = $region16
        $region15: #{tpu_custom_call.1} parent=11 // pred_region
          _
        $region16: #{tpu_custom_call.1} parent=11 // pred_fallthru
          _
        // Predicated region
        $region17: #{tpu_custom_call.1} parent=11 // pred_check
          %p402 = pneg %p104
        $region18: #{tpu_custom_call.1} parent=11 // pred_check_branch
          %404 = sbr.rel (%p402) target = $region20
        $region19: #{tpu_custom_call.1} parent=11 // pred_region
          _
        $region20: #{tpu_custom_call.1} parent=11 // pred_fallthru
          _
        // Predicated region
        $region21: #{tpu_custom_call.1} parent=11 // pred_check
          %p405 = pneg %p125
        $region22: #{tpu_custom_call.1} parent=11 // pred_check_branch
          %407 = sbr.rel (%p405) target = $region24
        $region23: #{tpu_custom_call.1} parent=11 // pred_region
          _
        $region24: #{tpu_custom_call.1} parent=11 // pred_fallthru
          _
        // Predicated region
        $region25: #{tpu_custom_call.1} parent=11 // pred_check
          %p408 = pneg %p146
        $region26: #{tpu_custom_call.1} parent=11 // pred_check_branch
          %410 = sbr.rel (%p408) target = $region28
        $region27: #{tpu_custom_call.1} parent=11 // pred_region
          _
        $region28: #{tpu_custom_call.1} parent=11 // pred_fallthru
          _
        // Predicated region
        $region29: #{tpu_custom_call.1} parent=11 // pred_check
          %p411 = pneg %p167
        $region30: #{tpu_custom_call.1} parent=11 // pred_check_branch
          %413 = sbr.rel (%p411) target = $region32
        $region31: #{tpu_custom_call.1} parent=11 // pred_region
          _
        $region32: #{tpu_custom_call.1} parent=11 // pred_fallthru
          _
        // Predicated region
        $region33: #{tpu_custom_call.1} parent=11 // pred_check
          %p414 = pneg %p188
        $region34: #{tpu_custom_call.1} parent=11 // pred_check_branch
          %416 = sbr.rel (%p414) target = $region36
        $region35: #{tpu_custom_call.1} parent=11 // pred_region
          _
        $region36: #{tpu_custom_call.1} parent=11 // pred_fallthru
          _
        // Predicated region
        $region37: #{tpu_custom_call.1} parent=11 // pred_check
          %p417 = pneg %p209
        $region38: #{tpu_custom_call.1} parent=11 // pred_check_branch
          %419 = sbr.rel (%p417) target = $region40
        $region39: #{tpu_custom_call.1} parent=11 // pred_region
          _
        $region40: #{tpu_custom_call.1} parent=11 // pred_fallthru
          _
        // Predicated region
        $region41: #{tpu_custom_call.1} parent=11 // pred_check
          %p420 = pneg %p230
        $region42: #{tpu_custom_call.1} parent=11 // pred_check_branch
          %422 = sbr.rel (%p420) target = $region44
        $region43: #{tpu_custom_call.1} parent=11 // pred_region
          _
        $region44: #{tpu_custom_call.1} parent=11 // pred_fallthru
          _
        // Predicated region
        $region45: #{tpu_custom_call.1} parent=11 // pred_check
          %p423 = pneg %p251
        $region46: #{tpu_custom_call.1} parent=11 // pred_check_branch
          %425 = sbr.rel (%p423) target = $region48
        $region47: #{tpu_custom_call.1} parent=11 // pred_region
          _
        $region48: #{tpu_custom_call.1} parent=11 // pred_fallthru
          _
        // Predicated region
        $region49: #{tpu_custom_call.1} parent=11 // pred_check
          %p426 = pneg %p272
        $region50: #{tpu_custom_call.1} parent=11 // pred_check_branch
          %428 = sbr.rel (%p426) target = $region52
        $region51: #{tpu_custom_call.1} parent=11 // pred_region
          _
        $region52: #{tpu_custom_call.1} parent=11 // pred_fallthru
          _
        // Predicated region
        $region53: #{tpu_custom_call.1} parent=11 // pred_check
          %p429 = pneg %p293
        $region54: #{tpu_custom_call.1} parent=11 // pred_check_branch
          %431 = sbr.rel (%p429) target = $region56
        $region55: #{tpu_custom_call.1} parent=11 // pred_region
          _
        $region56: #{tpu_custom_call.1} parent=11 // pred_fallthru
          _
        // Predicated region
        $region57: #{tpu_custom_call.1} parent=11 // pred_check
          %p432 = pneg %p314
        $region58: #{tpu_custom_call.1} parent=11 // pred_check_branch
          %434 = sbr.rel (%p432) target = $region60
        $region59: #{tpu_custom_call.1} parent=11 // pred_region
          _
        $region60: #{tpu_custom_call.1} parent=11 // pred_fallthru
          _
        // Predicated region
        $region61: #{tpu_custom_call.1} parent=11 // pred_check
          %p435 = pneg %p335
        $region62: #{tpu_custom_call.1} parent=11 // pred_check_branch
          %437 = sbr.rel (%p435) target = $region64
        $region63: #{tpu_custom_call.1} parent=11 // pred_region
          _
        $region64: #{tpu_custom_call.1} parent=11 // pred_fallthru
          _
        // Predicated region
        $region65: #{tpu_custom_call.1} parent=11 // pred_check
          %p438 = pneg %p356
        $region66: #{tpu_custom_call.1} parent=11 // pred_check_branch
          %440 = sbr.rel (%p438) target = $region68
        $region67: #{tpu_custom_call.1} parent=11 // pred_region
          _
        $region68: #{tpu_custom_call.1} parent=11 // pred_fallthru
          _
      $region12: #{tpu_custom_call.1} parent=5 // pred_fallthru
        _
      %p441 = scmp.lt.s32.totalorder %s24, 2
      // Predicated region
      $region69: #{tpu_custom_call.1} parent=5 // pred_check
        %p442 = pneg %p441
      $region70: #{tpu_custom_call.1} parent=5 // pred_check_branch
        %444 = sbr.rel (%p442) target = $region72
      $region71: #{tpu_custom_call.1} parent=5 // pred_region
        // Predicated region
        $region73: #{tpu_custom_call.1} parent=71 // pred_check
          %p445 = pneg %p56
        $region74: #{tpu_custom_call.1} parent=71 // pred_check_branch
          %447 = sbr.rel (%p445) target = $region76
        $region75: #{tpu_custom_call.1} parent=71 // pred_region
          %p448 = scmp.lt.s32.totalorder %s31, 1
          %s449 = scalar_select %p448, %s31, 1
          %s450 = smul.addr %s449, 8
          %s451 = scalar_lea.vmem %s0, %s450
        $region76: #{tpu_custom_call.1} parent=71 // pred_fallthru
          _
      $region72: #{tpu_custom_call.1} parent=5 // pred_fallthru
        _
      %p452 = scmp.le.s32.totalorder 1, %s24
      %p453 = scmp.lt.s32.totalorder %s24, 3
      %p454 = pnand %p452, %p453
      %p455 = pneg %p454
      // Predicated region
      $region77: #{tpu_custom_call.1} parent=5 // pred_check
        _
      $region78: #{tpu_custom_call.1} parent=5 // pred_check_branch
        %457 = sbr.rel (%p454) target = $region80
      $region79: #{tpu_custom_call.1} parent=5 // pred_region
        %s458 = ssub.s32 %s24, 1
        %p459 = scmp.lt.s32.totalorder %s33, 1
        %s460 = scalar_select %p459, %s33, 1
        %s461 = smul.addr %s460, 8
        %s462 = scalar_lea.vmem %s0, %s461
        %p463 = pneg %p62
        %p464 = pneg %p59
        %p465 = pneg %p83
        %p466 = pneg %p80
        %p467 = pneg %p104
        %p468 = pneg %p101
        %p469 = pneg %p125
        %p470 = pneg %p122
        %p471 = pneg %p146
        %p472 = pneg %p143
        %p473 = pneg %p167
        %p474 = pneg %p164
        %p475 = pneg %p188
        %p476 = pneg %p185
        %p477 = pneg %p209
        %p478 = pneg %p206
        %p479 = pneg %p230
        %p480 = pneg %p227
        %p481 = pneg %p251
        %p482 = pneg %p248
        %p483 = pneg %p272
        %p484 = pneg %p269
        %p485 = pneg %p293
        %p486 = pneg %p290
        %p487 = pneg %p314
        %p488 = pneg %p311
        %p489 = pneg %p335
        %p490 = pneg %p332
        %p491 = pneg %p356
        %p492 = pneg %p353
        %p493 = pneg %p384
        %p494 = pneg %p381
        %s495 = sand.u32 %s371, 1
        %s496 = scalar_lea.sflag [#allocation4], %s495
        %s497 = sand.u32 %s371, 1
        %s498 = smul.addr %s497, 8
        %s499 = scalar_lea.vmem [#allocation3], %s498
        %p500 = scmp.lt.s32.totalorder %s33, 1
        %s501 = scalar_select %p500, %s33, 1
        %s502 = smul.addr %s501, 8
        %s503 = scalar_lea.vmem %s0, %s502
        %s505 = smul.u32 %s34, 8
        %v506 = vld [vmem:[%s1] sm:$0x1]
        %v507 = vld [vmem:[%s2] sm:$0x1]
        %v508 = vld [vmem:[%s503] sm:$0xff]
        %vm509 = vcmask 261120
        %v510 = vsel %vm509, %v508, 0.0
        %511 = vadd.xlane.f32.xlu0 %v510
        %v512 = vpop.xlane.xlu0 %511
        %v513 = vrcp.pop 32.0
        %v514 = vmul.f32 %v512, %v513
        %v515 = vmul.f32 %v508, %v508
        %v516 = vsel %vm509, %v515, 0.0
        %517 = vadd.xlane.f32.xlu0 %v516
        %v518 = vpop.xlane.xlu0 %517
        %v519 = vmul.f32 %v518, %v513
        %v520 = vmul.f32 %v514, %v514
        %v521 = vsub.f32 %v519, %v520
        %v522 = vsub.f32 %v508, %v514
        %v523 = vadd.f32 %v521, 1e-05
        %v524 = vrsqrt.pop %v523
        %v525 = vmul.f32 %v522, %v524
        %v527 = vlaneseq
        %v528 = vshrl.u32 %v527, 7
        %v529 = vsub.s32 0, %v528
        %v530 = vrot.slane %v506, %v529
        %v532 = vmul.f32 %v525, %v530
        %v534 = vlaneseq
        %v535 = vshrl.u32 %v534, 7
        %v536 = vsub.s32 0, %v535
        %v537 = vrot.slane %v507, %v536
        %v539 = vadd.f32 %v532, %v537
        %v540 = vpack.c.bf16 %v539, %v539
        %v541 = vld [vmem:[%s5] sm:$0xf]
        %v542 = vld [vmem:[%s5 + $0x4] sm:$0xf]
        %v543 = vld [vmem:[%s5 + $0x8] sm:$0xf]
        %v544 = vld [vmem:[%s5 + $0xc] sm:$0xf]
        %v545 = vld [vmem:[%s6] sm:$0x1]
        %v547 = vlaneseq
        %v548 = vshrl.u32 %v547, 7
        %v549 = vsub.s32 0, %v548
        %v550 = vrot.slane %v545, %v549
        %v556 = vunpack.c.l.b16 %v541
        %v557 = vunpack.c.l.b16 %v542
        %v558 = vunpack.c.l.b16 %v543
        %v559 = vunpack.c.l.b16 %v544
        %v560 = vpack.c.b16 %v557, %v556
        %v561 = vpack.c.b16 %v559, %v558
        %v565 = vsel %vm509, %v540, 0
        %567 = vmatprep.subr.bf16.mxu0 0
        %568 = vmatpush1.bf16.msra.mxu0 %v560
        %569 = vmatprep.subr.bf16.mxu0 0
        %570 = vmatpush1.bf16.msra.mxu0 %v561
        %571 = vmatprep.subr.bf16.mxu0 0
        %572 = vmatpush1.bf16.msra.mxu0 0
        %573 = vmatprep.subr.bf16.mxu0 0
        %574 = vmatpush1.bf16.msra.mxu0 0
        %575 = vmatprep.subr.bf16.mxu0 0
        %576 = vmatpush1.bf16.msra.mxu0 0
        %577 = vmatprep.subr.bf16.mxu0 0
        %578 = vmatpush1.bf16.msra.mxu0 0
        %579 = vmatprep.subr.bf16.mxu0 0
        %580 = vmatpush1.bf16.msra.mxu0 0
        %581 = vmatprep.subr.bf16.mxu0 0
        %582 = vmatpush1.bf16.msra.mxu0 0
        %583 = vmatprep.subr.bf16.mxu0 0
        %584 = vmatpush1.bf16.msra.mxu0 0
        %585 = vmatprep.subr.bf16.mxu0 0
        %586 = vmatpush1.bf16.msra.mxu0 0
        %587 = vmatprep.subr.bf16.mxu0 0
        %588 = vmatpush1.bf16.msra.mxu0 0
        %589 = vmatprep.subr.bf16.mxu0 0
        %590 = vmatpush1.bf16.msra.mxu0 0
        %591 = vmatprep.subr.bf16.mxu0 0
        %592 = vmatpush1.bf16.msra.mxu0 0
        %593 = vmatprep.subr.bf16.mxu0 0
        %594 = vmatpush1.bf16.msra.mxu0 0
        %595 = vmatprep.subr.bf16.mxu0 0
        %596 = vmatpush1.bf16.msra.mxu0 0
        %597 = vmatprep.subr.bf16.mxu0 0
        %598 = vmatpush1.bf16.msra.mxu0 0
        %599 = vmatprep.mubr.bf16.mxu0 0
        %600 = vmatmul.mubr.bf16.gmra.mrb[0].mxu0 %v565
        %v601 = vpop.f32.mrb[0].mxu0
        %v602 = vadd.f32 %v550, %v601
        %v603 = vpop.f32.mrb[0].mxu0
        %v604 = vpop.f32.mrb[0].mxu0
        %v605 = vpop.f32.mrb[0].mxu0
        %606 = vdwg.mxu0
        %s607 = scalar_lea.vmem %s503, %s505
        %v608 = vld [vmem:[%s607] sm:$0xff]
        %v609 = vsel %vm509, %v608, 0.0
        %610 = vadd.xlane.f32.xlu0 %v609
        %v611 = vpop.xlane.xlu0 %610
        %v612 = vmul.f32 %v611, %v513
        %v613 = vmul.f32 %v608, %v608
        %v614 = vsel %vm509, %v613, 0.0
        %615 = vadd.xlane.f32.xlu0 %v614
        %v616 = vpop.xlane.xlu0 %615
        %v617 = vmul.f32 %v616, %v513
        %v618 = vmul.f32 %v612, %v612
        %v619 = vsub.f32 %v617, %v618
        %v620 = vsub.f32 %v608, %v612
        %v621 = vadd.f32 %v619, 1e-05
        %v622 = vrsqrt.pop %v621
        %v623 = vmul.f32 %v620, %v622
        %v624 = vmul.f32 %v623, %v530
        %v625 = vadd.f32 %v624, %v537
        %v626 = vpack.c.bf16 %v625, %v625
        %v627 = vld [vmem:[%s3] sm:$0xf]
        %v628 = vld [vmem:[%s3 + $0x4] sm:$0xf]
        %v629 = vld [vmem:[%s3 + $0x8] sm:$0xf]
        %v630 = vld [vmem:[%s3 + $0xc] sm:$0xf]
        %v631 = vld [vmem:[%s4] sm:$0x1]
        %v633 = vlaneseq
        %v634 = vshrl.u32 %v633, 7
        %v635 = vsub.s32 0, %v634
        %v636 = vrot.slane %v631, %v635
        %v642 = vunpack.c.l.b16 %v627
        %v643 = vunpack.c.l.b16 %v628
        %v644 = vunpack.c.l.b16 %v629
        %v645 = vunpack.c.l.b16 %v630
        %v646 = vpack.c.b16 %v643, %v642
        %v647 = vpack.c.b16 %v645, %v644
        %v651 = vsel %vm509, %v626, 0
        %653 = vmatprep.subr.bf16.mxu0 0
        %654 = vmatpush1.bf16.msra.mxu0 %v646
        %655 = vmatprep.subr.bf16.mxu0 0
        %656 = vmatpush1.bf16.msra.mxu0 %v647
        %657 = vmatprep.subr.bf16.mxu0 0
        %658 = vmatpush1.bf16.msra.mxu0 0
        %659 = vmatprep.subr.bf16.mxu0 0
        %660 = vmatpush1.bf16.msra.mxu0 0
        %661 = vmatprep.subr.bf16.mxu0 0
        %662 = vmatpush1.bf16.msra.mxu0 0
        %663 = vmatprep.subr.bf16.mxu0 0
        %664 = vmatpush1.bf16.msra.mxu0 0
        %665 = vmatprep.subr.bf16.mxu0 0
        %666 = vmatpush1.bf16.msra.mxu0 0
        %667 = vmatprep.subr.bf16.mxu0 0
        %668 = vmatpush1.bf16.msra.mxu0 0
        %669 = vmatprep.subr.bf16.mxu0 0
        %670 = vmatpush1.bf16.msra.mxu0 0
        %671 = vmatprep.subr.bf16.mxu0 0
        %672 = vmatpush1.bf16.msra.mxu0 0
        %673 = vmatprep.subr.bf16.mxu0 0
        %674 = vmatpush1.bf16.msra.mxu0 0
        %675 = vmatprep.subr.bf16.mxu0 0
        %676 = vmatpush1.bf16.msra.mxu0 0
        %677 = vmatprep.subr.bf16.mxu0 0
        %678 = vmatpush1.bf16.msra.mxu0 0
        %679 = vmatprep.subr.bf16.mxu0 0
        %680 = vmatpush1.bf16.msra.mxu0 0
        %681 = vmatprep.subr.bf16.mxu0 0
        %682 = vmatpush1.bf16.msra.mxu0 0
        %683 = vmatprep.subr.bf16.mxu0 0
        %684 = vmatpush1.bf16.msra.mxu0 0
        %685 = vmatprep.mubr.bf16.mxu0 0
        %686 = vmatmul.mubr.bf16.gmra.mrb[0].mxu0 %v651
        %v687 = vpop.f32.mrb[0].mxu0
        %v688 = vadd.f32 %v636, %v687
        %v689 = vpop.f32.mrb[0].mxu0
        %v690 = vpop.f32.mrb[0].mxu0
        %v691 = vpop.f32.mrb[0].mxu0
        %692 = vdwg.mxu0
        %v693 = vpack.c.bf16 %v688, %v688
        %v694 = vpack.c.bf16 %v602, %v602
        %vm695 = vcmask 64512
        %v697 = vsel %vm695, %v693, 0
        %v700 = vsel %vm695, %v694, 0
        %702 = vmatprep.subr.bf16.mxu0 0
        %703 = vmatpush1.bf16.xpose.msra.mxu0 %v700
        %704 = vmatprep.subr.bf16.mxu0 0
        %705 = vmatpush1.bf16.xpose.msra.mxu0 0
        %706 = vmatprep.subr.bf16.mxu0 0
        %707 = vmatpush1.bf16.xpose.msra.mxu0 0
        %708 = vmatprep.subr.bf16.mxu0 0
        %709 = vmatpush1.bf16.xpose.msra.mxu0 0
        %710 = vmatprep.subr.bf16.mxu0 0
        %711 = vmatpush1.bf16.xpose.msra.mxu0 0
        %712 = vmatprep.subr.bf16.mxu0 0
        %713 = vmatpush1.bf16.xpose.msra.mxu0 0
        %714 = vmatprep.subr.bf16.mxu0 0
        %715 = vmatpush1.bf16.xpose.msra.mxu0 0
        %716 = vmatprep.subr.bf16.mxu0 0
        %717 = vmatpush1.bf16.xpose.msra.mxu0 0
        %718 = vmatprep.subr.bf16.mxu0 0
        %719 = vmatpush1.bf16.xpose.msra.mxu0 0
        %720 = vmatprep.subr.bf16.mxu0 0
        %721 = vmatpush1.bf16.xpose.msra.mxu0 0
        %722 = vmatprep.subr.bf16.mxu0 0
        %723 = vmatpush1.bf16.xpose.msra.mxu0 0
        %724 = vmatprep.subr.bf16.mxu0 0
        %725 = vmatpush1.bf16.xpose.msra.mxu0 0
        %726 = vmatprep.subr.bf16.mxu0 0
        %727 = vmatpush1.bf16.xpose.msra.mxu0 0
        %728 = vmatprep.subr.bf16.mxu0 0
        %729 = vmatpush1.bf16.xpose.msra.mxu0 0
        %730 = vmatprep.subr.bf16.mxu0 0
        %731 = vmatpush1.bf16.xpose.msra.mxu0 0
        %732 = vmatprep.subr.bf16.mxu0 0
        %733 = vmatpush1.bf16.xpose.msra.mxu0 0
        %734 = vmatprep.mubr.bf16.mxu0 0
        %735 = vmatmul.mubr.bf16.gmra.mrb[0].mxu0 %v697
        %v736 = vpop.f32.mrb[0].mxu0
        %v737 = vadd.f32 0.0, %v736
        %v738 = vpop.f32.mrb[0].mxu0
        %v739 = vpop.f32.mrb[0].mxu0
        %v740 = vpop.f32.mrb[0].mxu0
        %741 = vdwg.mxu0
        %v742 = vsel %vm695, %v737, -inf
        %743 = vmax.xlane.f32.xlu0 %v742
        %v744 = vpop.xlane.xlu0 %743
        %v745 = vsub.f32 %v737, %v744
        %v746 = vmul.f32 %v745, 1.442695
        %v747 = vpow.pop %v746
        %v748 = vsel %vm695, %v747, 0.0
        %749 = vadd.xlane.f32.xlu0 %v748
        %v750 = vpop.xlane.xlu0 %749
        %v751 = vrcp.pop %v750
        %v752 = vmul.f32 %v747, %v751
        %v753 = vpack.c.bf16 %v752, %v752
        %755 = vrot.lane.b32.xlu0 %v694, 96
        %v756 = vpop.permute.xlu0 %755
        %v758 = vsel %vm695, %v753, 0
        %vm760 = vcmask 1043456
        %v762 = vsel %vm760, %v756, 0
        %764 = vmatprep.subr.bf16.mxu0 0
        %765 = vmatpush1.bf16.msra.mxu0 %v762
        %766 = vmatprep.subr.bf16.mxu0 0
        %767 = vmatpush1.bf16.msra.mxu0 0
        %768 = vmatprep.subr.bf16.mxu0 0
        %769 = vmatpush1.bf16.msra.mxu0 0
        %770 = vmatprep.subr.bf16.mxu0 0
        %771 = vmatpush1.bf16.msra.mxu0 0
        %772 = vmatprep.subr.bf16.mxu0 0
        %773 = vmatpush1.bf16.msra.mxu0 0
        %774 = vmatprep.subr.bf16.mxu0 0
        %775 = vmatpush1.bf16.msra.mxu0 0
        %776 = vmatprep.subr.bf16.mxu0 0
        %777 = vmatpush1.bf16.msra.mxu0 0
        %778 = vmatprep.subr.bf16.mxu0 0
        %779 = vmatpush1.bf16.msra.mxu0 0
        %780 = vmatprep.subr.bf16.mxu0 0
        %781 = vmatpush1.bf16.msra.mxu0 0
        %782 = vmatprep.subr.bf16.mxu0 0
        %783 = vmatpush1.bf16.msra.mxu0 0
        %784 = vmatprep.subr.bf16.mxu0 0
        %785 = vmatpush1.bf16.msra.mxu0 0
        %786 = vmatprep.subr.bf16.mxu0 0
        %787 = vmatpush1.bf16.msra.mxu0 0
        %788 = vmatprep.subr.bf16.mxu0 0
        %789 = vmatpush1.bf16.msra.mxu0 0
        %790 = vmatprep.subr.bf16.mxu0 0
        %791 = vmatpush1.bf16.msra.mxu0 0
        %792 = vmatprep.subr.bf16.mxu0 0
        %793 = vmatpush1.bf16.msra.mxu0 0
        %794 = vmatprep.subr.bf16.mxu0 0
        %795 = vmatpush1.bf16.msra.mxu0 0
        %796 = vmatprep.mubr.bf16.mxu0 0
        %797 = vmatmul.mubr.bf16.gmra.mrb[0].mxu0 %v758
        %v798 = vpop.f32.mrb[0].mxu0
        %v799 = vadd.f32 0.0, %v798
        %v800 = vpop.f32.mrb[0].mxu0
        %v801 = vpop.f32.mrb[0].mxu0
        %v802 = vpop.f32.mrb[0].mxu0
        %803 = vdwg.mxu0
        %804 = vst.msk [vmem:[#allocation2] sm:$0xff] %vm695, %v799
        %806 = vrot.lane.b32.xlu0 %v693, 120
        %v807 = vpop.permute.xlu0 %806
        %808 = vrot.lane.b32.xlu0 %v694, 120
        %v809 = vpop.permute.xlu0 %808
        %v811 = vsel %vm695, %v807, 0
        %v814 = vsel %vm695, %v809, 0
        %816 = vmatprep.subr.bf16.mxu0 0
        %817 = vmatpush1.bf16.xpose.msra.mxu0 %v814
        %818 = vmatprep.subr.bf16.mxu0 0
        %819 = vmatpush1.bf16.xpose.msra.mxu0 0
        %820 = vmatprep.subr.bf16.mxu0 0
        %821 = vmatpush1.bf16.xpose.msra.mxu0 0
        %822 = vmatprep.subr.bf16.mxu0 0
        %823 = vmatpush1.bf16.xpose.msra.mxu0 0
        %824 = vmatprep.subr.bf16.mxu0 0
        %825 = vmatpush1.bf16.xpose.msra.mxu0 0
        %826 = vmatprep.subr.bf16.mxu0 0
        %827 = vmatpush1.bf16.xpose.msra.mxu0 0
        %828 = vmatprep.subr.bf16.mxu0 0
        %829 = vmatpush1.bf16.xpose.msra.mxu0 0
        %830 = vmatprep.subr.bf16.mxu0 0
        %831 = vmatpush1.bf16.xpose.msra.mxu0 0
        %832 = vmatprep.subr.bf16.mxu0 0
        %833 = vmatpush1.bf16.xpose.msra.mxu0 0
        %834 = vmatprep.subr.bf16.mxu0 0
        %835 = vmatpush1.bf16.xpose.msra.mxu0 0
        %836 = vmatprep.subr.bf16.mxu0 0
        %837 = vmatpush1.bf16.xpose.msra.mxu0 0
        %838 = vmatprep.subr.bf16.mxu0 0
        %839 = vmatpush1.bf16.xpose.msra.mxu0 0
        %840 = vmatprep.subr.bf16.mxu0 0
        %841 = vmatpush1.bf16.xpose.msra.mxu0 0
        %842 = vmatprep.subr.bf16.mxu0 0
        %843 = vmatpush1.bf16.xpose.msra.mxu0 0
        %844 = vmatprep.subr.bf16.mxu0 0
        %845 = vmatpush1.bf16.xpose.msra.mxu0 0
        %846 = vmatprep.subr.bf16.mxu0 0
        %847 = vmatpush1.bf16.xpose.msra.mxu0 0
        %848 = vmatprep.mubr.bf16.mxu0 0
        %849 = vmatmul.mubr.bf16.gmra.mrb[0].mxu0 %v811
        %v850 = vpop.f32.mrb[0].mxu0
        %v851 = vadd.f32 0.0, %v850
        %v852 = vpop.f32.mrb[0].mxu0
        %v853 = vpop.f32.mrb[0].mxu0
        %v854 = vpop.f32.mrb[0].mxu0
        %855 = vdwg.mxu0
        %v856 = vsel %vm695, %v851, -inf
        %857 = vmax.xlane.f32.xlu0 %v856
        %v858 = vpop.xlane.xlu0 %857
        %v859 = vsub.f32 %v851, %v858
        %v860 = vmul.f32 %v859, 1.442695
        %v861 = vpow.pop %v860
        %v862 = vsel %vm695, %v861, 0.0
        %863 = vadd.xlane.f32.xlu0 %v862
        %v864 = vpop.xlane.xlu0 %863
        %v865 = vrcp.pop %v864
        %v866 = vmul.f32 %v861, %v865
        %v867 = vpack.c.bf16 %v866, %v866
        %868 = vrot.lane.b32.xlu0 %v694, 88
        %v869 = vpop.permute.xlu0 %868
        %v871 = vsel %vm695, %v867, 0
        %v874 = vsel %vm760, %v869, 0
        %876 = vmatprep.subr.bf16.mxu0 0
        %877 = vmatpush1.bf16.msra.mxu0 %v874
        %878 = vmatprep.subr.bf16.mxu0 0
        %879 = vmatpush1.bf16.msra.mxu0 0
        %880 = vmatprep.subr.bf16.mxu0 0
        %881 = vmatpush1.bf16.msra.mxu0 0
        %882 = vmatprep.subr.bf16.mxu0 0
        %883 = vmatpush1.bf16.msra.mxu0 0
        %884 = vmatprep.subr.bf16.mxu0 0
        %885 = vmatpush1.bf16.msra.mxu0 0
        %886 = vmatprep.subr.bf16.mxu0 0
        %887 = vmatpush1.bf16.msra.mxu0 0
        %888 = vmatprep.subr.bf16.mxu0 0
        %889 = vmatpush1.bf16.msra.mxu0 0
        %890 = vmatprep.subr.bf16.mxu0 0
        %891 = vmatpush1.bf16.msra.mxu0 0
        %892 = vmatprep.subr.bf16.mxu0 0
        %893 = vmatpush1.bf16.msra.mxu0 0
        %894 = vmatprep.subr.bf16.mxu0 0
        %895 = vmatpush1.bf16.msra.mxu0 0
        %896 = vmatprep.subr.bf16.mxu0 0
        %897 = vmatpush1.bf16.msra.mxu0 0
        %898 = vmatprep.subr.bf16.mxu0 0
        %899 = vmatpush1.bf16.msra.mxu0 0
        %900 = vmatprep.subr.bf16.mxu0 0
        %901 = vmatpush1.bf16.msra.mxu0 0
        %902 = vmatprep.subr.bf16.mxu0 0
        %903 = vmatpush1.bf16.msra.mxu0 0
        %904 = vmatprep.subr.bf16.mxu0 0
        %905 = vmatpush1.bf16.msra.mxu0 0
        %906 = vmatprep.subr.bf16.mxu0 0
        %907 = vmatpush1.bf16.msra.mxu0 0
        %908 = vmatprep.mubr.bf16.mxu0 0
        %909 = vmatmul.mubr.bf16.gmra.mrb[0].mxu0 %v871
        %v910 = vpop.f32.mrb[0].mxu0
        %v911 = vadd.f32 0.0, %v910
        %v912 = vpop.f32.mrb[0].mxu0
        %v913 = vpop.f32.mrb[0].mxu0
        %v914 = vpop.f32.mrb[0].mxu0
        %915 = vdwg.mxu0
        %917 = vrot.lane.b32.xlu0 %v911, 8
        %v918 = vpop.permute.xlu0 %917
        %vm920 = vcmask 130112
        %921 = vst.msk [vmem:[#allocation2] sm:$0xff] %vm920, %v918
        %922 = vrot.lane.b32.xlu0 %v693, 112
        %v923 = vpop.permute.xlu0 %922
        %924 = vrot.lane.b32.xlu0 %v694, 112
        %v925 = vpop.permute.xlu0 %924
        %v927 = vsel %vm695, %v923, 0
        %v930 = vsel %vm695, %v925, 0
        %932 = vmatprep.subr.bf16.mxu0 0
        %933 = vmatpush1.bf16.xpose.msra.mxu0 %v930
        %934 = vmatprep.subr.bf16.mxu0 0
        %935 = vmatpush1.bf16.xpose.msra.mxu0 0
        %936 = vmatprep.subr.bf16.mxu0 0
        %937 = vmatpush1.bf16.xpose.msra.mxu0 0
        %938 = vmatprep.subr.bf16.mxu0 0
        %939 = vmatpush1.bf16.xpose.msra.mxu0 0
        %940 = vmatprep.subr.bf16.mxu0 0
        %941 = vmatpush1.bf16.xpose.msra.mxu0 0
        %942 = vmatprep.subr.bf16.mxu0 0
        %943 = vmatpush1.bf16.xpose.msra.mxu0 0
        %944 = vmatprep.subr.bf16.mxu0 0
        %945 = vmatpush1.bf16.xpose.msra.mxu0 0
        %946 = vmatprep.subr.bf16.mxu0 0
        %947 = vmatpush1.bf16.xpose.msra.mxu0 0
        %948 = vmatprep.subr.bf16.mxu0 0
        %949 = vmatpush1.bf16.xpose.msra.mxu0 0
        %950 = vmatprep.subr.bf16.mxu0 0
        %951 = vmatpush1.bf16.xpose.msra.mxu0 0
        %952 = vmatprep.subr.bf16.mxu0 0
        %953 = vmatpush1.bf16.xpose.msra.mxu0 0
        %954 = vmatprep.subr.bf16.mxu0 0
        %955 = vmatpush1.bf16.xpose.msra.mxu0 0
        %956 = vmatprep.subr.bf16.mxu0 0
        %957 = vmatpush1.bf16.xpose.msra.mxu0 0
        %958 = vmatprep.subr.bf16.mxu0 0
        %959 = vmatpush1.bf16.xpose.msra.mxu0 0
        %960 = vmatprep.subr.bf16.mxu0 0
        %961 = vmatpush1.bf16.xpose.msra.mxu0 0
        %962 = vmatprep.subr.bf16.mxu0 0
        %963 = vmatpush1.bf16.xpose.msra.mxu0 0
        %964 = vmatprep.mubr.bf16.mxu0 0
        %965 = vmatmul.mubr.bf16.gmra.mrb[0].mxu0 %v927
        %v966 = vpop.f32.mrb[0].mxu0
        %v967 = vadd.f32 0.0, %v966
        %v968 = vpop.f32.mrb[0].mxu0
        %v969 = vpop.f32.mrb[0].mxu0
        %v970 = vpop.f32.mrb[0].mxu0
        %971 = vdwg.mxu0
        %v972 = vsel %vm695, %v967, -inf
        %973 = vmax.xlane.f32.xlu0 %v972
        %v974 = vpop.xlane.xlu0 %973
        %v975 = vsub.f32 %v967, %v974
        %v976 = vmul.f32 %v975, 1.442695
        %v977 = vpow.pop %v976
        %v978 = vsel %vm695, %v977, 0.0
        %979 = vadd.xlane.f32.xlu0 %v978
        %v980 = vpop.xlane.xlu0 %979
        %v981 = vrcp.pop %v980
        %v982 = vmul.f32 %v977, %v981
        %v983 = vpack.c.bf16 %v982, %v982
        %984 = vrot.lane.b32.xlu0 %v694, 80
        %v985 = vpop.permute.xlu0 %984
        %v987 = vsel %vm695, %v983, 0
        %v990 = vsel %vm760, %v985, 0
        %992 = vmatprep.subr.bf16.mxu0 0
        %993 = vmatpush1.bf16.msra.mxu0 %v990
        %994 = vmatprep.subr.bf16.mxu0 0
        %995 = vmatpush1.bf16.msra.mxu0 0
        %996 = vmatprep.subr.bf16.mxu0 0
        %997 = vmatpush1.bf16.msra.mxu0 0
        %998 = vmatprep.subr.bf16.mxu0 0
        %999 = vmatpush1.bf16.msra.mxu0 0
        %1000 = vmatprep.subr.bf16.mxu0 0
        %1001 = vmatpush1.bf16.msra.mxu0 0
        %1002 = vmatprep.subr.bf16.mxu0 0
        %1003 = vmatpush1.bf16.msra.mxu0 0
        %1004 = vmatprep.subr.bf16.mxu0 0
        %1005 = vmatpush1.bf16.msra.mxu0 0
        %1006 = vmatprep.subr.bf16.mxu0 0
        %1007 = vmatpush1.bf16.msra.mxu0 0
        %1008 = vmatprep.subr.bf16.mxu0 0
        %1009 = vmatpush1.bf16.msra.mxu0 0
        %1010 = vmatprep.subr.bf16.mxu0 0
        %1011 = vmatpush1.bf16.msra.mxu0 0
        %1012 = vmatprep.subr.bf16.mxu0 0
        %1013 = vmatpush1.bf16.msra.mxu0 0
        %1014 = vmatprep.subr.bf16.mxu0 0
        %1015 = vmatpush1.bf16.msra.mxu0 0
        %1016 = vmatprep.subr.bf16.mxu0 0
        %1017 = vmatpush1.bf16.msra.mxu0 0
        %1018 = vmatprep.subr.bf16.mxu0 0
        %1019 = vmatpush1.bf16.msra.mxu0 0
        %1020 = vmatprep.subr.bf16.mxu0 0
        %1021 = vmatpush1.bf16.msra.mxu0 0
        %1022 = vmatprep.subr.bf16.mxu0 0
        %1023 = vmatpush1.bf16.msra.mxu0 0
        %1024 = vmatprep.mubr.bf16.mxu0 0
        %1025 = vmatmul.mubr.bf16.gmra.mrb[0].mxu0 %v987
        %v1026 = vpop.f32.mrb[0].mxu0
        %v1027 = vadd.f32 0.0, %v1026
        %v1028 = vpop.f32.mrb[0].mxu0
        %v1029 = vpop.f32.mrb[0].mxu0
        %v1030 = vpop.f32.mrb[0].mxu0
        %1031 = vdwg.mxu0
        %1033 = vrot.lane.b32.xlu0 %v1027, 16
        %v1034 = vpop.permute.xlu0 %1033
        %vm1036 = vcmask 195712
        %1037 = vst.msk [vmem:[#allocation2] sm:$0xff] %vm1036, %v1034
        %1038 = vrot.lane.b32.xlu0 %v693, 104
        %v1039 = vpop.permute.xlu0 %1038
        %1040 = vrot.lane.b32.xlu0 %v694, 104
        %v1041 = vpop.permute.xlu0 %1040
        %v1043 = vsel %vm695, %v1039, 0
        %v1046 = vsel %vm695, %v1041, 0
        %1048 = vmatprep.subr.bf16.mxu0 0
        %1049 = vmatpush1.bf16.xpose.msra.mxu0 %v1046
        %1050 = vmatprep.subr.bf16.mxu0 0
        %1051 = vmatpush1.bf16.xpose.msra.mxu0 0
        %1052 = vmatprep.subr.bf16.mxu0 0
        %1053 = vmatpush1.bf16.xpose.msra.mxu0 0
        %1054 = vmatprep.subr.bf16.mxu0 0
        %1055 = vmatpush1.bf16.xpose.msra.mxu0 0
        %1056 = vmatprep.subr.bf16.mxu0 0
        %1057 = vmatpush1.bf16.xpose.msra.mxu0 0
        %1058 = vmatprep.subr.bf16.mxu0 0
        %1059 = vmatpush1.bf16.xpose.msra.mxu0 0
        %1060 = vmatprep.subr.bf16.mxu0 0
        %1061 = vmatpush1.bf16.xpose.msra.mxu0 0
        %1062 = vmatprep.subr.bf16.mxu0 0
        %1063 = vmatpush1.bf16.xpose.msra.mxu0 0
        %1064 = vmatprep.subr.bf16.mxu0 0
        %1065 = vmatpush1.bf16.xpose.msra.mxu0 0
        %1066 = vmatprep.subr.bf16.mxu0 0
        %1067 = vmatpush1.bf16.xpose.msra.mxu0 0
        %1068 = vmatprep.subr.bf16.mxu0 0
        %1069 = vmatpush1.bf16.xpose.msra.mxu0 0
        %1070 = vmatprep.subr.bf16.mxu0 0
        %1071 = vmatpush1.bf16.xpose.msra.mxu0 0
        %1072 = vmatprep.subr.bf16.mxu0 0
        %1073 = vmatpush1.bf16.xpose.msra.mxu0 0
        %1074 = vmatprep.subr.bf16.mxu0 0
        %1075 = vmatpush1.bf16.xpose.msra.mxu0 0
        %1076 = vmatprep.subr.bf16.mxu0 0
        %1077 = vmatpush1.bf16.xpose.msra.mxu0 0
        %1078 = vmatprep.subr.bf16.mxu0 0
        %1079 = vmatpush1.bf16.xpose.msra.mxu0 0
        %1080 = vmatprep.mubr.bf16.mxu0 0
        %1081 = vmatmul.mubr.bf16.gmra.mrb[0].mxu0 %v1043
        %v1082 = vpop.f32.mrb[0].mxu0
        %v1083 = vadd.f32 0.0, %v1082
        %v1084 = vpop.f32.mrb[0].mxu0
        %v1085 = vpop.f32.mrb[0].mxu0
        %v1086 = vpop.f32.mrb[0].mxu0
        %1087 = vdwg.mxu0
        %v1088 = vsel %vm695, %v1083, -inf
        %1089 = vmax.xlane.f32.xlu0 %v1088
        %v1090 = vpop.xlane.xlu0 %1089
        %v1091 = vsub.f32 %v1083, %v1090
        %v1092 = vmul.f32 %v1091, 1.442695
        %v1093 = vpow.pop %v1092
        %v1094 = vsel %vm695, %v1093, 0.0
        %1095 = vadd.xlane.f32.xlu0 %v1094
        %v1096 = vpop.xlane.xlu0 %1095
        %v1097 = vrcp.pop %v1096
        %v1098 = vmul.f32 %v1093, %v1097
        %v1099 = vpack.c.bf16 %v1098, %v1098
        %1100 = vrot.lane.b32.xlu0 %v694, 72
        %v1101 = vpop.permute.xlu0 %1100
        %v1103 = vsel %vm695, %v1099, 0
        %v1106 = vsel %vm760, %v1101, 0
        %1108 = vmatprep.subr.bf16.mxu0 0
        %1109 = vmatpush1.bf16.msra.mxu0 %v1106
        %1110 = vmatprep.subr.bf16.mxu0 0
        %1111 = vmatpush1.bf16.msra.mxu0 0
        %1112 = vmatprep.subr.bf16.mxu0 0
        %1113 = vmatpush1.bf16.msra.mxu0 0
        %1114 = vmatprep.subr.bf16.mxu0 0
        %1115 = vmatpush1.bf16.msra.mxu0 0
        %1116 = vmatprep.subr.bf16.mxu0 0
        %1117 = vmatpush1.bf16.msra.mxu0 0
        %1118 = vmatprep.subr.bf16.mxu0 0
        %1119 = vmatpush1.bf16.msra.mxu0 0
        %1120 = vmatprep.subr.bf16.mxu0 0
        %1121 = vmatpush1.bf16.msra.mxu0 0
        %1122 = vmatprep.subr.bf16.mxu0 0
        %1123 = vmatpush1.bf16.msra.mxu0 0
        %1124 = vmatprep.subr.bf16.mxu0 0
        %1125 = vmatpush1.bf16.msra.mxu0 0
        %1126 = vmatprep.subr.bf16.mxu0 0
        %1127 = vmatpush1.bf16.msra.mxu0 0
        %1128 = vmatprep.subr.bf16.mxu0 0
        %1129 = vmatpush1.bf16.msra.mxu0 0
        %1130 = vmatprep.subr.bf16.mxu0 0
        %1131 = vmatpush1.bf16.msra.mxu0 0
        %1132 = vmatprep.subr.bf16.mxu0 0
        %1133 = vmatpush1.bf16.msra.mxu0 0
        %1134 = vmatprep.subr.bf16.mxu0 0
        %1135 = vmatpush1.bf16.msra.mxu0 0
        %1136 = vmatprep.subr.bf16.mxu0 0
        %1137 = vmatpush1.bf16.msra.mxu0 0
        %1138 = vmatprep.subr.bf16.mxu0 0
        %1139 = vmatpush1.bf16.msra.mxu0 0
        %1140 = vmatprep.mubr.bf16.mxu0 0
        %1141 = vmatmul.mubr.bf16.gmra.mrb[0].mxu0 %v1103
        %v1142 = vpop.f32.mrb[0].mxu0
        %v1143 = vadd.f32 0.0, %v1142
        %v1144 = vpop.f32.mrb[0].mxu0
        %v1145 = vpop.f32.mrb[0].mxu0
        %v1146 = vpop.f32.mrb[0].mxu0
        %1147 = vdwg.mxu0
        %1149 = vrot.lane.b32.xlu0 %v1143, 24
        %v1150 = vpop.permute.xlu0 %1149
        %vm1152 = vcmask 261312
        %1153 = vst.msk [vmem:[#allocation2] sm:$0xff] %vm1152, %v1150
        %v1154 = vld [vmem:[#allocation2] sm:$0xff]
        %v1155 = vpack.c.bf16 %v1154, %v1154
        %v1156 = vld [vmem:[%s7] sm:$0xf]
        %v1157 = vld [vmem:[%s7 + $0x4] sm:$0xf]
        %v1158 = vld [vmem:[%s7 + $0x8] sm:$0xf]
        %v1159 = vld [vmem:[%s7 + $0xc] sm:$0xf]
        %v1160 = vld [vmem:[%s8] sm:$0x1]
        %v1162 = vlaneseq
        %v1163 = vshrl.u32 %v1162, 7
        %v1164 = vsub.s32 0, %v1163
        %v1165 = vrot.slane %v1160, %v1164
        %v1171 = vunpack.c.l.b16 %v1156
        %v1172 = vunpack.c.l.b16 %v1157
        %v1173 = vunpack.c.l.b16 %v1158
        %v1174 = vunpack.c.l.b16 %v1159
        %v1175 = vpack.c.b16 %v1172, %v1171
        %v1176 = vpack.c.b16 %v1174, %v1173
        %v1180 = vsel %vm509, %v1155, 0
        %1182 = vmatprep.subr.bf16.mxu0 0
        %1183 = vmatpush1.bf16.msra.mxu0 %v1175
        %1184 = vmatprep.subr.bf16.mxu0 0
        %1185 = vmatpush1.bf16.msra.mxu0 %v1176
        %1186 = vmatprep.subr.bf16.mxu0 0
        %1187 = vmatpush1.bf16.msra.mxu0 0
        %1188 = vmatprep.subr.bf16.mxu0 0
        %1189 = vmatpush1.bf16.msra.mxu0 0
        %1190 = vmatprep.subr.bf16.mxu0 0
        %1191 = vmatpush1.bf16.msra.mxu0 0
        %1192 = vmatprep.subr.bf16.mxu0 0
        %1193 = vmatpush1.bf16.msra.mxu0 0
        %1194 = vmatprep.subr.bf16.mxu0 0
        %1195 = vmatpush1.bf16.msra.mxu0 0
        %1196 = vmatprep.subr.bf16.mxu0 0
        %1197 = vmatpush1.bf16.msra.mxu0 0
        %1198 = vmatprep.subr.bf16.mxu0 0
        %1199 = vmatpush1.bf16.msra.mxu0 0
        %1200 = vmatprep.subr.bf16.mxu0 0
        %1201 = vmatpush1.bf16.msra.mxu0 0
        %1202 = vmatprep.subr.bf16.mxu0 0
        %1203 = vmatpush1.bf16.msra.mxu0 0
        %1204 = vmatprep.subr.bf16.mxu0 0
        %1205 = vmatpush1.bf16.msra.mxu0 0
        %1206 = vmatprep.subr.bf16.mxu0 0
        %1207 = vmatpush1.bf16.msra.mxu0 0
        %1208 = vmatprep.subr.bf16.mxu0 0
        %1209 = vmatpush1.bf16.msra.mxu0 0
        %1210 = vmatprep.subr.bf16.mxu0 0
        %1211 = vmatpush1.bf16.msra.mxu0 0
        %1212 = vmatprep.subr.bf16.mxu0 0
        %1213 = vmatpush1.bf16.msra.mxu0 0
        %1214 = vmatprep.mubr.bf16.mxu0 0
        %1215 = vmatmul.mubr.bf16.gmra.mrb[0].mxu0 %v1180
        %v1216 = vpop.f32.mrb[0].mxu0
        %v1217 = vadd.f32 %v1165, %v1216
        %v1218 = vpop.f32.mrb[0].mxu0
        %v1219 = vpop.f32.mrb[0].mxu0
        %v1220 = vpop.f32.mrb[0].mxu0
        %1221 = vdwg.mxu0
        %v1222 = vadd.f32 %v608, %v1217
        %v1223 = vld [vmem:[%s9] sm:$0x1]
        %v1224 = vld [vmem:[%s10] sm:$0x1]
        %v1225 = vsel %vm509, %v1222, 0.0
        %1226 = vadd.xlane.f32.xlu0 %v1225
        %v1227 = vpop.xlane.xlu0 %1226
        %v1228 = vmul.f32 %v1227, %v513
        %v1229 = vmul.f32 %v1222, %v1222
        %v1230 = vsel %vm509, %v1229, 0.0
        %1231 = vadd.xlane.f32.xlu0 %v1230
        %v1232 = vpop.xlane.xlu0 %1231
        %v1233 = vmul.f32 %v1232, %v513
        %v1234 = vmul.f32 %v1228, %v1228
        %v1235 = vsub.f32 %v1233, %v1234
        %v1236 = vsub.f32 %v1222, %v1228
        %v1237 = vadd.f32 %v1235, 1e-05
        %v1238 = vrsqrt.pop %v1237
        %v1239 = vmul.f32 %v1236, %v1238
        %v1241 = vlaneseq
        %v1242 = vshrl.u32 %v1241, 7
        %v1243 = vsub.s32 0, %v1242
        %v1244 = vrot.slane %v1223, %v1243
        %v1246 = vmul.f32 %v1239, %v1244
        %v1248 = vlaneseq
        %v1249 = vshrl.u32 %v1248, 7
        %v1250 = vsub.s32 0, %v1249
        %v1251 = vrot.slane %v1224, %v1250
        %v1253 = vadd.f32 %v1246, %v1251
        %v1254 = vpack.c.bf16 %v1253, %v1253
        %v1255 = vld [vmem:[%s11] sm:$0xf]
        %v1256 = vld [vmem:[%s11 + $0x4] sm:$0xf]
        %v1257 = vld [vmem:[%s11 + $0x8] sm:$0xf]
        %v1258 = vld [vmem:[%s11 + $0xc] sm:$0xf]
        %v1259 = vld [vmem:[%s12] sm:$0x1]
        %v1261 = vlaneseq
        %v1262 = vshrl.u32 %v1261, 7
        %v1263 = vsub.s32 0, %v1262
        %v1264 = vrot.slane %v1259, %v1263
        %v1270 = vunpack.c.l.b16 %v1255
        %v1271 = vunpack.c.l.b16 %v1256
        %v1272 = vunpack.c.l.b16 %v1257
        %v1273 = vunpack.c.l.b16 %v1258
        %v1274 = vpack.c.b16 %v1271, %v1270
        %v1275 = vpack.c.b16 %v1273, %v1272
        %v1279 = vsel %vm509, %v1254, 0
        %1281 = vmatprep.subr.bf16.mxu0 0
        %1282 = vmatpush1.bf16.msra.mxu0 %v1274
        %1283 = vmatprep.subr.bf16.mxu0 0
        %1284 = vmatpush1.bf16.msra.mxu0 %v1275
        %1285 = vmatprep.subr.bf16.mxu0 0
        %1286 = vmatpush1.bf16.msra.mxu0 0
        %1287 = vmatprep.subr.bf16.mxu0 0
        %1288 = vmatpush1.bf16.msra.mxu0 0
        %1289 = vmatprep.subr.bf16.mxu0 0
        %1290 = vmatpush1.bf16.msra.mxu0 0
        %1291 = vmatprep.subr.bf16.mxu0 0
        %1292 = vmatpush1.bf16.msra.mxu0 0
        %1293 = vmatprep.subr.bf16.mxu0 0
        %1294 = vmatpush1.bf16.msra.mxu0 0
        %1295 = vmatprep.subr.bf16.mxu0 0
        %1296 = vmatpush1.bf16.msra.mxu0 0
        %1297 = vmatprep.subr.bf16.mxu0 0
        %1298 = vmatpush1.bf16.msra.mxu0 0
        %1299 = vmatprep.subr.bf16.mxu0 0
        %1300 = vmatpush1.bf16.msra.mxu0 0
        %1301 = vmatprep.subr.bf16.mxu0 0
        %1302 = vmatpush1.bf16.msra.mxu0 0
        %1303 = vmatprep.subr.bf16.mxu0 0
        %1304 = vmatpush1.bf16.msra.mxu0 0
        %1305 = vmatprep.subr.bf16.mxu0 0
        %1306 = vmatpush1.bf16.msra.mxu0 0
        %1307 = vmatprep.subr.bf16.mxu0 0
        %1308 = vmatpush1.bf16.msra.mxu0 0
        %1309 = vmatprep.subr.bf16.mxu0 0
        %1310 = vmatpush1.bf16.msra.mxu0 0
        %1311 = vmatprep.subr.bf16.mxu0 0
        %1312 = vmatpush1.bf16.msra.mxu0 0
        %1313 = vmatprep.mubr.bf16.mxu0 0
        %1314 = vmatmul.mubr.bf16.gmra.mrb[0].mxu0 %v1279
        %v1315 = vpop.f32.mrb[0].mxu0
        %v1316 = vadd.f32 %v1264, %v1315
        %v1317 = vpop.f32.mrb[0].mxu0
        %v1318 = vpop.f32.mrb[0].mxu0
        %v1319 = vpop.f32.mrb[0].mxu0
        %1320 = vdwg.mxu0
        %v1321 = vmul.f32 %v1316, 0.5
        %v1322 = vmul.f32 %v1316, 0.70710677
        %v1323 = verf.f32.pop %v1322
        %v1324 = vadd.f32 %v1323, 1.0
        %v1325 = vmul.f32 %v1321, %v1324
        %v1326 = vpack.c.bf16 %v1325, %v1325
        %v1327 = vld [vmem:[%s13] sm:$0xf]
        %v1328 = vld [vmem:[%s13 + $0x4] sm:$0xf]
        %v1329 = vld [vmem:[%s13 + $0x8] sm:$0xf]
        %v1330 = vld [vmem:[%s13 + $0xc] sm:$0xf]
        %v1331 = vld [vmem:[%s13 + $0x10] sm:$0xf]
        %v1332 = vld [vmem:[%s13 + $0x14] sm:$0xf]
        %v1333 = vld [vmem:[%s13 + $0x18] sm:$0xf]
        %v1334 = vld [vmem:[%s13 + $0x1c] sm:$0xf]
        %v1335 = vld [vmem:[%s13 + $0x20] sm:$0xf]
        %v1336 = vld [vmem:[%s13 + $0x24] sm:$0xf]
        %v1337 = vld [vmem:[%s13 + $0x28] sm:$0xf]
        %v1338 = vld [vmem:[%s13 + $0x2c] sm:$0xf]
        %v1339 = vld [vmem:[%s13 + $0x30] sm:$0xf]
        %v1340 = vld [vmem:[%s13 + $0x34] sm:$0xf]
        %v1341 = vld [vmem:[%s13 + $0x38] sm:$0xf]
        %v1342 = vld [vmem:[%s13 + $0x3c] sm:$0xf]
        %v1343 = vld [vmem:[%s14] sm:$0x1]
        %v1345 = vlaneseq
        %v1346 = vshrl.u32 %v1345, 7
        %v1347 = vsub.s32 0, %v1346
        %v1348 = vrot.slane %v1343, %v1347
        %v1366 = vunpack.c.l.b16 %v1327
        %v1367 = vunpack.c.l.b16 %v1328
        %v1368 = vunpack.c.l.b16 %v1329
        %v1369 = vunpack.c.l.b16 %v1330
        %v1370 = vunpack.c.l.b16 %v1331
        %v1371 = vunpack.c.l.b16 %v1332
        %v1372 = vunpack.c.l.b16 %v1333
        %v1373 = vunpack.c.l.b16 %v1334
        %v1374 = vunpack.c.l.b16 %v1335
        %v1375 = vunpack.c.l.b16 %v1336
        %v1376 = vunpack.c.l.b16 %v1337
        %v1377 = vunpack.c.l.b16 %v1338
        %v1378 = vunpack.c.l.b16 %v1339
        %v1379 = vunpack.c.l.b16 %v1340
        %v1380 = vunpack.c.l.b16 %v1341
        %v1381 = vunpack.c.l.b16 %v1342
        %v1382 = vpack.c.b16 %v1367, %v1366
        %v1383 = vpack.c.b16 %v1369, %v1368
        %v1384 = vpack.c.b16 %v1371, %v1370
        %v1385 = vpack.c.b16 %v1373, %v1372
        %v1386 = vpack.c.b16 %v1375, %v1374
        %v1387 = vpack.c.b16 %v1377, %v1376
        %v1388 = vpack.c.b16 %v1379, %v1378
        %v1389 = vpack.c.b16 %v1381, %v1380
        %1398 = vmatprep.subr.bf16.mxu0 0
        %1399 = vmatpush1.bf16.msra.mxu0 %v1382
        %1400 = vmatprep.subr.bf16.mxu0 0
        %1401 = vmatpush1.bf16.msra.mxu0 %v1383
        %1402 = vmatprep.subr.bf16.mxu0 0
        %1403 = vmatpush1.bf16.msra.mxu0 %v1384
        %1404 = vmatprep.subr.bf16.mxu0 0
        %1405 = vmatpush1.bf16.msra.mxu0 %v1385
        %1406 = vmatprep.subr.bf16.mxu0 0
        %1407 = vmatpush1.bf16.msra.mxu0 %v1386
        %1408 = vmatprep.subr.bf16.mxu0 0
        %1409 = vmatpush1.bf16.msra.mxu0 %v1387
        %1410 = vmatprep.subr.bf16.mxu0 0
        %1411 = vmatpush1.bf16.msra.mxu0 %v1388
        %1412 = vmatprep.subr.bf16.mxu0 0
        %1413 = vmatpush1.bf16.msra.mxu0 %v1389
        %1414 = vmatprep.subr.bf16.mxu0 0
        %1415 = vmatpush1.bf16.msra.mxu0 0
        %1416 = vmatprep.subr.bf16.mxu0 0
        %1417 = vmatpush1.bf16.msra.mxu0 0
        %1418 = vmatprep.subr.bf16.mxu0 0
        %1419 = vmatpush1.bf16.msra.mxu0 0
        %1420 = vmatprep.subr.bf16.mxu0 0
        %1421 = vmatpush1.bf16.msra.mxu0 0
        %1422 = vmatprep.subr.bf16.mxu0 0
        %1423 = vmatpush1.bf16.msra.mxu0 0
        %1424 = vmatprep.subr.bf16.mxu0 0
        %1425 = vmatpush1.bf16.msra.mxu0 0
        %1426 = vmatprep.subr.bf16.mxu0 0
        %1427 = vmatpush1.bf16.msra.mxu0 0
        %1428 = vmatprep.subr.bf16.mxu0 0
        %1429 = vmatpush1.bf16.msra.mxu0 0
        %1430 = vmatprep.mubr.bf16.mxu0 0
        %1431 = vmatmul.mubr.bf16.gmra.mrb[0].mxu0 %v1326
        %v1432 = vpop.f32.mrb[0].mxu0
        %v1433 = vadd.f32 %v1348, %v1432
        %v1434 = vpop.f32.mrb[0].mxu0
        %v1435 = vpop.f32.mrb[0].mxu0
        %v1436 = vpop.f32.mrb[0].mxu0
        %1437 = vdwg.mxu0
        %v1438 = vadd.f32 %v1222, %v1433
        %1439 = vst.msk [vmem:[%s499] sm:$0xff] %vm509, %v1438
        %s1440 = sand.u32 %s371, 1
        %s1441 = scalar_lea.sflag [#allocation4], %s1440
        %s1442 = sand.u32 %s371, 1
        %s1443 = smul.addr %s1442, 8
        %s1444 = scalar_lea.vmem [#allocation3], %s1443
        // Predicated region
        $region81: #{tpu_custom_call.1} parent=79 // pred_check
          %p1445 = pneg %p381
        $region82: #{tpu_custom_call.1} parent=79 // pred_check_branch
          %1447 = sbr.rel (%p1445) target = $region84
        $region83: #{tpu_custom_call.1} parent=79 // pred_region
          %s1449 = ssub.s32 128, 128
          %1450 = vsyncadd %s1441, %s1449
          %s1451 = sadd.s32 %s34, %s33
          %s1452 = smul.addr %s1451, 128
          %s1453 = scalar_lea.hbm %s15, %s1452
          %s1455 = sshll.u32 %s1444, 4
          %s1456 = int_to_ptr.vmem [resolvable:$true] %s1455
          %1458 = dma.vmem_to_hbm [thread:$0]  %s1456, 128, %s1453, %s1441
        $region84: #{tpu_custom_call.1} parent=79 // pred_fallthru
          _
      $region80: #{tpu_custom_call.1} parent=5 // pred_fallthru
        _
      %p1459 = scmp.le.s32.totalorder 2, %s24
      // Predicated region
      $region85: #{tpu_custom_call.1} parent=5 // pred_check
        %p1460 = pneg %p1459
      $region86: #{tpu_custom_call.1} parent=5 // pred_check_branch
        %1462 = sbr.rel (%p1460) target = $region88
      $region87: #{tpu_custom_call.1} parent=5 // pred_region
        %s1463 = ssub.s32 %s24, 2
        // Predicated region
        $region89: #{tpu_custom_call.1} parent=87 // pred_check
          %p1464 = pneg %p387
        $region90: #{tpu_custom_call.1} parent=87 // pred_check_branch
          %1466 = sbr.rel (%p1464) target = $region92
        $region91: #{tpu_custom_call.1} parent=87 // pred_region
          %s1467 = sand.u32 %s372, 1
          %s1468 = scalar_lea.sflag [#allocation4], %s1467
          %s1469 = sand.u32 %s372, 1
          %s1470 = smul.addr %s1469, 8
          %s1471 = scalar_lea.vmem [#allocation3], %s1470
          %1472 = dma.done %s1468, 128
        $region92: #{tpu_custom_call.1} parent=87 // pred_fallthru
          _
      $region88: #{tpu_custom_call.1} parent=5 // pred_fallthru
        _
    $region6: #{tpu_custom_call.1} parent=1 // loop_footer
      %s28 = sadd.s32 1, %s24
    $region7: #{tpu_custom_call.1} parent=1 // loop_footer_branch
      %23 = sbr.rel target = $region3
    $region8: #{tpu_custom_call.1} parent=1 // loop_exit
      _
    %1473 = vsyncpa [#allocation4], 1
    %s1474 = scalar_lea.sflag [#allocation4], 1
    %1475 = vsyncpa %s1474, 1

// kernel: tpu_custom_call.1
$region0: #{tpu_custom_call.1}
  #allocation0 [shape = 'u32[]', space=smem, size = 0x4, offset = 0x4, fixed_abs, tag = 'smem constant byte address 0x4 - core index']
  #allocation1 [shape = 'u32[144,128]{1,0:T(1,128)}', space=vmem, size = 0x12000, scoped, tag = 'internal scratch']
  #allocation2 [shape = 'f32[8,32]{1,0:T(8,128)}', space=vmem, size = 0x1000, scoped, tag = 'scratch operand']
  %s0 = inlined_call_operand.vmem [shape: f32[2,8,32], index: 0, kind: input, shape index: {}]
  %s1 = inlined_call_operand.vmem [shape: f32[1,32], index: 1, kind: input, shape index: {}]
  %s2 = inlined_call_operand.vmem [shape: f32[1,32], index: 2, kind: input, shape index: {}]
  %s3 = inlined_call_operand.vmem [shape: bf16[32,32], index: 3, kind: input, shape index: {}]
  %s4 = inlined_call_operand.vmem [shape: f32[1,32], index: 4, kind: input, shape index: {}]
  %s5 = inlined_call_operand.vmem [shape: bf16[32,64], index: 5, kind: input, shape index: {}]
  %s6 = inlined_call_operand.vmem [shape: f32[1,64], index: 6, kind: input, shape index: {}]
  %s7 = inlined_call_operand.vmem [shape: bf16[32,32], index: 7, kind: input, shape index: {}]
  %s8 = inlined_call_operand.vmem [shape: f32[1,32], index: 8, kind: input, shape index: {}]
  %s9 = inlined_call_operand.vmem [shape: f32[1,32], index: 9, kind: input, shape index: {}]
  %s10 = inlined_call_operand.vmem [shape: f32[1,32], index: 10, kind: input, shape index: {}]
  %s11 = inlined_call_operand.vmem [shape: bf16[32,128], index: 11, kind: input, shape index: {}]
  %s12 = inlined_call_operand.vmem [shape: f32[1,128], index: 12, kind: input, shape index: {}]
  %s13 = inlined_call_operand.vmem [shape: bf16[128,32], index: 13, kind: input, shape index: {}]
  %s14 = inlined_call_operand.vmem [shape: f32[1,32], index: 14, kind: input, shape index: {}]
  %s15 = inlined_call_operand.hbm [shape: f32[2,8,32], index: 15, kind: output, shape index: {}]
  %s16 = sld [smem:[#allocation0]]
  $region93: #{tpu_custom_call.1} parent=0
    _
  %s18 = ssub.s32 1, %s16
  %s19 = scalar_select 0, %s18, %s16
  $region1: #{tpu_custom_call.1} parent=0
    #allocation3 [shape = 'u8[8192]{0}', space=vmem, size = 0x2000, scoped, tag = 'output window, operand 0']
    #allocation4 [shape = 's32[2]{0}', space=sflag, size = 0x8, scoped, tag = 'scoped memory for tpu_custom_call.1']
    %20 = vsyncpa [#allocation4], 0
    %s21 = scalar_lea.sflag [#allocation4], 1
    %22 = vsyncpa %s21, 0
    loop: start=0, step=1, limit=4
    $region2: #{tpu_custom_call.1} parent=1 // loop_pre_header
      _
    $region3: #{tpu_custom_call.1} parent=1 // loop_header
      %s24 = sphi 0, %s28
      %p25 = scmp.ge.s32.totalorder %s24, 4
      %s31 = sphi 0, %s43
      %s32 = sphi 0, %s39
      %s33 = sphi 0, %s31
      %s34 = sphi 0, %s32
      %s35 = sphi 0, %s33
      %s36 = sphi 0, %s34
      %s46 = sphi 0, %s48
      %s49 = sphi 0, %s46
      %s50 = sphi 0, %s49
      %s66 = sphi 0, %s50
      %s70 = sphi 0, %s70
      %s72 = sphi 0, %s70
      %s73 = sphi 0, %s72
      %s87 = sphi 0, %s73
      %s91 = sphi 0, %s91
      %s93 = sphi 0, %s91
      %s94 = sphi 0, %s93
      %s108 = sphi 0, %s94
      %s112 = sphi 0, %s112
      %s114 = sphi 0, %s112
      %s115 = sphi 0, %s114
      %s129 = sphi 0, %s115
      %s133 = sphi 0, %s133
      %s135 = sphi 0, %s133
      %s136 = sphi 0, %s135
      %s150 = sphi 0, %s136
      %s154 = sphi 0, %s154
      %s156 = sphi 0, %s154
      %s157 = sphi 0, %s156
      %s171 = sphi 0, %s157
      %s175 = sphi 0, %s175
      %s177 = sphi 0, %s175
      %s178 = sphi 0, %s177
      %s192 = sphi 0, %s178
      %s196 = sphi 0, %s196
      %s198 = sphi 0, %s196
      %s199 = sphi 0, %s198
      %s213 = sphi 0, %s199
      %s217 = sphi 0, %s217
      %s219 = sphi 0, %s217
      %s220 = sphi 0, %s219
      %s234 = sphi 0, %s220
      %s238 = sphi 0, %s238
      %s240 = sphi 0, %s238
      %s241 = sphi 0, %s240
      %s255 = sphi 0, %s241
      %s259 = sphi 0, %s259
      %s261 = sphi 0, %s259
      %s262 = sphi 0, %s261
      %s276 = sphi 0, %s262
      %s280 = sphi 0, %s280
      %s282 = sphi 0, %s280
      %s283 = sphi 0, %s282
      %s297 = sphi 0, %s283
      %s301 = sphi 0, %s301
      %s303 = sphi 0, %s301
      %s304 = sphi 0, %s303
      %s318 = sphi 0, %s304
      %s322 = sphi 0, %s322
      %s324 = sphi 0, %s322
      %s325 = sphi 0, %s324
      %s339 = sphi 0, %s325
      %s343 = sphi 0, %s343
      %s345 = sphi 0, %s343
      %s346 = sphi 0, %s345
      %s360 = sphi 0, %s346
      %s368 = sphi 0, %s370
      %s371 = sphi 0, %s368
      %s372 = sphi 0, %s371
      %s388 = sphi 0, %s372
    $region4: #{tpu_custom_call.1} parent=1 // loop_header_branch
      %27 = sbr.rel (%p25) target = $region8
    $region5: #{tpu_custom_call.1} parent=1 // loop_body
      %s29 = ssub.s32 %s24, 1
      %s30 = ssub.s32 %s24, 2
      %s37 = sadd.s32 1, %s32
      %p38 = scmp.ge.s32.totalorder %s37, 1
      %s39 = scalar_select %p38, 0, %s37
      %s40 = sadd.s32 1, %s31
      %s41 = scalar_select %p38, %s40, %s31
      %p42 = scmp.ge.s32.totalorder %s41, 2
      %s43 = scalar_select %p42, 0, %s41
      %s44 = ssub.s32 %s31, %s43
      %p45 = scmp.eq.s32.totalorder %s44, 0
      %s47 = sadd.s32 %s46, 1
      %s48 = scalar_select %p45, %s46, %s47
      %p51 = pneg %p45
      %p52 = scmp.eq.s32.totalorder %s24, 1
      %p53 = por %p51, %p52
      %p54 = scmp.ne.s32.totalorder %s46, %s49
      %p55 = scmp.eq.s32.totalorder %s24, 0
      %p56 = por %p54, %p55
      %p57 = scmp.ne.s32.totalorder %s46, %s49
      %p58 = scmp.eq.s32.totalorder %s29, 1
      %p59 = por %p57, %p58
      %p60 = scmp.ne.s32.totalorder %s49, %s50
      %p61 = scmp.eq.s32.totalorder %s29, 0
      %p62 = por %p60, %p61
      %p63 = scmp.ne.s32.totalorder %s49, %s50
      %p64 = scmp.eq.s32.totalorder %s30, 1
      %p65 = por %p63, %p64
      %p67 = scmp.ne.s32.totalorder %s50, %s66
      %p68 = scmp.eq.s32.totalorder %s30, 0
      %p69 = por %p67, %p68
      %s71 = sadd.s32 %s70, 1
      %p74 = scmp.eq.s32.totalorder %s24, 1
      %p75 = scmp.ne.s32.totalorder %s70, %s72
      %p76 = scmp.eq.s32.totalorder %s24, 0
      %p77 = por %p75, %p76
      %p78 = scmp.ne.s32.totalorder %s70, %s72
      %p79 = scmp.eq.s32.totalorder %s29, 1
      %p80 = por %p78, %p79
      %p81 = scmp.ne.s32.totalorder %s72, %s73
      %p82 = scmp.eq.s32.totalorder %s29, 0
      %p83 = por %p81, %p82
      %p84 = scmp.ne.s32.totalorder %s72, %s73
      %p85 = scmp.eq.s32.totalorder %s30, 1
      %p86 = por %p84, %p85
      %p88 = scmp.ne.s32.totalorder %s73, %s87
      %p89 = scmp.eq.s32.totalorder %s30, 0
      %p90 = por %p88, %p89
      %s92 = sadd.s32 %s91, 1
      %p95 = scmp.eq.s32.totalorder %s24, 1
      %p96 = scmp.ne.s32.totalorder %s91, %s93
      %p97 = scmp.eq.s32.totalorder %s24, 0
      %p98 = por %p96, %p97
      %p99 = scmp.ne.s32.totalorder %s91, %s93
      %p100 = scmp.eq.s32.totalorder %s29, 1
      %p101 = por %p99, %p100
      %p102 = scmp.ne.s32.totalorder %s93, %s94
      %p103 = scmp.eq.s32.totalorder %s29, 0
      %p104 = por %p102, %p103
      %p105 = scmp.ne.s32.totalorder %s93, %s94
      %p106 = scmp.eq.s32.totalorder %s30, 1
      %p107 = por %p105, %p106
      %p109 = scmp.ne.s32.totalorder %s94, %s108
      %p110 = scmp.eq.s32.totalorder %s30, 0
      %p111 = por %p109, %p110
      %s113 = sadd.s32 %s112, 1
      %p116 = scmp.eq.s32.totalorder %s24, 1
      %p117 = scmp.ne.s32.totalorder %s112, %s114
      %p118 = scmp.eq.s32.totalorder %s24, 0
      %p119 = por %p117, %p118
      %p120 = scmp.ne.s32.totalorder %s112, %s114
      %p121 = scmp.eq.s32.totalorder %s29, 1
      %p122 = por %p120, %p121
      %p123 = scmp.ne.s32.totalorder %s114, %s115
      %p124 = scmp.eq.s32.totalorder %s29, 0
      %p125 = por %p123, %p124
      %p126 = scmp.ne.s32.totalorder %s114, %s115
      %p127 = scmp.eq.s32.totalorder %s30, 1
      %p128 = por %p126, %p127
      %p130 = scmp.ne.s32.totalorder %s115, %s129
      %p131 = scmp.eq.s32.totalorder %s30, 0
      %p132 = por %p130, %p131
      %s134 = sadd.s32 %s133, 1
      %p137 = scmp.eq.s32.totalorder %s24, 1
      %p138 = scmp.ne.s32.totalorder %s133, %s135
      %p139 = scmp.eq.s32.totalorder %s24, 0
      %p140 = por %p138, %p139
      %p141 = scmp.ne.s32.totalorder %s133, %s135
      %p142 = scmp.eq.s32.totalorder %s29, 1
      %p143 = por %p141, %p142
      %p144 = scmp.ne.s32.totalorder %s135, %s136
      %p145 = scmp.eq.s32.totalorder %s29, 0
      %p146 = por %p144, %p145
      %p147 = scmp.ne.s32.totalorder %s135, %s136
      %p148 = scmp.eq.s32.totalorder %s30, 1
      %p149 = por %p147, %p148
      %p151 = scmp.ne.s32.totalorder %s136, %s150
      %p152 = scmp.eq.s32.totalorder %s30, 0
      %p153 = por %p151, %p152
      %s155 = sadd.s32 %s154, 1
      %p158 = scmp.eq.s32.totalorder %s24, 1
      %p159 = scmp.ne.s32.totalorder %s154, %s156
      %p160 = scmp.eq.s32.totalorder %s24, 0
      %p161 = por %p159, %p160
      %p162 = scmp.ne.s32.totalorder %s154, %s156
      %p163 = scmp.eq.s32.totalorder %s29, 1
      %p164 = por %p162, %p163
      %p165 = scmp.ne.s32.totalorder %s156, %s157
      %p166 = scmp.eq.s32.totalorder %s29, 0
      %p167 = por %p165, %p166
      %p168 = scmp.ne.s32.totalorder %s156, %s157
      %p169 = scmp.eq.s32.totalorder %s30, 1
      %p170 = por %p168, %p169
      %p172 = scmp.ne.s32.totalorder %s157, %s171
      %p173 = scmp.eq.s32.totalorder %s30, 0
      %p174 = por %p172, %p173
      %s176 = sadd.s32 %s175, 1
      %p179 = scmp.eq.s32.totalorder %s24, 1
      %p180 = scmp.ne.s32.totalorder %s175, %s177
      %p181 = scmp.eq.s32.totalorder %s24, 0
      %p182 = por %p180, %p181
      %p183 = scmp.ne.s32.totalorder %s175, %s177
      %p184 = scmp.eq.s32.totalorder %s29, 1
      %p185 = por %p183, %p184
      %p186 = scmp.ne.s32.totalorder %s177, %s178
      %p187 = scmp.eq.s32.totalorder %s29, 0
      %p188 = por %p186, %p187
      %p189 = scmp.ne.s32.totalorder %s177, %s178
      %p190 = scmp.eq.s32.totalorder %s30, 1
      %p191 = por %p189, %p190
      %p193 = scmp.ne.s32.totalorder %s178, %s192
      %p194 = scmp.eq.s32.totalorder %s30, 0
      %p195 = por %p193, %p194
      %s197 = sadd.s32 %s196, 1
      %p200 = scmp.eq.s32.totalorder %s24, 1
      %p201 = scmp.ne.s32.totalorder %s196, %s198
      %p202 = scmp.eq.s32.totalorder %s24, 0
      %p203 = por %p201, %p202
      %p204 = scmp.ne.s32.totalorder %s196, %s198
      %p205 = scmp.eq.s32.totalorder %s29, 1
      %p206 = por %p204, %p205
      %p207 = scmp.ne.s32.totalorder %s198, %s199
      %p208 = scmp.eq.s32.totalorder %s29, 0
      %p209 = por %p207, %p208
      %p210 = scmp.ne.s32.totalorder %s198, %s199
      %p211 = scmp.eq.s32.totalorder %s30, 1
      %p212 = por %p210, %p211
      %p214 = scmp.ne.s32.totalorder %s199, %s213
      %p215 = scmp.eq.s32.totalorder %s30, 0
      %p216 = por %p214, %p215
      %s218 = sadd.s32 %s217, 1
      %p221 = scmp.eq.s32.totalorder %s24, 1
      %p222 = scmp.ne.s32.totalorder %s217, %s219
      %p223 = scmp.eq.s32.totalorder %s24, 0
      %p224 = por %p222, %p223
      %p225 = scmp.ne.s32.totalorder %s217, %s219
      %p226 = scmp.eq.s32.totalorder %s29, 1
      %p227 = por %p225, %p226
      %p228 = scmp.ne.s32.totalorder %s219, %s220
      %p229 = scmp.eq.s32.totalorder %s29, 0
      %p230 = por %p228, %p229
      %p231 = scmp.ne.s32.totalorder %s219, %s220
      %p232 = scmp.eq.s32.totalorder %s30, 1
      %p233 = por %p231, %p232
      %p235 = scmp.ne.s32.totalorder %s220, %s234
      %p236 = scmp.eq.s32.totalorder %s30, 0
      %p237 = por %p235, %p236
      %s239 = sadd.s32 %s238, 1
      %p242 = scmp.eq.s32.totalorder %s24, 1
      %p243 = scmp.ne.s32.totalorder %s238, %s240
      %p244 = scmp.eq.s32.totalorder %s24, 0
      %p245 = por %p243, %p244
      %p246 = scmp.ne.s32.totalorder %s238, %s240
      %p247 = scmp.eq.s32.totalorder %s29, 1
      %p248 = por %p246, %p247
      %p249 = scmp.ne.s32.totalorder %s240, %s241
      %p250 = scmp.eq.s32.totalorder %s29, 0
      %p251 = por %p249, %p250
      %p252 = scmp.ne.s32.totalorder %s240, %s241
      %p253 = scmp.eq.s32.totalorder %s30, 1
      %p254 = por %p252, %p253
      %p256 = scmp.ne.s32.totalorder %s241, %s255
      %p257 = scmp.eq.s32.totalorder %s30, 0
      %p258 = por %p256, %p257
      %s260 = sadd.s32 %s259, 1
      %p263 = scmp.eq.s32.totalorder %s24, 1
      %p264 = scmp.ne.s32.totalorder %s259, %s261
      %p265 = scmp.eq.s32.totalorder %s24, 0
      %p266 = por %p264, %p265
      %p267 = scmp.ne.s32.totalorder %s259, %s261
      %p268 = scmp.eq.s32.totalorder %s29, 1
      %p269 = por %p267, %p268
      %p270 = scmp.ne.s32.totalorder %s261, %s262
      %p271 = scmp.eq.s32.totalorder %s29, 0
      %p272 = por %p270, %p271
      %p273 = scmp.ne.s32.totalorder %s261, %s262
      %p274 = scmp.eq.s32.totalorder %s30, 1
      %p275 = por %p273, %p274
      %p277 = scmp.ne.s32.totalorder %s262, %s276
      %p278 = scmp.eq.s32.totalorder %s30, 0
      %p279 = por %p277, %p278
      %s281 = sadd.s32 %s280, 1
      %p284 = scmp.eq.s32.totalorder %s24, 1
      %p285 = scmp.ne.s32.totalorder %s280, %s282
      %p286 = scmp.eq.s32.totalorder %s24, 0
      %p287 = por %p285, %p286
      %p288 = scmp.ne.s32.totalorder %s280, %s282
      %p289 = scmp.eq.s32.totalorder %s29, 1
      %p290 = por %p288, %p289
      %p291 = scmp.ne.s32.totalorder %s282, %s283
      %p292 = scmp.eq.s32.totalorder %s29, 0
      %p293 = por %p291, %p292
      %p294 = scmp.ne.s32.totalorder %s282, %s283
      %p295 = scmp.eq.s32.totalorder %s30, 1
      %p296 = por %p294, %p295
      %p298 = scmp.ne.s32.totalorder %s283, %s297
      %p299 = scmp.eq.s32.totalorder %s30, 0
      %p300 = por %p298, %p299
      %s302 = sadd.s32 %s301, 1
      %p305 = scmp.eq.s32.totalorder %s24, 1
      %p306 = scmp.ne.s32.totalorder %s301, %s303
      %p307 = scmp.eq.s32.totalorder %s24, 0
      %p308 = por %p306, %p307
      %p309 = scmp.ne.s32.totalorder %s301, %s303
      %p310 = scmp.eq.s32.totalorder %s29, 1
      %p311 = por %p309, %p310
      %p312 = scmp.ne.s32.totalorder %s303, %s304
      %p313 = scmp.eq.s32.totalorder %s29, 0
      %p314 = por %p312, %p313
      %p315 = scmp.ne.s32.totalorder %s303, %s304
      %p316 = scmp.eq.s32.totalorder %s30, 1
      %p317 = por %p315, %p316
      %p319 = scmp.ne.s32.totalorder %s304, %s318
      %p320 = scmp.eq.s32.totalorder %s30, 0
      %p321 = por %p319, %p320
      %s323 = sadd.s32 %s322, 1
      %p326 = scmp.eq.s32.totalorder %s24, 1
      %p327 = scmp.ne.s32.totalorder %s322, %s324
      %p328 = scmp.eq.s32.totalorder %s24, 0
      %p329 = por %p327, %p328
      %p330 = scmp.ne.s32.totalorder %s322, %s324
      %p331 = scmp.eq.s32.totalorder %s29, 1
      %p332 = por %p330, %p331
      %p333 = scmp.ne.s32.totalorder %s324, %s325
      %p334 = scmp.eq.s32.totalorder %s29, 0
      %p335 = por %p333, %p334
      %p336 = scmp.ne.s32.totalorder %s324, %s325
      %p337 = scmp.eq.s32.totalorder %s30, 1
      %p338 = por %p336, %p337
      %p340 = scmp.ne.s32.totalorder %s325, %s339
      %p341 = scmp.eq.s32.totalorder %s30, 0
      %p342 = por %p340, %p341
      %s344 = sadd.s32 %s343, 1
      %p347 = scmp.eq.s32.totalorder %s24, 1
      %p348 = scmp.ne.s32.totalorder %s343, %s345
      %p349 = scmp.eq.s32.totalorder %s24, 0
      %p350 = por %p348, %p349
      %p351 = scmp.ne.s32.totalorder %s343, %s345
      %p352 = scmp.eq.s32.totalorder %s29, 1
      %p353 = por %p351, %p352
      %p354 = scmp.ne.s32.totalorder %s345, %s346
      %p355 = scmp.eq.s32.totalorder %s29, 0
      %p356 = por %p354, %p355
      %p357 = scmp.ne.s32.totalorder %s345, %s346
      %p358 = scmp.eq.s32.totalorder %s30, 1
      %p359 = por %p357, %p358
      %p361 = scmp.ne.s32.totalorder %s346, %s360
      %p362 = scmp.eq.s32.totalorder %s30, 0
      %p363 = por %p361, %p362
      %s364 = ssub.s32 %s31, %s43
      %s365 = ssub.s32 %s32, %s39
      %s366 = sor.u32 %s364, %s365
      %p367 = scmp.eq.s32.totalorder %s366, 0
      %s369 = sadd.s32 %s368, 1
      %s370 = scalar_select %p367, %s368, %s369
      %p373 = pneg %p367
      %p374 = scmp.eq.s32.totalorder %s24, 1
      %p375 = por %p373, %p374
      %p376 = scmp.ne.s32.totalorder %s368, %s371
      %p377 = scmp.eq.s32.totalorder %s24, 0
      %p378 = por %p376, %p377
      %p379 = scmp.ne.s32.totalorder %s368, %s371
      %p380 = scmp.eq.s32.totalorder %s29, 1
      %p381 = por %p379, %p380
      %p382 = scmp.ne.s32.totalorder %s371, %s372
      %p383 = scmp.eq.s32.totalorder %s29, 0
      %p384 = por %p382, %p383
      %p385 = scmp.ne.s32.totalorder %s371, %s372
      %p386 = scmp.eq.s32.totalorder %s30, 1
      %p387 = por %p385, %p386
      %p389 = scmp.ne.s32.totalorder %s372, %s388
      %p390 = scmp.eq.s32.totalorder %s30, 0
      %p391 = por %p389, %p390
      %p392 = scmp.le.s32.totalorder 1, %s24
      %p393 = scmp.lt.s32.totalorder %s24, 3
      %p394 = pnand %p392, %p393
      %p395 = pneg %p394
      // Predicated region
      $region9: #{tpu_custom_call.1} parent=5 // pred_check
        _
      $region10: #{tpu_custom_call.1} parent=5 // pred_check_branch
        %397 = sbr.rel (%p394) target = $region12
      $region11: #{tpu_custom_call.1} parent=5 // pred_region
        %s398 = ssub.s32 %s24, 1
        // Predicated region
        $region13: #{tpu_custom_call.1} parent=11 // pred_check
          %p399 = pneg %p83
        $region14: #{tpu_custom_call.1} parent=11 // pred_check_branch
          %401 = sbr.rel (%p399) target = $region16
        $region15: #{tpu_custom_call.1} parent=11 // pred_region
          _
        $region16: #{tpu_custom_call.1} parent=11 // pred_fallthru
          _
        // Predicated region
        $region17: #{tpu_custom_call.1} parent=11 // pred_check
          %p402 = pneg %p104
        $region18: #{tpu_custom_call.1} parent=11 // pred_check_branch
          %404 = sbr.rel (%p402) target = $region20
        $region19: #{tpu_custom_call.1} parent=11 // pred_region
          _
        $region20: #{tpu_custom_call.1} parent=11 // pred_fallthru
          _
        // Predicated region
        $region21: #{tpu_custom_call.1} parent=11 // pred_check
          %p405 = pneg %p125
        $region22: #{tpu_custom_call.1} parent=11 // pred_check_branch
          %407 = sbr.rel (%p405) target = $region24
        $region23: #{tpu_custom_call.1} parent=11 // pred_region
          _
        $region24: #{tpu_custom_call.1} parent=11 // pred_fallthru
          _
        // Predicated region
        $region25: #{tpu_custom_call.1} parent=11 // pred_check
          %p408 = pneg %p146
        $region26: #{tpu_custom_call.1} parent=11 // pred_check_branch
          %410 = sbr.rel (%p408) target = $region28
        $region27: #{tpu_custom_call.1} parent=11 // pred_region
          _
        $region28: #{tpu_custom_call.1} parent=11 // pred_fallthru
          _
        // Predicated region
        $region29: #{tpu_custom_call.1} parent=11 // pred_check
          %p411 = pneg %p167
        $region30: #{tpu_custom_call.1} parent=11 // pred_check_branch
          %413 = sbr.rel (%p411) target = $region32
        $region31: #{tpu_custom_call.1} parent=11 // pred_region
          _
        $region32: #{tpu_custom_call.1} parent=11 // pred_fallthru
          _
        // Predicated region
        $region33: #{tpu_custom_call.1} parent=11 // pred_check
          %p414 = pneg %p188
        $region34: #{tpu_custom_call.1} parent=11 // pred_check_branch
          %416 = sbr.rel (%p414) target = $region36
        $region35: #{tpu_custom_call.1} parent=11 // pred_region
          _
        $region36: #{tpu_custom_call.1} parent=11 // pred_fallthru
          _
        // Predicated region
        $region37: #{tpu_custom_call.1} parent=11 // pred_check
          %p417 = pneg %p209
        $region38: #{tpu_custom_call.1} parent=11 // pred_check_branch
          %419 = sbr.rel (%p417) target = $region40
        $region39: #{tpu_custom_call.1} parent=11 // pred_region
          _
        $region40: #{tpu_custom_call.1} parent=11 // pred_fallthru
          _
        // Predicated region
        $region41: #{tpu_custom_call.1} parent=11 // pred_check
          %p420 = pneg %p230
        $region42: #{tpu_custom_call.1} parent=11 // pred_check_branch
          %422 = sbr.rel (%p420) target = $region44
        $region43: #{tpu_custom_call.1} parent=11 // pred_region
          _
        $region44: #{tpu_custom_call.1} parent=11 // pred_fallthru
          _
        // Predicated region
        $region45: #{tpu_custom_call.1} parent=11 // pred_check
          %p423 = pneg %p251
        $region46: #{tpu_custom_call.1} parent=11 // pred_check_branch
          %425 = sbr.rel (%p423) target = $region48
        $region47: #{tpu_custom_call.1} parent=11 // pred_region
          _
        $region48: #{tpu_custom_call.1} parent=11 // pred_fallthru
          _
        // Predicated region
        $region49: #{tpu_custom_call.1} parent=11 // pred_check
          %p426 = pneg %p272
        $region50: #{tpu_custom_call.1} parent=11 // pred_check_branch
          %428 = sbr.rel (%p426) target = $region52
        $region51: #{tpu_custom_call.1} parent=11 // pred_region
          _
        $region52: #{tpu_custom_call.1} parent=11 // pred_fallthru
          _
        // Predicated region
        $region53: #{tpu_custom_call.1} parent=11 // pred_check
          %p429 = pneg %p293
        $region54: #{tpu_custom_call.1} parent=11 // pred_check_branch
          %431 = sbr.rel (%p429) target = $region56
        $region55: #{tpu_custom_call.1} parent=11 // pred_region
          _
        $region56: #{tpu_custom_call.1} parent=11 // pred_fallthru
          _
        // Predicated region
        $region57: #{tpu_custom_call.1} parent=11 // pred_check
          %p432 = pneg %p314
        $region58: #{tpu_custom_call.1} parent=11 // pred_check_branch
          %434 = sbr.rel (%p432) target = $region60
        $region59: #{tpu_custom_call.1} parent=11 // pred_region
          _
        $region60: #{tpu_custom_call.1} parent=11 // pred_fallthru
          _
        // Predicated region
        $region61: #{tpu_custom_call.1} parent=11 // pred_check
          %p435 = pneg %p335
        $region62: #{tpu_custom_call.1} parent=11 // pred_check_branch
          %437 = sbr.rel (%p435) target = $region64
        $region63: #{tpu_custom_call.1} parent=11 // pred_region
          _
        $region64: #{tpu_custom_call.1} parent=11 // pred_fallthru
          _
        // Predicated region
        $region65: #{tpu_custom_call.1} parent=11 // pred_check
          %p438 = pneg %p356
        $region66: #{tpu_custom_call.1} parent=11 // pred_check_branch
          %440 = sbr.rel (%p438) target = $region68
        $region67: #{tpu_custom_call.1} parent=11 // pred_region
          _
        $region68: #{tpu_custom_call.1} parent=11 // pred_fallthru
          _
      $region12: #{tpu_custom_call.1} parent=5 // pred_fallthru
        _
      %p441 = scmp.lt.s32.totalorder %s24, 2
      // Predicated region
      $region69: #{tpu_custom_call.1} parent=5 // pred_check
        %p442 = pneg %p441
      $region70: #{tpu_custom_call.1} parent=5 // pred_check_branch
        %444 = sbr.rel (%p442) target = $region72
      $region71: #{tpu_custom_call.1} parent=5 // pred_region
        // Predicated region
        $region73: #{tpu_custom_call.1} parent=71 // pred_check
          %p445 = pneg %p56
        $region74: #{tpu_custom_call.1} parent=71 // pred_check_branch
          %447 = sbr.rel (%p445) target = $region76
        $region75: #{tpu_custom_call.1} parent=71 // pred_region
          %p448 = scmp.lt.s32.totalorder %s31, 1
          %s449 = scalar_select %p448, %s31, 1
          %s450 = smul.addr %s449, 8
          %s451 = scalar_lea.vmem %s0, %s450
        $region76: #{tpu_custom_call.1} parent=71 // pred_fallthru
          _
      $region72: #{tpu_custom_call.1} parent=5 // pred_fallthru
        _
      %p452 = scmp.le.s32.totalorder 1, %s24
      %p453 = scmp.lt.s32.totalorder %s24, 3
      %p454 = pnand %p452, %p453
      %p455 = pneg %p454
      // Predicated region
      $region77: #{tpu_custom_call.1} parent=5 // pred_check
        _
      $region78: #{tpu_custom_call.1} parent=5 // pred_check_branch
        %457 = sbr.rel (%p454) target = $region80
      $region79: #{tpu_custom_call.1} parent=5 // pred_region
        %s458 = ssub.s32 %s24, 1
        %p459 = scmp.lt.s32.totalorder %s33, 1
        %s460 = scalar_select %p459, %s33, 1
        %s461 = smul.addr %s460, 8
        %s462 = scalar_lea.vmem %s0, %s461
        %p463 = pneg %p62
        %p464 = pneg %p59
        %p465 = pneg %p83
        %p466 = pneg %p80
        %p467 = pneg %p104
        %p468 = pneg %p101
        %p469 = pneg %p125
        %p470 = pneg %p122
        %p471 = pneg %p146
        %p472 = pneg %p143
        %p473 = pneg %p167
        %p474 = pneg %p164
        %p475 = pneg %p188
        %p476 = pneg %p185
        %p477 = pneg %p209
        %p478 = pneg %p206
        %p479 = pneg %p230
        %p480 = pneg %p227
        %p481 = pneg %p251
        %p482 = pneg %p248
        %p483 = pneg %p272
        %p484 = pneg %p269
        %p485 = pneg %p293
        %p486 = pneg %p290
        %p487 = pneg %p314
        %p488 = pneg %p311
        %p489 = pneg %p335
        %p490 = pneg %p332
        %p491 = pneg %p356
        %p492 = pneg %p353
        %p493 = pneg %p384
        %p494 = pneg %p381
        %s495 = sand.u32 %s371, 1
        %s496 = scalar_lea.sflag [#allocation4], %s495
        %s497 = sand.u32 %s371, 1
        %s498 = smul.addr %s497, 8
        %s499 = scalar_lea.vmem [#allocation3], %s498
        %p500 = scmp.lt.s32.totalorder %s33, 1
        %s501 = scalar_select %p500, %s33, 1
        %s502 = smul.addr %s501, 8
        %s503 = scalar_lea.vmem %s0, %s502
        %s505 = smul.u32 %s34, 8
        %v506 = vld [vmem:[%s1] sm:$0x1]
        %v507 = vld [vmem:[%s2] sm:$0x1]
        %v508 = vld [vmem:[%s503] sm:$0xff]
        %vm509 = vcmask 261120
        %v510 = vsel %vm509, %v508, 0.0
        %511 = vadd.xlane.f32.xlu0 %v510
        %v512 = vpop.xlane.xlu0 %511
        %v513 = vrcp.pop 32.0
        %v514 = vmul.f32 %v512, %v513
        %v515 = vmul.f32 %v508, %v508
        %v516 = vsel %vm509, %v515, 0.0
        %517 = vadd.xlane.f32.xlu0 %v516
        %v518 = vpop.xlane.xlu0 %517
        %v519 = vmul.f32 %v518, %v513
        %v520 = vmul.f32 %v514, %v514
        %v521 = vsub.f32 %v519, %v520
        %v522 = vsub.f32 %v508, %v514
        %v523 = vadd.f32 %v521, 1e-05
        %v524 = vrsqrt.pop %v523
        %v525 = vmul.f32 %v522, %v524
        %v527 = vlaneseq
        %v528 = vshrl.u32 %v527, 7
        %v529 = vsub.s32 0, %v528
        %v530 = vrot.slane %v506, %v529
        %v532 = vmul.f32 %v525, %v530
        %v534 = vlaneseq
        %v535 = vshrl.u32 %v534, 7
        %v536 = vsub.s32 0, %v535
        %v537 = vrot.slane %v507, %v536
        %v539 = vadd.f32 %v532, %v537
        %v540 = vpack.c.bf16 %v539, %v539
        %v541 = vld [vmem:[%s5] sm:$0xf]
        %v542 = vld [vmem:[%s5 + $0x4] sm:$0xf]
        %v543 = vld [vmem:[%s5 + $0x8] sm:$0xf]
        %v544 = vld [vmem:[%s5 + $0xc] sm:$0xf]
        %v545 = vld [vmem:[%s6] sm:$0x1]
        %v547 = vlaneseq
        %v548 = vshrl.u32 %v547, 7
        %v549 = vsub.s32 0, %v548
        %v550 = vrot.slane %v545, %v549
        %v556 = vunpack.c.l.b16 %v541
        %v557 = vunpack.c.l.b16 %v542
        %v558 = vunpack.c.l.b16 %v543
        %v559 = vunpack.c.l.b16 %v544
        %v560 = vpack.c.b16 %v557, %v556
        %v561 = vpack.c.b16 %v559, %v558
        %v565 = vsel %vm509, %v540, 0
        %567 = vmatprep.subr.bf16.mxu0 0
        %568 = vmatpush1.bf16.msra.mxu0 %v560
        %569 = vmatprep.subr.bf16.mxu0 0
        %570 = vmatpush1.bf16.msra.mxu0 %v561
        %571 = vmatprep.subr.bf16.mxu0 0
        %572 = vmatpush1.bf16.msra.mxu0 0
        %573 = vmatprep.subr.bf16.mxu0 0
        %574 = vmatpush1.bf16.msra.mxu0 0
        %575 = vmatprep.subr.bf16.mxu0 0
        %576 = vmatpush1.bf16.msra.mxu0 0
        %577 = vmatprep.subr.bf16.mxu0 0
        %578 = vmatpush1.bf16.msra.mxu0 0
        %579 = vmatprep.subr.bf16.mxu0 0
        %580 = vmatpush1.bf16.msra.mxu0 0
        %581 = vmatprep.subr.bf16.mxu0 0
        %582 = vmatpush1.bf16.msra.mxu0 0
        %583 = vmatprep.subr.bf16.mxu0 0
        %584 = vmatpush1.bf16.msra.mxu0 0
        %585 = vmatprep.subr.bf16.mxu0 0
        %586 = vmatpush1.bf16.msra.mxu0 0
        %587 = vmatprep.subr.bf16.mxu0 0
        %588 = vmatpush1.bf16.msra.mxu0 0
        %589 = vmatprep.subr.bf16.mxu0 0
        %590 = vmatpush1.bf16.msra.mxu0 0
        %591 = vmatprep.subr.bf16.mxu0 0
        %592 = vmatpush1.bf16.msra.mxu0 0
        %593 = vmatprep.subr.bf16.mxu0 0
        %594 = vmatpush1.bf16.msra.mxu0 0
        %595 = vmatprep.subr.bf16.mxu0 0
        %596 = vmatpush1.bf16.msra.mxu0 0
        %597 = vmatprep.subr.bf16.mxu0 0
        %598 = vmatpush1.bf16.msra.mxu0 0
        %599 = vmatprep.mubr.bf16.mxu0 0
        %600 = vmatmul.mubr.bf16.gmra.mrb[0].mxu0 %v565
        %v601 = vpop.f32.mrb[0].mxu0
        %v602 = vadd.f32 %v550, %v601
        %v603 = vpop.f32.mrb[0].mxu0
        %v604 = vpop.f32.mrb[0].mxu0
        %v605 = vpop.f32.mrb[0].mxu0
        %606 = vdwg.mxu0
        %s607 = scalar_lea.vmem %s503, %s505
        %v608 = vld [vmem:[%s607] sm:$0xff]
        %v609 = vsel %vm509, %v608, 0.0
        %610 = vadd.xlane.f32.xlu0 %v609
        %v611 = vpop.xlane.xlu0 %610
        %v612 = vmul.f32 %v611, %v513
        %v613 = vmul.f32 %v608, %v608
        %v614 = vsel %vm509, %v613, 0.0
        %615 = vadd.xlane.f32.xlu0 %v614
        %v616 = vpop.xlane.xlu0 %615
        %v617 = vmul.f32 %v616, %v513
        %v618 = vmul.f32 %v612, %v612
        %v619 = vsub.f32 %v617, %v618
        %v620 = vsub.f32 %v608, %v612
        %v621 = vadd.f32 %v619, 1e-05
        %v622 = vrsqrt.pop %v621
        %v623 = vmul.f32 %v620, %v622
        %v624 = vmul.f32 %v623, %v530
        %v625 = vadd.f32 %v624, %v537
        %v626 = vpack.c.bf16 %v625, %v625
        %v627 = vld [vmem:[%s3] sm:$0xf]
        %v628 = vld [vmem:[%s3 + $0x4] sm:$0xf]
        %v629 = vld [vmem:[%s3 + $0x8] sm:$0xf]
        %v630 = vld [vmem:[%s3 + $0xc] sm:$0xf]
        %v631 = vld [vmem:[%s4] sm:$0x1]
        %v633 = vlaneseq
        %v634 = vshrl.u32 %v633, 7
        %v635 = vsub.s32 0, %v634
        %v636 = vrot.slane %v631, %v635
        %v642 = vunpack.c.l.b16 %v627
        %v643 = vunpack.c.l.b16 %v628
        %v644 = vunpack.c.l.b16 %v629
        %v645 = vunpack.c.l.b16 %v630
        %v646 = vpack.c.b16 %v643, %v642
        %v647 = vpack.c.b16 %v645, %v644
        %v651 = vsel %vm509, %v626, 0
        %653 = vmatprep.subr.bf16.mxu0 0
        %654 = vmatpush1.bf16.msra.mxu0 %v646
        %655 = vmatprep.subr.bf16.mxu0 0
        %656 = vmatpush1.bf16.msra.mxu0 %v647
        %657 = vmatprep.subr.bf16.mxu0 0
        %658 = vmatpush1.bf16.msra.mxu0 0
        %659 = vmatprep.subr.bf16.mxu0 0
        %660 = vmatpush1.bf16.msra.mxu0 0
        %661 = vmatprep.subr.bf16.mxu0 0
        %662 = vmatpush1.bf16.msra.mxu0 0
        %663 = vmatprep.subr.bf16.mxu0 0
        %664 = vmatpush1.bf16.msra.mxu0 0
        %665 = vmatprep.subr.bf16.mxu0 0
        %666 = vmatpush1.bf16.msra.mxu0 0
        %667 = vmatprep.subr.bf16.mxu0 0
        %668 = vmatpush1.bf16.msra.mxu0 0
        %669 = vmatprep.subr.bf16.mxu0 0
        %670 = vmatpush1.bf16.msra.mxu0 0
        %671 = vmatprep.subr.bf16.mxu0 0
        %672 = vmatpush1.bf16.msra.mxu0 0
        %673 = vmatprep.subr.bf16.mxu0 0
        %674 = vmatpush1.bf16.msra.mxu0 0
        %675 = vmatprep.subr.bf16.mxu0 0
        %676 = vmatpush1.bf16.msra.mxu0 0
        %677 = vmatprep.subr.bf16.mxu0 0
        %678 = vmatpush1.bf16.msra.mxu0 0
        %679 = vmatprep.subr.bf16.mxu0 0
        %680 = vmatpush1.bf16.msra.mxu0 0
        %681 = vmatprep.subr.bf16.mxu0 0
        %682 = vmatpush1.bf16.msra.mxu0 0
        %683 = vmatprep.subr.bf16.mxu0 0
        %684 = vmatpush1.bf16.msra.mxu0 0
        %685 = vmatprep.mubr.bf16.mxu0 0
        %686 = vmatmul.mubr.bf16.gmra.mrb[0].mxu0 %v651
        %v687 = vpop.f32.mrb[0].mxu0
        %v688 = vadd.f32 %v636, %v687
        %v689 = vpop.f32.mrb[0].mxu0
        %v690 = vpop.f32.mrb[0].mxu0
        %v691 = vpop.f32.mrb[0].mxu0
        %692 = vdwg.mxu0
        %v693 = vpack.c.bf16 %v688, %v688
        %v694 = vpack.c.bf16 %v602, %v602
        %vm695 = vcmask 64512
        %v697 = vsel %vm695, %v693, 0
        %v700 = vsel %vm695, %v694, 0
        %702 = vmatprep.subr.bf16.mxu0 0
        %703 = vmatpush1.bf16.xpose.msra.mxu0 %v700
        %704 = vmatprep.subr.bf16.mxu0 0
        %705 = vmatpush1.bf16.xpose.msra.mxu0 0
        %706 = vmatprep.subr.bf16.mxu0 0
        %707 = vmatpush1.bf16.xpose.msra.mxu0 0
        %708 = vmatprep.subr.bf16.mxu0 0
        %709 = vmatpush1.bf16.xpose.msra.mxu0 0
        %710 = vmatprep.subr.bf16.mxu0 0
        %711 = vmatpush1.bf16.xpose.msra.mxu0 0
        %712 = vmatprep.subr.bf16.mxu0 0
        %713 = vmatpush1.bf16.xpose.msra.mxu0 0
        %714 = vmatprep.subr.bf16.mxu0 0
        %715 = vmatpush1.bf16.xpose.msra.mxu0 0
        %716 = vmatprep.subr.bf16.mxu0 0
        %717 = vmatpush1.bf16.xpose.msra.mxu0 0
        %718 = vmatprep.subr.bf16.mxu0 0
        %719 = vmatpush1.bf16.xpose.msra.mxu0 0
        %720 = vmatprep.subr.bf16.mxu0 0
        %721 = vmatpush1.bf16.xpose.msra.mxu0 0
        %722 = vmatprep.subr.bf16.mxu0 0
        %723 = vmatpush1.bf16.xpose.msra.mxu0 0
        %724 = vmatprep.subr.bf16.mxu0 0
        %725 = vmatpush1.bf16.xpose.msra.mxu0 0
        %726 = vmatprep.subr.bf16.mxu0 0
        %727 = vmatpush1.bf16.xpose.msra.mxu0 0
        %728 = vmatprep.subr.bf16.mxu0 0
        %729 = vmatpush1.bf16.xpose.msra.mxu0 0
        %730 = vmatprep.subr.bf16.mxu0 0
        %731 = vmatpush1.bf16.xpose.msra.mxu0 0
        %732 = vmatprep.subr.bf16.mxu0 0
        %733 = vmatpush1.bf16.xpose.msra.mxu0 0
        %734 = vmatprep.mubr.bf16.mxu0 0
        %735 = vmatmul.mubr.bf16.gmra.mrb[0].mxu0 %v697
        %v736 = vpop.f32.mrb[0].mxu0
        %v737 = vadd.f32 0.0, %v736
        %v738 = vpop.f32.mrb[0].mxu0
        %v739 = vpop.f32.mrb[0].mxu0
        %v740 = vpop.f32.mrb[0].mxu0
        %741 = vdwg.mxu0
        %v742 = vsel %vm695, %v737, -inf
        %743 = vmax.xlane.f32.xlu0 %v742
        %v744 = vpop.xlane.xlu0 %743
        %v745 = vsub.f32 %v737, %v744
        %v746 = vmul.f32 %v745, 1.442695
        %v747 = vpow.pop %v746
        %v748 = vsel %vm695, %v747, 0.0
        %749 = vadd.xlane.f32.xlu0 %v748
        %v750 = vpop.xlane.xlu0 %749
        %v751 = vrcp.pop %v750
        %v752 = vmul.f32 %v747, %v751
        %v753 = vpack.c.bf16 %v752, %v752
        %755 = vrot.lane.b32.xlu0 %v694, 96
        %v756 = vpop.permute.xlu0 %755
        %v758 = vsel %vm695, %v753, 0
        %vm760 = vcmask 1043456
        %v762 = vsel %vm760, %v756, 0
        %764 = vmatprep.subr.bf16.mxu0 0
        %765 = vmatpush1.bf16.msra.mxu0 %v762
        %766 = vmatprep.subr.bf16.mxu0 0
        %767 = vmatpush1.bf16.msra.mxu0 0
        %768 = vmatprep.subr.bf16.mxu0 0
        %769 = vmatpush1.bf16.msra.mxu0 0
        %770 = vmatprep.subr.bf16.mxu0 0
        %771 = vmatpush1.bf16.msra.mxu0 0
        %772 = vmatprep.subr.bf16.mxu0 0
        %773 = vmatpush1.bf16.msra.mxu0 0
        %774 = vmatprep.subr.bf16.mxu0 0
        %775 = vmatpush1.bf16.msra.mxu0 0
        %776 = vmatprep.subr.bf16.mxu0 0
        %777 = vmatpush1.bf16.msra.mxu0 0
        %778 = vmatprep.subr.bf16.mxu0 0
        %779 = vmatpush1.bf16.msra.mxu0 0
        %780 = vmatprep.subr.bf16.mxu0 0
        %781 = vmatpush1.bf16.msra.mxu0 0
        %782 = vmatprep.subr.bf16.mxu0 0
        %783 = vmatpush1.bf16.msra.mxu0 0
        %784 = vmatprep.subr.bf16.mxu0 0
        %785 = vmatpush1.bf16.msra.mxu0 0
        %786 = vmatprep.subr.bf16.mxu0 0
        %787 = vmatpush1.bf16.msra.mxu0 0
        %788 = vmatprep.subr.bf16.mxu0 0
        %789 = vmatpush1.bf16.msra.mxu0 0
        %790 = vmatprep.subr.bf16.mxu0 0
        %791 = vmatpush1.bf16.msra.mxu0 0
        %792 = vmatprep.subr.bf16.mxu0 0
        %793 = vmatpush1.bf16.msra.mxu0 0
        %794 = vmatprep.subr.bf16.mxu0 0
        %795 = vmatpush1.bf16.msra.mxu0 0
        %796 = vmatprep.mubr.bf16.mxu0 0
        %797 = vmatmul.mubr.bf16.gmra.mrb[0].mxu0 %v758
        %v798 = vpop.f32.mrb[0].mxu0
        %v799 = vadd.f32 0.0, %v798
        %v800 = vpop.f32.mrb[0].mxu0
        %v801 = vpop.f32.mrb[0].mxu0
        %v802 = vpop.f32.mrb[0].mxu0
        %803 = vdwg.mxu0
        %804 = vst.msk [vmem:[#allocation2] sm:$0xff] %vm695, %v799
        %806 = vrot.lane.b32.xlu0 %v693, 120
        %v807 = vpop.permute.xlu0 %806
        %808 = vrot.lane.b32.xlu0 %v694, 120
        %v809 = vpop.permute.xlu0 %808
        %v811 = vsel %vm695, %v807, 0
        %v814 = vsel %vm695, %v809, 0
        %816 = vmatprep.subr.bf16.mxu0 0
        %817 = vmatpush1.bf16.xpose.msra.mxu0 %v814
        %818 = vmatprep.subr.bf16.mxu0 0
        %819 = vmatpush1.bf16.xpose.msra.mxu0 0
        %820 = vmatprep.subr.bf16.mxu0 0
        %821 = vmatpush1.bf16.xpose.msra.mxu0 0
        %822 = vmatprep.subr.bf16.mxu0 0
        %823 = vmatpush1.bf16.xpose.msra.mxu0 0
        %824 = vmatprep.subr.bf16.mxu0 0
        %825 = vmatpush1.bf16.xpose.msra.mxu0 0
        %826 = vmatprep.subr.bf16.mxu0 0
        %827 = vmatpush1.bf16.xpose.msra.mxu0 0
        %828 = vmatprep.subr.bf16.mxu0 0
        %829 = vmatpush1.bf16.xpose.msra.mxu0 0
        %830 = vmatprep.subr.bf16.mxu0 0
        %831 = vmatpush1.bf16.xpose.msra.mxu0 0
        %832 = vmatprep.subr.bf16.mxu0 0
        %833 = vmatpush1.bf16.xpose.msra.mxu0 0
        %834 = vmatprep.subr.bf16.mxu0 0
        %835 = vmatpush1.bf16.xpose.msra.mxu0 0
        %836 = vmatprep.subr.bf16.mxu0 0
        %837 = vmatpush1.bf16.xpose.msra.mxu0 0
        %838 = vmatprep.subr.bf16.mxu0 0
        %839 = vmatpush1.bf16.xpose.msra.mxu0 0
        %840 = vmatprep.subr.bf16.mxu0 0
        %841 = vmatpush1.bf16.xpose.msra.mxu0 0
        %842 = vmatprep.subr.bf16.mxu0 0
        %843 = vmatpush1.bf16.xpose.msra.mxu0 0
        %844 = vmatprep.subr.bf16.mxu0 0
        %845 = vmatpush1.bf16.xpose.msra.mxu0 0
        %846 = vmatprep.subr.bf16.mxu0 0
        %847 = vmatpush1.bf16.xpose.msra.mxu0 0
        %848 = vmatprep.mubr.bf16.mxu0 0
        %849 = vmatmul.mubr.bf16.gmra.mrb[0].mxu0 %v811
        %v850 = vpop.f32.mrb[0].mxu0
        %v851 = vadd.f32 0.0, %v850
        %v852 = vpop.f32.mrb[0].mxu0
        %v853 = vpop.f32.mrb[0].mxu0
        %v854 = vpop.f32.mrb[0].mxu0
        %855 = vdwg.mxu0
        %v856 = vsel %vm695, %v851, -inf
        %857 = vmax.xlane.f32.xlu0 %v856
        %v858 = vpop.xlane.xlu0 %857
        %v859 = vsub.f32 %v851, %v858
        %v860 = vmul.f32 %v859, 1.442695
        %v861 = vpow.pop %v860
        %v862 = vsel %vm695, %v861, 0.0
        %863 = vadd.xlane.f32.xlu0 %v862
        %v864 = vpop.xlane.xlu0 %863
        %v865 = vrcp.pop %v864
        %v866 = vmul.f32 %v861, %v865
        %v867 = vpack.c.bf16 %v866, %v866
        %868 = vrot.lane.b32.xlu0 %v694, 88
        %v869 = vpop.permute.xlu0 %868
        %v871 = vsel %vm695, %v867, 0
        %v874 = vsel %vm760, %v869, 0
        %876 = vmatprep.subr.bf16.mxu0 0
        %877 = vmatpush1.bf16.msra.mxu0 %v874
        %878 = vmatprep.subr.bf16.mxu0 0
        %879 = vmatpush1.bf16.msra.mxu0 0
        %880 = vmatprep.subr.bf16.mxu0 0
        %881 = vmatpush1.bf16.msra.mxu0 0
        %882 = vmatprep.subr.bf16.mxu0 0
        %883 = vmatpush1.bf16.msra.mxu0 0
        %884 = vmatprep.subr.bf16.mxu0 0
        %885 = vmatpush1.bf16.msra.mxu0 0
        %886 = vmatprep.subr.bf16.mxu0 0
        %887 = vmatpush1.bf16.msra.mxu0 0
        %888 = vmatprep.subr.bf16.mxu0 0
        %889 = vmatpush1.bf16.msra.mxu0 0
        %890 = vmatprep.subr.bf16.mxu0 0
        %891 = vmatpush1.bf16.msra.mxu0 0
        %892 = vmatprep.subr.bf16.mxu0 0
        %893 = vmatpush1.bf16.msra.mxu0 0
        %894 = vmatprep.subr.bf16.mxu0 0
        %895 = vmatpush1.bf16.msra.mxu0 0
        %896 = vmatprep.subr.bf16.mxu0 0
        %897 = vmatpush1.bf16.msra.mxu0 0
        %898 = vmatprep.subr.bf16.mxu0 0
        %899 = vmatpush1.bf16.msra.mxu0 0
        %900 = vmatprep.subr.bf16.mxu0 0
        %901 = vmatpush1.bf16.msra.mxu0 0
        %902 = vmatprep.subr.bf16.mxu0 0
        %903 = vmatpush1.bf16.msra.mxu0 0
        %904 = vmatprep.subr.bf16.mxu0 0
        %905 = vmatpush1.bf16.msra.mxu0 0
        %906 = vmatprep.subr.bf16.mxu0 0
        %907 = vmatpush1.bf16.msra.mxu0 0
        %908 = vmatprep.mubr.bf16.mxu0 0
        %909 = vmatmul.mubr.bf16.gmra.mrb[0].mxu0 %v871
        %v910 = vpop.f32.mrb[0].mxu0
        %v911 = vadd.f32 0.0, %v910
        %v912 = vpop.f32.mrb[0].mxu0
        %v913 = vpop.f32.mrb[0].mxu0
        %v914 = vpop.f32.mrb[0].mxu0
        %915 = vdwg.mxu0
        %917 = vrot.lane.b32.xlu0 %v911, 8
        %v918 = vpop.permute.xlu0 %917
        %vm920 = vcmask 130112
        %921 = vst.msk [vmem:[#allocation2] sm:$0xff] %vm920, %v918
        %922 = vrot.lane.b32.xlu0 %v693, 112
        %v923 = vpop.permute.xlu0 %922
        %924 = vrot.lane.b32.xlu0 %v694, 112
        %v925 = vpop.permute.xlu0 %924
        %v927 = vsel %vm695, %v923, 0
        %v930 = vsel %vm695, %v925, 0
        %932 = vmatprep.subr.bf16.mxu0 0
        %933 = vmatpush1.bf16.xpose.msra.mxu0 %v930
        %934 = vmatprep.subr.bf16.mxu0 0
        %935 = vmatpush1.bf16.xpose.msra.mxu0 0
        %936 = vmatprep.subr.bf16.mxu0 0
        %937 = vmatpush1.bf16.xpose.msra.mxu0 0
        %938 = vmatprep.subr.bf16.mxu0 0
        %939 = vmatpush1.bf16.xpose.msra.mxu0 0
        %940 = vmatprep.subr.bf16.mxu0 0
        %941 = vmatpush1.bf16.xpose.msra.mxu0 0
        %942 = vmatprep.subr.bf16.mxu0 0
        %943 = vmatpush1.bf16.xpose.msra.mxu0 0
        %944 = vmatprep.subr.bf16.mxu0 0
        %945 = vmatpush1.bf16.xpose.msra.mxu0 0
        %946 = vmatprep.subr.bf16.mxu0 0
        %947 = vmatpush1.bf16.xpose.msra.mxu0 0
        %948 = vmatprep.subr.bf16.mxu0 0
        %949 = vmatpush1.bf16.xpose.msra.mxu0 0
        %950 = vmatprep.subr.bf16.mxu0 0
        %951 = vmatpush1.bf16.xpose.msra.mxu0 0
        %952 = vmatprep.subr.bf16.mxu0 0
        %953 = vmatpush1.bf16.xpose.msra.mxu0 0
        %954 = vmatprep.subr.bf16.mxu0 0
        %955 = vmatpush1.bf16.xpose.msra.mxu0 0
        %956 = vmatprep.subr.bf16.mxu0 0
        %957 = vmatpush1.bf16.xpose.msra.mxu0 0
        %958 = vmatprep.subr.bf16.mxu0 0
        %959 = vmatpush1.bf16.xpose.msra.mxu0 0
        %960 = vmatprep.subr.bf16.mxu0 0
        %961 = vmatpush1.bf16.xpose.msra.mxu0 0
        %962 = vmatprep.subr.bf16.mxu0 0
        %963 = vmatpush1.bf16.xpose.msra.mxu0 0
        %964 = vmatprep.mubr.bf16.mxu0 0
        %965 = vmatmul.mubr.bf16.gmra.mrb[0].mxu0 %v927
        %v966 = vpop.f32.mrb[0].mxu0
        %v967 = vadd.f32 0.0, %v966
        %v968 = vpop.f32.mrb[0].mxu0
        %v969 = vpop.f32.mrb[0].mxu0
        %v970 = vpop.f32.mrb[0].mxu0
        %971 = vdwg.mxu0
        %v972 = vsel %vm695, %v967, -inf
        %973 = vmax.xlane.f32.xlu0 %v972
        %v974 = vpop.xlane.xlu0 %973
        %v975 = vsub.f32 %v967, %v974
        %v976 = vmul.f32 %v975, 1.442695
        %v977 = vpow.pop %v976
        %v978 = vsel %vm695, %v977, 0.0
        %979 = vadd.xlane.f32.xlu0 %v978
        %v980 = vpop.xlane.xlu0 %979
        %v981 = vrcp.pop %v980
        %v982 = vmul.f32 %v977, %v981
        %v983 = vpack.c.bf16 %v982, %v982
        %984 = vrot.lane.b32.xlu0 %v694, 80
        %v985 = vpop.permute.xlu0 %984
        %v987 = vsel %vm695, %v983, 0
        %v990 = vsel %vm760, %v985, 0
        %992 = vmatprep.subr.bf16.mxu0 0
        %993 = vmatpush1.bf16.msra.mxu0 %v990
        %994 = vmatprep.subr.bf16.mxu0 0
        %995 = vmatpush1.bf16.msra.mxu0 0
        %996 = vmatprep.subr.bf16.mxu0 0
        %997 = vmatpush1.bf16.msra.mxu0 0
        %998 = vmatprep.subr.bf16.mxu0 0
        %999 = vmatpush1.bf16.msra.mxu0 0
        %1000 = vmatprep.subr.bf16.mxu0 0
        %1001 = vmatpush1.bf16.msra.mxu0 0
        %1002 = vmatprep.subr.bf16.mxu0 0
        %1003 = vmatpush1.bf16.msra.mxu0 0
        %1004 = vmatprep.subr.bf16.mxu0 0
        %1005 = vmatpush1.bf16.msra.mxu0 0
        %1006 = vmatprep.subr.bf16.mxu0 0
        %1007 = vmatpush1.bf16.msra.mxu0 0
        %1008 = vmatprep.subr.bf16.mxu0 0
        %1009 = vmatpush1.bf16.msra.mxu0 0
        %1010 = vmatprep.subr.bf16.mxu0 0
        %1011 = vmatpush1.bf16.msra.mxu0 0
        %1012 = vmatprep.subr.bf16.mxu0 0
        %1013 = vmatpush1.bf16.msra.mxu0 0
        %1014 = vmatprep.subr.bf16.mxu0 0
        %1015 = vmatpush1.bf16.msra.mxu0 0
        %1016 = vmatprep.subr.bf16.mxu0 0
        %1017 = vmatpush1.bf16.msra.mxu0 0
        %1018 = vmatprep.subr.bf16.mxu0 0
        %1019 = vmatpush1.bf16.msra.mxu0 0
        %1020 = vmatprep.subr.bf16.mxu0 0
        %1021 = vmatpush1.bf16.msra.mxu0 0
        %1022 = vmatprep.subr.bf16.mxu0 0
        %1023 = vmatpush1.bf16.msra.mxu0 0
        %1024 = vmatprep.mubr.bf16.mxu0 0
        %1025 = vmatmul.mubr.bf16.gmra.mrb[0].mxu0 %v987
        %v1026 = vpop.f32.mrb[0].mxu0
        %v1027 = vadd.f32 0.0, %v1026
        %v1028 = vpop.f32.mrb[0].mxu0
        %v1029 = vpop.f32.mrb[0].mxu0
        %v1030 = vpop.f32.mrb[0].mxu0
        %1031 = vdwg.mxu0
        %1033 = vrot.lane.b32.xlu0 %v1027, 16
        %v1034 = vpop.permute.xlu0 %1033
        %vm1036 = vcmask 195712
        %1037 = vst.msk [vmem:[#allocation2] sm:$0xff] %vm1036, %v1034
        %1038 = vrot.lane.b32.xlu0 %v693, 104
        %v1039 = vpop.permute.xlu0 %1038
        %1040 = vrot.lane.b32.xlu0 %v694, 104
        %v1041 = vpop.permute.xlu0 %1040
        %v1043 = vsel %vm695, %v1039, 0
        %v1046 = vsel %vm695, %v1041, 0
        %1048 = vmatprep.subr.bf16.mxu0 0
        %1049 = vmatpush1.bf16.xpose.msra.mxu0 %v1046
        %1050 = vmatprep.subr.bf16.mxu0 0
        %1051 = vmatpush1.bf16.xpose.msra.mxu0 0
        %1052 = vmatprep.subr.bf16.mxu0 0
        %1053 = vmatpush1.bf16.xpose.msra.mxu0 0
        %1054 = vmatprep.subr.bf16.mxu0 0
        %1055 = vmatpush1.bf16.xpose.msra.mxu0 0
        %1056 = vmatprep.subr.bf16.mxu0 0
        %1057 = vmatpush1.bf16.xpose.msra.mxu0 0
        %1058 = vmatprep.subr.bf16.mxu0 0
        %1059 = vmatpush1.bf16.xpose.msra.mxu0 0
        %1060 = vmatprep.subr.bf16.mxu0 0
        %1061 = vmatpush1.bf16.xpose.msra.mxu0 0
        %1062 = vmatprep.subr.bf16.mxu0 0
        %1063 = vmatpush1.bf16.xpose.msra.mxu0 0
        %1064 = vmatprep.subr.bf16.mxu0 0
        %1065 = vmatpush1.bf16.xpose.msra.mxu0 0
        %1066 = vmatprep.subr.bf16.mxu0 0
        %1067 = vmatpush1.bf16.xpose.msra.mxu0 0
        %1068 = vmatprep.subr.bf16.mxu0 0
        %1069 = vmatpush1.bf16.xpose.msra.mxu0 0
        %1070 = vmatprep.subr.bf16.mxu0 0
        %1071 = vmatpush1.bf16.xpose.msra.mxu0 0
        %1072 = vmatprep.subr.bf16.mxu0 0
        %1073 = vmatpush1.bf16.xpose.msra.mxu0 0
        %1074 = vmatprep.subr.bf16.mxu0 0
        %1075 = vmatpush1.bf16.xpose.msra.mxu0 0
        %1076 = vmatprep.subr.bf16.mxu0 0
        %1077 = vmatpush1.bf16.xpose.msra.mxu0 0
        %1078 = vmatprep.subr.bf16.mxu0 0
        %1079 = vmatpush1.bf16.xpose.msra.mxu0 0
        %1080 = vmatprep.mubr.bf16.mxu0 0
        %1081 = vmatmul.mubr.bf16.gmra.mrb[0].mxu0 %v1043
        %v1082 = vpop.f32.mrb[0].mxu0
        %v1083 = vadd.f32 0.0, %v1082
        %v1084 = vpop.f32.mrb[0].mxu0
        %v1085 = vpop.f32.mrb[0].mxu0
        %v1086 = vpop.f32.mrb[0].mxu0
        %1087 = vdwg.mxu0
        %v1088 = vsel %vm695, %v1083, -inf
        %1089 = vmax.xlane.f32.xlu0 %v1088
        %v1090 = vpop.xlane.xlu0 %1089
        %v1091 = vsub.f32 %v1083, %v1090
        %v1092 = vmul.f32 %v1091, 1.442695
        %v1093 = vpow.pop %v1092
        %v1094 = vsel %vm695, %v1093, 0.0
        %1095 = vadd.xlane.f32.xlu0 %v1094
        %v1096 = vpop.xlane.xlu0 %1095
        %v1097 = vrcp.pop %v1096
        %v1098 = vmul.f32 %v1093, %v1097
        %v1099 = vpack.c.bf16 %v1098, %v1098
        %1100 = vrot.lane.b32.xlu0 %v694, 72
        %v1101 = vpop.permute.xlu0 %1100
        %v1103 = vsel %vm695, %v1099, 0
        %v1106 = vsel %vm760, %v1101, 0
        %1108 = vmatprep.subr.bf16.mxu0 0
        %1109 = vmatpush1.bf16.msra.mxu0 %v1106
        %1110 = vmatprep.subr.bf16.mxu0 0
        %1111 = vmatpush1.bf16.msra.mxu0 0
        %1112 = vmatprep.subr.bf16.mxu0 0
        %1113 = vmatpush1.bf16.msra.mxu0 0
        %1114 = vmatprep.subr.bf16.mxu0 0
        %1115 = vmatpush1.bf16.msra.mxu0 0
        %1116 = vmatprep.subr.bf16.mxu0 0
        %1117 = vmatpush1.bf16.msra.mxu0 0
        %1118 = vmatprep.subr.bf16.mxu0 0
        %1119 = vmatpush1.bf16.msra.mxu0 0
        %1120 = vmatprep.subr.bf16.mxu0 0
        %1121 = vmatpush1.bf16.msra.mxu0 0
        %1122 = vmatprep.subr.bf16.mxu0 0
        %1123 = vmatpush1.bf16.msra.mxu0 0
        %1124 = vmatprep.subr.bf16.mxu0 0
        %1125 = vmatpush1.bf16.msra.mxu0 0
        %1126 = vmatprep.subr.bf16.mxu0 0
        %1127 = vmatpush1.bf16.msra.mxu0 0
        %1128 = vmatprep.subr.bf16.mxu0 0
        %1129 = vmatpush1.bf16.msra.mxu0 0
        %1130 = vmatprep.subr.bf16.mxu0 0
        %1131 = vmatpush1.bf16.msra.mxu0 0
        %1132 = vmatprep.subr.bf16.mxu0 0
        %1133 = vmatpush1.bf16.msra.mxu0 0
        %1134 = vmatprep.subr.bf16.mxu0 0
        %1135 = vmatpush1.bf16.msra.mxu0 0
        %1136 = vmatprep.subr.bf16.mxu0 0
        %1137 = vmatpush1.bf16.msra.mxu0 0
        %1138 = vmatprep.subr.bf16.mxu0 0
        %1139 = vmatpush1.bf16.msra.mxu0 0
        %1140 = vmatprep.mubr.bf16.mxu0 0
        %1141 = vmatmul.mubr.bf16.gmra.mrb[0].mxu0 %v1103
        %v1142 = vpop.f32.mrb[0].mxu0
        %v1143 = vadd.f32 0.0, %v1142
        %v1144 = vpop.f32.mrb[0].mxu0
        %v1145 = vpop.f32.mrb[0].mxu0
        %v1146 = vpop.f32.mrb[0].mxu0
        %1147 = vdwg.mxu0
        %1149 = vrot.lane.b32.xlu0 %v1143, 24
        %v1150 = vpop.permute.xlu0 %1149
        %vm1152 = vcmask 261312
        %1153 = vst.msk [vmem:[#allocation2] sm:$0xff] %vm1152, %v1150
        %v1154 = vld [vmem:[#allocation2] sm:$0xff]
        %v1155 = vpack.c.bf16 %v1154, %v1154
        %v1156 = vld [vmem:[%s7] sm:$0xf]
        %v1157 = vld [vmem:[%s7 + $0x4] sm:$0xf]
        %v1158 = vld [vmem:[%s7 + $0x8] sm:$0xf]
        %v1159 = vld [vmem:[%s7 + $0xc] sm:$0xf]
        %v1160 = vld [vmem:[%s8] sm:$0x1]
        %v1162 = vlaneseq
        %v1163 = vshrl.u32 %v1162, 7
        %v1164 = vsub.s32 0, %v1163
        %v1165 = vrot.slane %v1160, %v1164
        %v1171 = vunpack.c.l.b16 %v1156
        %v1172 = vunpack.c.l.b16 %v1157
        %v1173 = vunpack.c.l.b16 %v1158
        %v1174 = vunpack.c.l.b16 %v1159
        %v1175 = vpack.c.b16 %v1172, %v1171
        %v1176 = vpack.c.b16 %v1174, %v1173
        %v1180 = vsel %vm509, %v1155, 0
        %1182 = vmatprep.subr.bf16.mxu0 0
        %1183 = vmatpush1.bf16.msra.mxu0 %v1175
        %1184 = vmatprep.subr.bf16.mxu0 0
        %1185 = vmatpush1.bf16.msra.mxu0 %v1176
        %1186 = vmatprep.subr.bf16.mxu0 0
        %1187 = vmatpush1.bf16.msra.mxu0 0
        %1188 = vmatprep.subr.bf16.mxu0 0
        %1189 = vmatpush1.bf16.msra.mxu0 0
        %1190 = vmatprep.subr.bf16.mxu0 0
        %1191 = vmatpush1.bf16.msra.mxu0 0
        %1192 = vmatprep.subr.bf16.mxu0 0
        %1193 = vmatpush1.bf16.msra.mxu0 0
        %1194 = vmatprep.subr.bf16.mxu0 0
        %1195 = vmatpush1.bf16.msra.mxu0 0
        %1196 = vmatprep.subr.bf16.mxu0 0
        %1197 = vmatpush1.bf16.msra.mxu0 0
        %1198 = vmatprep.subr.bf16.mxu0 0
        %1199 = vmatpush1.bf16.msra.mxu0 0
        %1200 = vmatprep.subr.bf16.mxu0 0
        %1201 = vmatpush1.bf16.msra.mxu0 0
        %1202 = vmatprep.subr.bf16.mxu0 0
        %1203 = vmatpush1.bf16.msra.mxu0 0
        %1204 = vmatprep.subr.bf16.mxu0 0
        %1205 = vmatpush1.bf16.msra.mxu0 0
        %1206 = vmatprep.subr.bf16.mxu0 0
        %1207 = vmatpush1.bf16.msra.mxu0 0
        %1208 = vmatprep.subr.bf16.mxu0 0
        %1209 = vmatpush1.bf16.msra.mxu0 0
        %1210 = vmatprep.subr.bf16.mxu0 0
        %1211 = vmatpush1.bf16.msra.mxu0 0
        %1212 = vmatprep.subr.bf16.mxu0 0
        %1213 = vmatpush1.bf16.msra.mxu0 0
        %1214 = vmatprep.mubr.bf16.mxu0 0
        %1215 = vmatmul.mubr.bf16.gmra.mrb[0].mxu0 %v1180
        %v1216 = vpop.f32.mrb[0].mxu0
        %v1217 = vadd.f32 %v1165, %v1216
        %v1218 = vpop.f32.mrb[0].mxu0
        %v1219 = vpop.f32.mrb[0].mxu0
        %v1220 = vpop.f32.mrb[0].mxu0
        %1221 = vdwg.mxu0
        %v1222 = vadd.f32 %v608, %v1217
        %v1223 = vld [vmem:[%s9] sm:$0x1]
        %v1224 = vld [vmem:[%s10] sm:$0x1]
        %v1225 = vsel %vm509, %v1222, 0.0
        %1226 = vadd.xlane.f32.xlu0 %v1225
        %v1227 = vpop.xlane.xlu0 %1226
        %v1228 = vmul.f32 %v1227, %v513
        %v1229 = vmul.f32 %v1222, %v1222
        %v1230 = vsel %vm509, %v1229, 0.0
        %1231 = vadd.xlane.f32.xlu0 %v1230
        %v1232 = vpop.xlane.xlu0 %1231
        %v1233 = vmul.f32 %v1232, %v513
        %v1234 = vmul.f32 %v1228, %v1228
        %v1235 = vsub.f32 %v1233, %v1234
        %v1236 = vsub.f32 %v1222, %v1228
        %v1237 = vadd.f32 %v1235, 1e-05
        %v1238 = vrsqrt.pop %v1237
        %v1239 = vmul.f32 %v1236, %v1238
        %v1241 = vlaneseq
        %v1242 = vshrl.u32 %v1241, 7
        %v1243 = vsub.s32 0, %v1242
        %v1244 = vrot.slane %v1223, %v1243
        %v1246 = vmul.f32 %v1239, %v1244
        %v1248 = vlaneseq
        %v1249 = vshrl.u32 %v1248, 7
        %v1250 = vsub.s32 0, %v1249
        %v1251 = vrot.slane %v1224, %v1250
        %v1253 = vadd.f32 %v1246, %v1251
        %v1254 = vpack.c.bf16 %v1253, %v1253
        %v1255 = vld [vmem:[%s11] sm:$0xf]
        %v1256 = vld [vmem:[%s11 + $0x4] sm:$0xf]
        %v1257 = vld [vmem:[%s11 + $0x8] sm:$0xf]
        %v1258 = vld [vmem:[%s11 + $0xc] sm:$0xf]
        %v1259 = vld [vmem:[%s12] sm:$0x1]
        %v1261 = vlaneseq
        %v1262 = vshrl.u32 %v1261, 7
        %v1263 = vsub.s32 0, %v1262
        %v1264 = vrot.slane %v1259, %v1263
        %v1270 = vunpack.c.l.b16 %v1255
        %v1271 = vunpack.c.l.b16 %v1256
        %v1272 = vunpack.c.l.b16 %v1257
        %v1273 = vunpack.c.l.b16 %v1258
        %v1274 = vpack.c.b16 %v1271, %v1270
        %v1275 = vpack.c.b16 %v1273, %v1272
        %v1279 = vsel %vm509, %v1254, 0
        %1281 = vmatprep.subr.bf16.mxu0 0
        %1282 = vmatpush1.bf16.msra.mxu0 %v1274
        %1283 = vmatprep.subr.bf16.mxu0 0
        %1284 = vmatpush1.bf16.msra.mxu0 %v1275
        %1285 = vmatprep.subr.bf16.mxu0 0
        %1286 = vmatpush1.bf16.msra.mxu0 0
        %1287 = vmatprep.subr.bf16.mxu0 0
        %1288 = vmatpush1.bf16.msra.mxu0 0
        %1289 = vmatprep.subr.bf16.mxu0 0
        %1290 = vmatpush1.bf16.msra.mxu0 0
        %1291 = vmatprep.subr.bf16.mxu0 0
        %1292 = vmatpush1.bf16.msra.mxu0 0
        %1293 = vmatprep.subr.bf16.mxu0 0
        %1294 = vmatpush1.bf16.msra.mxu0 0
        %1295 = vmatprep.subr.bf16.mxu0 0
        %1296 = vmatpush1.bf16.msra.mxu0 0
        %1297 = vmatprep.subr.bf16.mxu0 0
        %1298 = vmatpush1.bf16.msra.mxu0 0
        %1299 = vmatprep.subr.bf16.mxu0 0
        %1300 = vmatpush1.bf16.msra.mxu0 0
        %1301 = vmatprep.subr.bf16.mxu0 0
        %1302 = vmatpush1.bf16.msra.mxu0 0
        %1303 = vmatprep.subr.bf16.mxu0 0
        %1304 = vmatpush1.bf16.msra.mxu0 0
        %1305 = vmatprep.subr.bf16.mxu0 0
        %1306 = vmatpush1.bf16.msra.mxu0 0
        %1307 = vmatprep.subr.bf16.mxu0 0
        %1308 = vmatpush1.bf16.msra.mxu0 0
        %1309 = vmatprep.subr.bf16.mxu0 0
        %1310 = vmatpush1.bf16.msra.mxu0 0
        %1311 = vmatprep.subr.bf16.mxu0 0
        %1312 = vmatpush1.bf16.msra.mxu0 0
        %1313 = vmatprep.mubr.bf16.mxu0 0
        %1314 = vmatmul.mubr.bf16.gmra.mrb[0].mxu0 %v1279
        %v1315 = vpop.f32.mrb[0].mxu0
        %v1316 = vadd.f32 %v1264, %v1315
        %v1317 = vpop.f32.mrb[0].mxu0
        %v1318 = vpop.f32.mrb[0].mxu0
        %v1319 = vpop.f32.mrb[0].mxu0
        %1320 = vdwg.mxu0
        %v1321 = vmul.f32 %v1316, 0.5
        %v1322 = vmul.f32 %v1316, 0.70710677
        %v1323 = verf.f32.pop %v1322
        %v1324 = vadd.f32 %v1323, 1.0
        %v1325 = vmul.f32 %v1321, %v1324
        %v1326 = vpack.c.bf16 %v1325, %v1325
        %v1327 = vld [vmem:[%s13] sm:$0xf]
        %v1328 = vld [vmem:[%s13 + $0x4] sm:$0xf]
        %v1329 = vld [vmem:[%s13 + $0x8] sm:$0xf]
        %v1330 = vld [vmem:[%s13 + $0xc] sm:$0xf]
        %v1331 = vld [vmem:[%s13 + $0x10] sm:$0xf]
        %v1332 = vld [vmem:[%s13 + $0x14] sm:$0xf]
        %v1333 = vld [vmem:[%s13 + $0x18] sm:$0xf]
        %v1334 = vld [vmem:[%s13 + $0x1c] sm:$0xf]
        %v1335 = vld [vmem:[%s13 + $0x20] sm:$0xf]
        %v1336 = vld [vmem:[%s13 + $0x24] sm:$0xf]
        %v1337 = vld [vmem:[%s13 + $0x28] sm:$0xf]
        %v1338 = vld [vmem:[%s13 + $0x2c] sm:$0xf]
        %v1339 = vld [vmem:[%s13 + $0x30] sm:$0xf]
        %v1340 = vld [vmem:[%s13 + $0x34] sm:$0xf]
        %v1341 = vld [vmem:[%s13 + $0x38] sm:$0xf]
        %v1342 = vld [vmem:[%s13 + $0x3c] sm:$0xf]
        %v1343 = vld [vmem:[%s14] sm:$0x1]
        %v1345 = vlaneseq
        %v1346 = vshrl.u32 %v1345, 7
        %v1347 = vsub.s32 0, %v1346
        %v1348 = vrot.slane %v1343, %v1347
        %v1366 = vunpack.c.l.b16 %v1327
        %v1367 = vunpack.c.l.b16 %v1328
        %v1368 = vunpack.c.l.b16 %v1329
        %v1369 = vunpack.c.l.b16 %v1330
        %v1370 = vunpack.c.l.b16 %v1331
        %v1371 = vunpack.c.l.b16 %v1332
        %v1372 = vunpack.c.l.b16 %v1333
        %v1373 = vunpack.c.l.b16 %v1334
        %v1374 = vunpack.c.l.b16 %v1335
        %v1375 = vunpack.c.l.b16 %v1336
        %v1376 = vunpack.c.l.b16 %v1337
        %v1377 = vunpack.c.l.b16 %v1338
        %v1378 = vunpack.c.l.b16 %v1339
        %v1379 = vunpack.c.l.b16 %v1340
        %v1380 = vunpack.c.l.b16 %v1341
        %v1381 = vunpack.c.l.b16 %v1342
        %v1382 = vpack.c.b16 %v1367, %v1366
        %v1383 = vpack.c.b16 %v1369, %v1368
        %v1384 = vpack.c.b16 %v1371, %v1370
        %v1385 = vpack.c.b16 %v1373, %v1372
        %v1386 = vpack.c.b16 %v1375, %v1374
        %v1387 = vpack.c.b16 %v1377, %v1376
        %v1388 = vpack.c.b16 %v1379, %v1378
        %v1389 = vpack.c.b16 %v1381, %v1380
        %1398 = vmatprep.subr.bf16.mxu0 0
        %1399 = vmatpush1.bf16.msra.mxu0 %v1382
        %1400 = vmatprep.subr.bf16.mxu0 0
        %1401 = vmatpush1.bf16.msra.mxu0 %v1383
        %1402 = vmatprep.subr.bf16.mxu0 0
        %1403 = vmatpush1.bf16.msra.mxu0 %v1384
        %1404 = vmatprep.subr.bf16.mxu0 0
        %1405 = vmatpush1.bf16.msra.mxu0 %v1385
        %1406 = vmatprep.subr.bf16.mxu0 0
        %1407 = vmatpush1.bf16.msra.mxu0 %v1386
        %1408 = vmatprep.subr.bf16.mxu0 0
        %1409 = vmatpush1.bf16.msra.mxu0 %v1387
        %1410 = vmatprep.subr.bf16.mxu0 0
        %1411 = vmatpush1.bf16.msra.mxu0 %v1388
        %1412 = vmatprep.subr.bf16.mxu0 0
        %1413 = vmatpush1.bf16.msra.mxu0 %v1389
        %1414 = vmatprep.subr.bf16.mxu0 0
        %1415 = vmatpush1.bf16.msra.mxu0 0
        %1416 = vmatprep.subr.bf16.mxu0 0
        %1417 = vmatpush1.bf16.msra.mxu0 0
        %1418 = vmatprep.subr.bf16.mxu0 0
        %1419 = vmatpush1.bf16.msra.mxu0 0
        %1420 = vmatprep.subr.bf16.mxu0 0
        %1421 = vmatpush1.bf16.msra.mxu0 0
        %1422 = vmatprep.subr.bf16.mxu0 0
        %1423 = vmatpush1.bf16.msra.mxu0 0
        %1424 = vmatprep.subr.bf16.mxu0 0
        %1425 = vmatpush1.bf16.msra.mxu0 0
        %1426 = vmatprep.subr.bf16.mxu0 0
        %1427 = vmatpush1.bf16.msra.mxu0 0
        %1428 = vmatprep.subr.bf16.mxu0 0
        %1429 = vmatpush1.bf16.msra.mxu0 0
        %1430 = vmatprep.mubr.bf16.mxu0 0
        %1431 = vmatmul.mubr.bf16.gmra.mrb[0].mxu0 %v1326
        %v1432 = vpop.f32.mrb[0].mxu0
        %v1433 = vadd.f32 %v1348, %v1432
        %v1434 = vpop.f32.mrb[0].mxu0
        %v1435 = vpop.f32.mrb[0].mxu0
        %v1436 = vpop.f32.mrb[0].mxu0
        %1437 = vdwg.mxu0
        %v1438 = vadd.f32 %v1222, %v1433
        %1439 = vst.msk [vmem:[%s499] sm:$0xff] %vm509, %v1438
        %s1440 = sand.u32 %s371, 1
        %s1441 = scalar_lea.sflag [#allocation4], %s1440
        %s1442 = sand.u32 %s371, 1
        %s1443 = smul.addr %s1442, 8
        %s1444 = scalar_lea.vmem [#allocation3], %s1443
        // Predicated region
        $region81: #{tpu_custom_call.1} parent=79 // pred_check
          %p1445 = pneg %p381
        $region82: #{tpu_custom_call.1} parent=79 // pred_check_branch
          %1447 = sbr.rel (%p1445) target = $region84
        $region83: #{tpu_custom_call.1} parent=79 // pred_region
          %s1449 = ssub.s32 128, 128
          %1450 = vsyncadd %s1441, %s1449
          %s1451 = sadd.s32 %s34, %s33
          %s1452 = smul.addr %s1451, 128
          %s1453 = scalar_lea.hbm %s15, %s1452
          %s1455 = sshll.u32 %s1444, 4
          %s1456 = int_to_ptr.vmem [resolvable:$true] %s1455
          %1458 = dma.vmem_to_hbm [thread:$0]  %s1456, 128, %s1453, %s1441
        $region84: #{tpu_custom_call.1} parent=79 // pred_fallthru
          _
      $region80: #{tpu_custom_call.1} parent=5 // pred_fallthru
        _
      %p1459 = scmp.le.s32.totalorder 2, %s24
      // Predicated region
      $region85: #{tpu_custom_call.1} parent=5 // pred_check
        %p1460 = pneg %p1459
      $region86: #{tpu_custom_call.1} parent=5 // pred_check_branch
        %1462 = sbr.rel (%p1460) target = $region88
      $region87: #{tpu_custom_call.1} parent=5 // pred_region
        %s1463 = ssub.s32 %s24, 2
        // Predicated region
        $region89: #{tpu_custom_call.1} parent=87 // pred_check
          %p1464 = pneg %p387
        $region90: #{tpu_custom_call.1} parent=87 // pred_check_branch
          %1466 = sbr.rel (%p1464) target = $region92
        $region91: #{tpu_custom_call.1} parent=87 // pred_region
          %s1467 = sand.u32 %s372, 1
          %s1468 = scalar_lea.sflag [#allocation4], %s1467
          %s1469 = sand.u32 %s372, 1
          %s1470 = smul.addr %s1469, 8
          %s1471 = scalar_lea.vmem [#allocation3], %s1470
          %1472 = dma.done %s1468, 128
        $region92: #{tpu_custom_call.1} parent=87 // pred_fallthru
          _
      $region88: #{tpu_custom_call.1} parent=5 // pred_fallthru
        _
    $region6: #{tpu_custom_call.1} parent=1 // loop_footer
      %s28 = sadd.s32 1, %s24
    $region7: #{tpu_custom_call.1} parent=1 // loop_footer_branch
      %23 = sbr.rel target = $region3
    $region8: #{tpu_custom_call.1} parent=1 // loop_exit
      _
    %1473 = vsyncpa [#allocation4], 1
    %s1474 = scalar_lea.sflag [#allocation4], 1
    %1475 = vsyncpa %s1474, 1

</llo_original>
